<compile_context>
chip_gen: v7x
topology: tpu7x:2x2x1
jax: 0.10.0
libtpu: 0.0.40
codegen_flags: <defaults>
</compile_context>

<pallas_src>
import functools

import jax
import jax.numpy as jnp
from jax.experimental import pallas as pl
from jax.experimental.pallas import tpu as pltpu


LANE = 128          # per-gate padded width (one vreg lane group)
BATCH_PAD = 8       # one full sublane group


# ----------------------------- Pallas kernel --------------------------------
def _lstm_reg_kernel(
    x_ref,       # (S*Bp, I)     whole (batch-padded) input, row t*Bp + b
    wih0_ref,    # (I, 4*Hp)     layer-0 input weights (transposed, gate-padded)
    whh0_ref,    # (Hp, 4*Hp)    layer-0 hidden weights (transposed, padded)
    b0_ref,      # (1, 4*Hp)     layer-0 bias (b_ih + b_hh, gate-padded)
    w1_ref,      # (2*Hp, 4*Hp)  layer-1 fused [W_ih; W_hh] (transposed, padded)
    b1_ref,      # (1, 4*Hp)     layer-1 bias (gate-padded)
    wreg_ref,    # (Hp, Op)      linear head weight (transposed, padded)
    breg_ref,    # (1, Op)       linear head bias (padded)
    o_ref,       # (S*Bp, Op)    lane-dense output
    *,
    seq_len: int,
    batch: int,      # padded batch (Bp)
    hp: int,         # padded per-gate width (LANE)
):
    # ---- hoist weights / biases out of the time loop ------------------------
    whh0 = whh0_ref[...]
    w1 = w1_ref[...]
    b1 = jnp.broadcast_to(b1_ref[...], (batch, 4 * hp))   # hoist broadcast

    # ---- layer-0 input projection for all timesteps (no recurrent dep) ------
    #   (S*Bp, I) @ (I, 4Hp) + b0  ->  (S*Bp, 4Hp)
    gx0 = (
        jnp.dot(x_ref[...], wih0_ref[...], preferred_element_type=jnp.float32)
        + b0_ref[...]
    )

    def sig(v):
        # sigmoid via tanh identity: one EUP push instead of exp + reciprocal.
        return 0.5 * (jnp.tanh(0.5 * v) + 1.0)

    def cell(gates, c_prev):
        # PyTorch gate order: i, f, g, o. Gate slices are exact 128-lane
        # vreg views thanks to host-side gate padding.
        i_g = sig(gates[:, 0 * hp:1 * hp])
        f_g = sig(gates[:, 1 * hp:2 * hp])
        g_g = jnp.tanh(gates[:, 2 * hp:3 * hp])
        o_g = sig(gates[:, 3 * hp:4 * hp])
        # Padded lanes: gates==0 -> i=f=o=0.5, g=0; with c_prev padded lanes 0,
        # c_new and h_new padded lanes stay exactly 0 (no state pollution).
        c_new = f_g * c_prev + i_g * g_g
        h_new = o_g * jnp.tanh(c_new)
        return h_new, c_new

    zeros = jnp.zeros((batch, hp), jnp.float32)
    h0, c0, h1, c1 = zeros, zeros, zeros, zeros

    # ---- fully unrolled time recurrence (seq_len is static) ------------------
    # h0(t+1) depends only on h0(t); h1(t) depends on h0(t) and h1(t-1), so the
    # two layers' MXU chains can overlap inside this single basic block.
    h1_steps = []
    for t in range(seq_len):
        # layer 0: input projection hoisted; only the recurrent dot remains
        gates0 = gx0[t * batch:(t + 1) * batch, :] + jnp.dot(
            h0, whh0, preferred_element_type=jnp.float32)
        h0, c0 = cell(gates0, c0)

        # layer 1: single fused dot with [h0_new ; h1_prev] vs [W_ih ; W_hh]
        gates1 = jnp.dot(
            jnp.concatenate([h0, h1], axis=-1), w1,
            preferred_element_type=jnp.float32) + b1
        h1, c1 = cell(gates1, c1)

        h1_steps.append(h1)   # keep in registers; no VMEM scratch round-trip

    # ---- linear head for all timesteps at once, lane-dense single store -----
    h_all = jnp.concatenate(h1_steps, axis=0)              # (S*Bp, Hp)
    out = (
        jnp.dot(h_all, wreg_ref[...], preferred_element_type=jnp.float32)
        + breg_ref[...]
    )
    o_ref[...] = out.astype(o_ref.dtype)


# ------------------------------- wrapper -------------------------------------
@functools.partial(jax.jit, static_argnames=("out_size",))
def lstm_reg_forward(x, params, *, out_size=1):
    """x: (S, B, I) float32 -> (S, B, out_size) float32."""
    S, B, I = x.shape
    Hp = LANE
    Op = LANE
    Bp = BATCH_PAD

    # Pad batch to one full sublane group; padded rows compute independent
    # garbage that never mixes with valid rows and is discarded below.
    x_p = jnp.zeros((S, Bp, I), jnp.float32).at[:, :B, :].set(x)
    x2d = x_p.reshape(S * Bp, I)

    full2d = lambda shape: pl.BlockSpec(shape, lambda i: (0, 0))

    out2d = pl.pallas_call(
        functools.partial(_lstm_reg_kernel, seq_len=S, batch=Bp, hp=Hp),
        out_shape=jax.ShapeDtypeStruct((S * Bp, Op), jnp.float32),
        grid_spec=pltpu.PrefetchScalarGridSpec(
            num_scalar_prefetch=0,
            grid=(1,),                               # single invocation
            in_specs=[
                full2d((S * Bp, I)),                 # x (batch-padded, flattened)
                full2d((I, 4 * Hp)),                 # W_ih layer 0 (T, padded)
                full2d((Hp, 4 * Hp)),                # W_hh layer 0 (T, padded)
                full2d((1, 4 * Hp)),                 # bias layer 0 (padded)
                full2d((2 * Hp, 4 * Hp)),            # fused [W_ih;W_hh] layer 1
                full2d((1, 4 * Hp)),                 # bias layer 1 (padded)
                full2d((Hp, Op)),                    # linear weight (T, padded)
                full2d((1, Op)),                     # linear bias (padded)
            ],
            out_specs=full2d((S * Bp, Op)),
        ),
        compiler_params=pltpu.CompilerParams(
            dimension_semantics=("arbitrary",),
        ),
    )(
        x2d,
        params["wih0_t"], params["whh0_t"], params["b0"],
        params["w1_t"], params["b1"],
        params["wreg_t"], params["breg"],
    )
    # Un-pad batch and output lanes.
    return out2d.reshape(S, Bp, Op)[:, :B, :out_size]


# --------------------------- parameter init ----------------------------------
def init_raw_params(key, input_size=64, hidden_size=10, output_size=1):
    """PyTorch-shaped weights, U(-1/sqrt(H), 1/sqrt(H)) like nn.LSTM / nn.Linear."""
    H, I, O = hidden_size, input_size, output_size
    k = 1.0 / jnp.sqrt(jnp.float32(H))
    keys = jax.random.split(key, 10)
    u = lambda kk, shape: jax.random.uniform(kk, shape, jnp.float32, -k, k)
    return {
        # layer 0 (input_size -> hidden): W_ih (4H, I), W_hh (4H, H)
        "wih0": u(keys[0], (4 * H, I)), "whh0": u(keys[1], (4 * H, H)),
        "bih0": u(keys[2], (4 * H,)),   "bhh0": u(keys[3], (4 * H,)),
        # layer 1 (hidden -> hidden)
        "wih1": u(keys[4], (4 * H, H)), "whh1": u(keys[5], (4 * H, H)),
        "bih1": u(keys[6], (4 * H,)),   "bhh1": u(keys[7], (4 * H,)),
        # linear head: (O, H), (O,)
        "wreg": u(keys[8], (O, H)),     "breg": u(keys[9], (O,)),
    }


def pack_params(raw):
    """Kernel layout: transposed weights, combined biases, fused layer-1 weight,
    and host-side padding so each gate starts at a 128-lane boundary."""
    H = raw["whh0"].shape[1]
    I = raw["wih0"].shape[1]
    O = raw["wreg"].shape[0]
    Hp, Op = LANE, LANE
    assert H <= Hp and O <= Op

    def pad_gate_cols(w_t):
        # (K, 4H) -> (K, 4*Hp): gate g's H columns land at [g*Hp : g*Hp + H].
        K = w_t.shape[0]
        out = jnp.zeros((K, 4 * Hp), jnp.float32)
        for g in range(4):
            out = out.at[:, g * Hp:g * Hp + H].set(w_t[:, g * H:(g + 1) * H])
        return out

    def pad_gate_bias(b):
        out = jnp.zeros((4 * Hp,), jnp.float32)
        for g in range(4):
            out = out.at[g * Hp:g * Hp + H].set(b[g * H:(g + 1) * H])
        return out[None, :]

    # layer 0
    wih0_t = pad_gate_cols(raw["wih0"].T)                               # (I, 4Hp)
    whh0_t = jnp.zeros((Hp, 4 * Hp), jnp.float32).at[:H, :].set(
        pad_gate_cols(raw["whh0"].T))                                   # (Hp, 4Hp)
    b0 = pad_gate_bias(raw["bih0"] + raw["bhh0"])                       # (1, 4Hp)

    # layer 1 fused [W_ih ; W_hh] against concat([h0_pad, h1_pad])
    w1_t = jnp.zeros((2 * Hp, 4 * Hp), jnp.float32)
    w1_t = w1_t.at[:H, :].set(pad_gate_cols(raw["wih1"].T))
    w1_t = w1_t.at[Hp:Hp + H, :].set(pad_gate_cols(raw["whh1"].T))      # (2Hp, 4Hp)
    b1 = pad_gate_bias(raw["bih1"] + raw["bhh1"])                       # (1, 4Hp)

    # linear head
    wreg_t = jnp.zeros((Hp, Op), jnp.float32).at[:H, :O].set(raw["wreg"].T)
    breg = jnp.zeros((1, Op), jnp.float32).at[0, :O].set(raw["breg"])

    return {
        "wih0_t": wih0_t, "whh0_t": whh0_t, "b0": b0,
        "w1_t": w1_t, "b1": b1,
        "wreg_t": wreg_t, "breg": breg,
    }


# --------------------------- pure-JAX reference -------------------------------
def lstm_reg_reference(x, raw):
    """Straight PyTorch-semantics LSTM (unfused, unpadded weights) via lax.scan."""
    H = raw["whh0"].shape[1]
    B = x.shape[1]

    def cell(x_in, h, c, wih, whh, bih, bhh):
        gates = x_in @ wih.T + bih + h @ whh.T + bhh
        i_g = jax.nn.sigmoid(gates[:, 0 * H:1 * H])
        f_g = jax.nn.sigmoid(gates[:, 1 * H:2 * H])
        g_g = jnp.tanh(gates[:, 2 * H:3 * H])
        o_g = jax.nn.sigmoid(gates[:, 3 * H:4 * H])
        c_new = f_g * c + i_g * g_g
        h_new = o_g * jnp.tanh(c_new)
        return h_new, c_new

    def step(carry, x_t):
        h0, c0, h1, c1 = carry
        h0, c0 = cell(x_t, h0, c0, raw["wih0"], raw["whh0"], raw["bih0"], raw["bhh0"])
        h1, c1 = cell(h0, h1, c1, raw["wih1"], raw["whh1"], raw["bih1"], raw["bhh1"])
        y = h1 @ raw["wreg"].T + raw["breg"]
        return (h0, c0, h1, c1), y

    z = jnp.zeros((B, H), jnp.float32)
    _, ys = jax.lax.scan(step, (z, z, z, z), x)
    return ys


# ---------------------------------- main --------------------------------------
if __name__ == "__main__":
    S, B, I, H, O = 8, 2, 64, 10, 1   # seq=8, batch=2, input=64, hidden=10, out=1

    key = jax.random.PRNGKey(0)
    kx, kp = jax.random.split(key)
    x = jax.random.normal(kx, (S, B, I), jnp.float32)
    raw = init_raw_params(kp, input_size=I, hidden_size=H, output_size=O)
    params = pack_params(raw)

    y = lstm_reg_forward(x, params, out_size=O)
    y = jax.block_until_ready(y)

    y_ref = lstm_reg_reference(x, raw)
    assert y.shape == (S, B, O)
    assert jnp.allclose(y, y_ref, atol=1e-4, rtol=1e-4), "mismatch vs reference"

    print("KERNEL_OK")
</pallas_src>

<mosaic_0001>
module attributes {stable_mosaic.version = 11 : i64} {
  func.func @_lstm_reg_kernel(%arg0: i32, %arg1: memref<64x64xf32, #tpu.memory_space<vmem>>, %arg2: memref<64x512xf32, #tpu.memory_space<vmem>>, %arg3: memref<128x512xf32, #tpu.memory_space<vmem>>, %arg4: memref<1x512xf32, #tpu.memory_space<vmem>>, %arg5: memref<256x512xf32, #tpu.memory_space<vmem>>, %arg6: memref<1x512xf32, #tpu.memory_space<vmem>>, %arg7: memref<128x128xf32, #tpu.memory_space<vmem>>, %arg8: memref<1x128xf32, #tpu.memory_space<vmem>>, %arg9: memref<64x128xf32, #tpu.memory_space<vmem>>) attributes {dimension_semantics = [#tpu.dimension_semantics<arbitrary>], iteration_bounds = array<i64: 1>, scalar_prefetch = 0 : i64, scratch_operands = 0 : i64, tpu.core_type = #tpu.core_type<tc>, window_params = [{pipeline_mode = #tpu.pipeline_mode<synchronous>, transform_indices = @transform_0, window_bounds = array<i64: 64, 64>}, {pipeline_mode = #tpu.pipeline_mode<synchronous>, transform_indices = @transform_1, window_bounds = array<i64: 64, 512>}, {pipeline_mode = #tpu.pipeline_mode<synchronous>, transform_indices = @transform_2, window_bounds = array<i64: 128, 512>}, {pipeline_mode = #tpu.pipeline_mode<synchronous>, transform_indices = @transform_3, window_bounds = array<i64: 1, 512>}, {pipeline_mode = #tpu.pipeline_mode<synchronous>, transform_indices = @transform_4, window_bounds = array<i64: 256, 512>}, {pipeline_mode = #tpu.pipeline_mode<synchronous>, transform_indices = @transform_5, window_bounds = array<i64: 1, 512>}, {pipeline_mode = #tpu.pipeline_mode<synchronous>, transform_indices = @transform_6, window_bounds = array<i64: 128, 128>}, {pipeline_mode = #tpu.pipeline_mode<synchronous>, transform_indices = @transform_7, window_bounds = array<i64: 1, 128>}, {pipeline_mode = #tpu.pipeline_mode<synchronous>, transform_indices = @transform_8, window_bounds = array<i64: 64, 128>}]} {
    %c0 = arith.constant 0 : index
    %c0_0 = arith.constant 0 : index
    %0 = vector.load %arg3[%c0, %c0_0] : memref<128x512xf32, #tpu.memory_space<vmem>>, vector<128x512xf32>
    %c0_1 = arith.constant 0 : index
    %c0_2 = arith.constant 0 : index
    %1 = vector.load %arg5[%c0_1, %c0_2] : memref<256x512xf32, #tpu.memory_space<vmem>>, vector<256x512xf32>
    %c0_3 = arith.constant 0 : index
    %c0_4 = arith.constant 0 : index
    %2 = vector.load %arg6[%c0_3, %c0_4] : memref<1x512xf32, #tpu.memory_space<vmem>>, vector<1x512xf32>
    %3 = vector.shape_cast %2 : vector<1x512xf32> to vector<1x512xf32>
    %4 = vector.broadcast %3 : vector<1x512xf32> to vector<8x512xf32>
    %c0_5 = arith.constant 0 : index
    %c0_6 = arith.constant 0 : index
    %5 = vector.load %arg1[%c0_5, %c0_6] : memref<64x64xf32, #tpu.memory_space<vmem>>, vector<64x64xf32>
    %c0_7 = arith.constant 0 : index
    %c0_8 = arith.constant 0 : index
    %6 = vector.load %arg2[%c0_7, %c0_8] : memref<64x512xf32, #tpu.memory_space<vmem>>, vector<64x512xf32>
    %cst = arith.constant dense<0.000000e+00> : vector<64x512xf32>
    %7 = tpu.matmul %5, %6, %cst {dimension_numbers = #tpu.dot_dimension_numbers<[1], [0], [0], [1], [0, 0, 1, 1], [], []>} : vector<64x64xf32>, vector<64x512xf32>, vector<64x512xf32> -> vector<64x512xf32>
    %c0_9 = arith.constant 0 : index
    %c0_10 = arith.constant 0 : index
    %8 = vector.load %arg4[%c0_9, %c0_10] : memref<1x512xf32, #tpu.memory_space<vmem>>, vector<1x512xf32>
    %9 = vector.broadcast %8 : vector<1x512xf32> to vector<64x512xf32>
    %10 = arith.addf %7, %9 : vector<64x512xf32>
    %cst_11 = arith.constant 0.000000e+00 : f32
    %11 = vector.broadcast %cst_11 : f32 to vector<8x128xf32>
    %12 = vector.extract_strided_slice %10 {offsets = [0, 0], sizes = [8, 512], strides = [1, 1]} : vector<64x512xf32> to vector<8x512xf32>
    %cst_12 = arith.constant dense<0.000000e+00> : vector<8x512xf32>
    %13 = tpu.matmul %11, %0, %cst_12 {dimension_numbers = #tpu.dot_dimension_numbers<[1], [0], [0], [1], [0, 0, 1, 1], [], []>} : vector<8x128xf32>, vector<128x512xf32>, vector<8x512xf32> -> vector<8x512xf32>
    %14 = arith.addf %12, %13 : vector<8x512xf32>
    %15 = vector.extract_strided_slice %14 {offsets = [0, 0], sizes = [8, 128], strides = [1, 1]} : vector<8x512xf32> to vector<8x128xf32>
    %cst_13 = arith.constant 5.000000e-01 : f32
    %16 = vector.broadcast %cst_13 : f32 to vector<8x128xf32>
    %17 = arith.mulf %16, %15 : vector<8x128xf32>
    %18 = math.tanh %17 : vector<8x128xf32>
    %cst_14 = arith.constant 1.000000e+00 : f32
    %19 = vector.broadcast %cst_14 : f32 to vector<8x128xf32>
    %20 = arith.addf %18, %19 : vector<8x128xf32>
    %cst_15 = arith.constant 5.000000e-01 : f32
    %21 = vector.broadcast %cst_15 : f32 to vector<8x128xf32>
    %22 = arith.mulf %21, %20 : vector<8x128xf32>
    %23 = vector.extract_strided_slice %14 {offsets = [0, 128], sizes = [8, 128], strides = [1, 1]} : vector<8x512xf32> to vector<8x128xf32>
    %cst_16 = arith.constant 5.000000e-01 : f32
    %24 = vector.broadcast %cst_16 : f32 to vector<8x128xf32>
    %25 = arith.mulf %24, %23 : vector<8x128xf32>
    %26 = math.tanh %25 : vector<8x128xf32>
    %cst_17 = arith.constant 1.000000e+00 : f32
    %27 = vector.broadcast %cst_17 : f32 to vector<8x128xf32>
    %28 = arith.addf %26, %27 : vector<8x128xf32>
    %cst_18 = arith.constant 5.000000e-01 : f32
    %29 = vector.broadcast %cst_18 : f32 to vector<8x128xf32>
    %30 = arith.mulf %29, %28 : vector<8x128xf32>
    %31 = vector.extract_strided_slice %14 {offsets = [0, 256], sizes = [8, 128], strides = [1, 1]} : vector<8x512xf32> to vector<8x128xf32>
    %32 = math.tanh %31 : vector<8x128xf32>
    %33 = vector.extract_strided_slice %14 {offsets = [0, 384], sizes = [8, 128], strides = [1, 1]} : vector<8x512xf32> to vector<8x128xf32>
    %cst_19 = arith.constant 5.000000e-01 : f32
    %34 = vector.broadcast %cst_19 : f32 to vector<8x128xf32>
    %35 = arith.mulf %34, %33 : vector<8x128xf32>
    %36 = math.tanh %35 : vector<8x128xf32>
    %cst_20 = arith.constant 1.000000e+00 : f32
    %37 = vector.broadcast %cst_20 : f32 to vector<8x128xf32>
    %38 = arith.addf %36, %37 : vector<8x128xf32>
    %cst_21 = arith.constant 5.000000e-01 : f32
    %39 = vector.broadcast %cst_21 : f32 to vector<8x128xf32>
    %40 = arith.mulf %39, %38 : vector<8x128xf32>
    %41 = arith.mulf %30, %11 : vector<8x128xf32>
    %42 = arith.mulf %22, %32 : vector<8x128xf32>
    %43 = arith.addf %41, %42 : vector<8x128xf32>
    %44 = math.tanh %43 : vector<8x128xf32>
    %45 = arith.mulf %40, %44 : vector<8x128xf32>
    %46 = tpu.concatenate %45, %11 in 1 : vector<8x128xf32>, vector<8x128xf32> -> vector<8x256xf32>
    %cst_22 = arith.constant dense<0.000000e+00> : vector<8x512xf32>
    %47 = tpu.matmul %46, %1, %cst_22 {dimension_numbers = #tpu.dot_dimension_numbers<[1], [0], [0], [1], [0, 0, 1, 1], [], []>} : vector<8x256xf32>, vector<256x512xf32>, vector<8x512xf32> -> vector<8x512xf32>
    %48 = arith.addf %47, %4 : vector<8x512xf32>
    %49 = vector.extract_strided_slice %48 {offsets = [0, 0], sizes = [8, 128], strides = [1, 1]} : vector<8x512xf32> to vector<8x128xf32>
    %cst_23 = arith.constant 5.000000e-01 : f32
    %50 = vector.broadcast %cst_23 : f32 to vector<8x128xf32>
    %51 = arith.mulf %50, %49 : vector<8x128xf32>
    %52 = math.tanh %51 : vector<8x128xf32>
    %cst_24 = arith.constant 1.000000e+00 : f32
    %53 = vector.broadcast %cst_24 : f32 to vector<8x128xf32>
    %54 = arith.addf %52, %53 : vector<8x128xf32>
    %cst_25 = arith.constant 5.000000e-01 : f32
    %55 = vector.broadcast %cst_25 : f32 to vector<8x128xf32>
    %56 = arith.mulf %55, %54 : vector<8x128xf32>
    %57 = vector.extract_strided_slice %48 {offsets = [0, 128], sizes = [8, 128], strides = [1, 1]} : vector<8x512xf32> to vector<8x128xf32>
    %cst_26 = arith.constant 5.000000e-01 : f32
    %58 = vector.broadcast %cst_26 : f32 to vector<8x128xf32>
    %59 = arith.mulf %58, %57 : vector<8x128xf32>
    %60 = math.tanh %59 : vector<8x128xf32>
    %cst_27 = arith.constant 1.000000e+00 : f32
    %61 = vector.broadcast %cst_27 : f32 to vector<8x128xf32>
    %62 = arith.addf %60, %61 : vector<8x128xf32>
    %cst_28 = arith.constant 5.000000e-01 : f32
    %63 = vector.broadcast %cst_28 : f32 to vector<8x128xf32>
    %64 = arith.mulf %63, %62 : vector<8x128xf32>
    %65 = vector.extract_strided_slice %48 {offsets = [0, 256], sizes = [8, 128], strides = [1, 1]} : vector<8x512xf32> to vector<8x128xf32>
    %66 = math.tanh %65 : vector<8x128xf32>
    %67 = vector.extract_strided_slice %48 {offsets = [0, 384], sizes = [8, 128], strides = [1, 1]} : vector<8x512xf32> to vector<8x128xf32>
    %cst_29 = arith.constant 5.000000e-01 : f32
    %68 = vector.broadcast %cst_29 : f32 to vector<8x128xf32>
    %69 = arith.mulf %68, %67 : vector<8x128xf32>
    %70 = math.tanh %69 : vector<8x128xf32>
    %cst_30 = arith.constant 1.000000e+00 : f32
    %71 = vector.broadcast %cst_30 : f32 to vector<8x128xf32>
    %72 = arith.addf %70, %71 : vector<8x128xf32>
    %cst_31 = arith.constant 5.000000e-01 : f32
    %73 = vector.broadcast %cst_31 : f32 to vector<8x128xf32>
    %74 = arith.mulf %73, %72 : vector<8x128xf32>
    %75 = arith.mulf %64, %11 : vector<8x128xf32>
    %76 = arith.mulf %56, %66 : vector<8x128xf32>
    %77 = arith.addf %75, %76 : vector<8x128xf32>
    %78 = math.tanh %77 : vector<8x128xf32>
    %79 = arith.mulf %74, %78 : vector<8x128xf32>
    %80 = vector.extract_strided_slice %10 {offsets = [8, 0], sizes = [8, 512], strides = [1, 1]} : vector<64x512xf32> to vector<8x512xf32>
    %cst_32 = arith.constant dense<0.000000e+00> : vector<8x512xf32>
    %81 = tpu.matmul %45, %0, %cst_32 {dimension_numbers = #tpu.dot_dimension_numbers<[1], [0], [0], [1], [0, 0, 1, 1], [], []>} : vector<8x128xf32>, vector<128x512xf32>, vector<8x512xf32> -> vector<8x512xf32>
    %82 = arith.addf %80, %81 : vector<8x512xf32>
    %83 = vector.extract_strided_slice %82 {offsets = [0, 0], sizes = [8, 128], strides = [1, 1]} : vector<8x512xf32> to vector<8x128xf32>
    %cst_33 = arith.constant 5.000000e-01 : f32
    %84 = vector.broadcast %cst_33 : f32 to vector<8x128xf32>
    %85 = arith.mulf %84, %83 : vector<8x128xf32>
    %86 = math.tanh %85 : vector<8x128xf32>
    %cst_34 = arith.constant 1.000000e+00 : f32
    %87 = vector.broadcast %cst_34 : f32 to vector<8x128xf32>
    %88 = arith.addf %86, %87 : vector<8x128xf32>
    %cst_35 = arith.constant 5.000000e-01 : f32
    %89 = vector.broadcast %cst_35 : f32 to vector<8x128xf32>
    %90 = arith.mulf %89, %88 : vector<8x128xf32>
    %91 = vector.extract_strided_slice %82 {offsets = [0, 128], sizes = [8, 128], strides = [1, 1]} : vector<8x512xf32> to vector<8x128xf32>
    %cst_36 = arith.constant 5.000000e-01 : f32
    %92 = vector.broadcast %cst_36 : f32 to vector<8x128xf32>
    %93 = arith.mulf %92, %91 : vector<8x128xf32>
    %94 = math.tanh %93 : vector<8x128xf32>
    %cst_37 = arith.constant 1.000000e+00 : f32
    %95 = vector.broadcast %cst_37 : f32 to vector<8x128xf32>
    %96 = arith.addf %94, %95 : vector<8x128xf32>
    %cst_38 = arith.constant 5.000000e-01 : f32
    %97 = vector.broadcast %cst_38 : f32 to vector<8x128xf32>
    %98 = arith.mulf %97, %96 : vector<8x128xf32>
    %99 = vector.extract_strided_slice %82 {offsets = [0, 256], sizes = [8, 128], strides = [1, 1]} : vector<8x512xf32> to vector<8x128xf32>
    %100 = math.tanh %99 : vector<8x128xf32>
    %101 = vector.extract_strided_slice %82 {offsets = [0, 384], sizes = [8, 128], strides = [1, 1]} : vector<8x512xf32> to vector<8x128xf32>
    %cst_39 = arith.constant 5.000000e-01 : f32
    %102 = vector.broadcast %cst_39 : f32 to vector<8x128xf32>
    %103 = arith.mulf %102, %101 : vector<8x128xf32>
    %104 = math.tanh %103 : vector<8x128xf32>
    %cst_40 = arith.constant 1.000000e+00 : f32
    %105 = vector.broadcast %cst_40 : f32 to vector<8x128xf32>
    %106 = arith.addf %104, %105 : vector<8x128xf32>
    %cst_41 = arith.constant 5.000000e-01 : f32
    %107 = vector.broadcast %cst_41 : f32 to vector<8x128xf32>
    %108 = arith.mulf %107, %106 : vector<8x128xf32>
    %109 = arith.mulf %98, %43 : vector<8x128xf32>
    %110 = arith.mulf %90, %100 : vector<8x128xf32>
    %111 = arith.addf %109, %110 : vector<8x128xf32>
    %112 = math.tanh %111 : vector<8x128xf32>
    %113 = arith.mulf %108, %112 : vector<8x128xf32>
    %114 = tpu.concatenate %113, %79 in 1 : vector<8x128xf32>, vector<8x128xf32> -> vector<8x256xf32>
    %cst_42 = arith.constant dense<0.000000e+00> : vector<8x512xf32>
    %115 = tpu.matmul %114, %1, %cst_42 {dimension_numbers = #tpu.dot_dimension_numbers<[1], [0], [0], [1], [0, 0, 1, 1], [], []>} : vector<8x256xf32>, vector<256x512xf32>, vector<8x512xf32> -> vector<8x512xf32>
    %116 = arith.addf %115, %4 : vector<8x512xf32>
    %117 = vector.extract_strided_slice %116 {offsets = [0, 0], sizes = [8, 128], strides = [1, 1]} : vector<8x512xf32> to vector<8x128xf32>
    %cst_43 = arith.constant 5.000000e-01 : f32
    %118 = vector.broadcast %cst_43 : f32 to vector<8x128xf32>
    %119 = arith.mulf %118, %117 : vector<8x128xf32>
    %120 = math.tanh %119 : vector<8x128xf32>
    %cst_44 = arith.constant 1.000000e+00 : f32
    %121 = vector.broadcast %cst_44 : f32 to vector<8x128xf32>
    %122 = arith.addf %120, %121 : vector<8x128xf32>
    %cst_45 = arith.constant 5.000000e-01 : f32
    %123 = vector.broadcast %cst_45 : f32 to vector<8x128xf32>
    %124 = arith.mulf %123, %122 : vector<8x128xf32>
    %125 = vector.extract_strided_slice %116 {offsets = [0, 128], sizes = [8, 128], strides = [1, 1]} : vector<8x512xf32> to vector<8x128xf32>
    %cst_46 = arith.constant 5.000000e-01 : f32
    %126 = vector.broadcast %cst_46 : f32 to vector<8x128xf32>
    %127 = arith.mulf %126, %125 : vector<8x128xf32>
    %128 = math.tanh %127 : vector<8x128xf32>
    %cst_47 = arith.constant 1.000000e+00 : f32
    %129 = vector.broadcast %cst_47 : f32 to vector<8x128xf32>
    %130 = arith.addf %128, %129 : vector<8x128xf32>
    %cst_48 = arith.constant 5.000000e-01 : f32
    %131 = vector.broadcast %cst_48 : f32 to vector<8x128xf32>
    %132 = arith.mulf %131, %130 : vector<8x128xf32>
    %133 = vector.extract_strided_slice %116 {offsets = [0, 256], sizes = [8, 128], strides = [1, 1]} : vector<8x512xf32> to vector<8x128xf32>
    %134 = math.tanh %133 : vector<8x128xf32>
    %135 = vector.extract_strided_slice %116 {offsets = [0, 384], sizes = [8, 128], strides = [1, 1]} : vector<8x512xf32> to vector<8x128xf32>
    %cst_49 = arith.constant 5.000000e-01 : f32
    %136 = vector.broadcast %cst_49 : f32 to vector<8x128xf32>
    %137 = arith.mulf %136, %135 : vector<8x128xf32>
    %138 = math.tanh %137 : vector<8x128xf32>
    %cst_50 = arith.constant 1.000000e+00 : f32
    %139 = vector.broadcast %cst_50 : f32 to vector<8x128xf32>
    %140 = arith.addf %138, %139 : vector<8x128xf32>
    %cst_51 = arith.constant 5.000000e-01 : f32
    %141 = vector.broadcast %cst_51 : f32 to vector<8x128xf32>
    %142 = arith.mulf %141, %140 : vector<8x128xf32>
    %143 = arith.mulf %132, %77 : vector<8x128xf32>
    %144 = arith.mulf %124, %134 : vector<8x128xf32>
    %145 = arith.addf %143, %144 : vector<8x128xf32>
    %146 = math.tanh %145 : vector<8x128xf32>
    %147 = arith.mulf %142, %146 : vector<8x128xf32>
    %148 = vector.extract_strided_slice %10 {offsets = [16, 0], sizes = [8, 512], strides = [1, 1]} : vector<64x512xf32> to vector<8x512xf32>
    %cst_52 = arith.constant dense<0.000000e+00> : vector<8x512xf32>
    %149 = tpu.matmul %113, %0, %cst_52 {dimension_numbers = #tpu.dot_dimension_numbers<[1], [0], [0], [1], [0, 0, 1, 1], [], []>} : vector<8x128xf32>, vector<128x512xf32>, vector<8x512xf32> -> vector<8x512xf32>
    %150 = arith.addf %148, %149 : vector<8x512xf32>
    %151 = vector.extract_strided_slice %150 {offsets = [0, 0], sizes = [8, 128], strides = [1, 1]} : vector<8x512xf32> to vector<8x128xf32>
    %cst_53 = arith.constant 5.000000e-01 : f32
    %152 = vector.broadcast %cst_53 : f32 to vector<8x128xf32>
    %153 = arith.mulf %152, %151 : vector<8x128xf32>
    %154 = math.tanh %153 : vector<8x128xf32>
    %cst_54 = arith.constant 1.000000e+00 : f32
    %155 = vector.broadcast %cst_54 : f32 to vector<8x128xf32>
    %156 = arith.addf %154, %155 : vector<8x128xf32>
    %cst_55 = arith.constant 5.000000e-01 : f32
    %157 = vector.broadcast %cst_55 : f32 to vector<8x128xf32>
    %158 = arith.mulf %157, %156 : vector<8x128xf32>
    %159 = vector.extract_strided_slice %150 {offsets = [0, 128], sizes = [8, 128], strides = [1, 1]} : vector<8x512xf32> to vector<8x128xf32>
    %cst_56 = arith.constant 5.000000e-01 : f32
    %160 = vector.broadcast %cst_56 : f32 to vector<8x128xf32>
    %161 = arith.mulf %160, %159 : vector<8x128xf32>
    %162 = math.tanh %161 : vector<8x128xf32>
    %cst_57 = arith.constant 1.000000e+00 : f32
    %163 = vector.broadcast %cst_57 : f32 to vector<8x128xf32>
    %164 = arith.addf %162, %163 : vector<8x128xf32>
    %cst_58 = arith.constant 5.000000e-01 : f32
    %165 = vector.broadcast %cst_58 : f32 to vector<8x128xf32>
    %166 = arith.mulf %165, %164 : vector<8x128xf32>
    %167 = vector.extract_strided_slice %150 {offsets = [0, 256], sizes = [8, 128], strides = [1, 1]} : vector<8x512xf32> to vector<8x128xf32>
    %168 = math.tanh %167 : vector<8x128xf32>
    %169 = vector.extract_strided_slice %150 {offsets = [0, 384], sizes = [8, 128], strides = [1, 1]} : vector<8x512xf32> to vector<8x128xf32>
    %cst_59 = arith.constant 5.000000e-01 : f32
    %170 = vector.broadcast %cst_59 : f32 to vector<8x128xf32>
    %171 = arith.mulf %170, %169 : vector<8x128xf32>
    %172 = math.tanh %171 : vector<8x128xf32>
    %cst_60 = arith.constant 1.000000e+00 : f32
    %173 = vector.broadcast %cst_60 : f32 to vector<8x128xf32>
    %174 = arith.addf %172, %173 : vector<8x128xf32>
    %cst_61 = arith.constant 5.000000e-01 : f32
    %175 = vector.broadcast %cst_61 : f32 to vector<8x128xf32>
    %176 = arith.mulf %175, %174 : vector<8x128xf32>
    %177 = arith.mulf %166, %111 : vector<8x128xf32>
    %178 = arith.mulf %158, %168 : vector<8x128xf32>
    %179 = arith.addf %177, %178 : vector<8x128xf32>
    %180 = math.tanh %179 : vector<8x128xf32>
    %181 = arith.mulf %176, %180 : vector<8x128xf32>
    %182 = tpu.concatenate %181, %147 in 1 : vector<8x128xf32>, vector<8x128xf32> -> vector<8x256xf32>
    %cst_62 = arith.constant dense<0.000000e+00> : vector<8x512xf32>
    %183 = tpu.matmul %182, %1, %cst_62 {dimension_numbers = #tpu.dot_dimension_numbers<[1], [0], [0], [1], [0, 0, 1, 1], [], []>} : vector<8x256xf32>, vector<256x512xf32>, vector<8x512xf32> -> vector<8x512xf32>
    %184 = arith.addf %183, %4 : vector<8x512xf32>
    %185 = vector.extract_strided_slice %184 {offsets = [0, 0], sizes = [8, 128], strides = [1, 1]} : vector<8x512xf32> to vector<8x128xf32>
    %cst_63 = arith.constant 5.000000e-01 : f32
    %186 = vector.broadcast %cst_63 : f32 to vector<8x128xf32>
    %187 = arith.mulf %186, %185 : vector<8x128xf32>
    %188 = math.tanh %187 : vector<8x128xf32>
    %cst_64 = arith.constant 1.000000e+00 : f32
    %189 = vector.broadcast %cst_64 : f32 to vector<8x128xf32>
    %190 = arith.addf %188, %189 : vector<8x128xf32>
    %cst_65 = arith.constant 5.000000e-01 : f32
    %191 = vector.broadcast %cst_65 : f32 to vector<8x128xf32>
    %192 = arith.mulf %191, %190 : vector<8x128xf32>
    %193 = vector.extract_strided_slice %184 {offsets = [0, 128], sizes = [8, 128], strides = [1, 1]} : vector<8x512xf32> to vector<8x128xf32>
    %cst_66 = arith.constant 5.000000e-01 : f32
    %194 = vector.broadcast %cst_66 : f32 to vector<8x128xf32>
    %195 = arith.mulf %194, %193 : vector<8x128xf32>
    %196 = math.tanh %195 : vector<8x128xf32>
    %cst_67 = arith.constant 1.000000e+00 : f32
    %197 = vector.broadcast %cst_67 : f32 to vector<8x128xf32>
    %198 = arith.addf %196, %197 : vector<8x128xf32>
    %cst_68 = arith.constant 5.000000e-01 : f32
    %199 = vector.broadcast %cst_68 : f32 to vector<8x128xf32>
    %200 = arith.mulf %199, %198 : vector<8x128xf32>
    %201 = vector.extract_strided_slice %184 {offsets = [0, 256], sizes = [8, 128], strides = [1, 1]} : vector<8x512xf32> to vector<8x128xf32>
    %202 = math.tanh %201 : vector<8x128xf32>
    %203 = vector.extract_strided_slice %184 {offsets = [0, 384], sizes = [8, 128], strides = [1, 1]} : vector<8x512xf32> to vector<8x128xf32>
    %cst_69 = arith.constant 5.000000e-01 : f32
    %204 = vector.broadcast %cst_69 : f32 to vector<8x128xf32>
    %205 = arith.mulf %204, %203 : vector<8x128xf32>
    %206 = math.tanh %205 : vector<8x128xf32>
    %cst_70 = arith.constant 1.000000e+00 : f32
    %207 = vector.broadcast %cst_70 : f32 to vector<8x128xf32>
    %208 = arith.addf %206, %207 : vector<8x128xf32>
    %cst_71 = arith.constant 5.000000e-01 : f32
    %209 = vector.broadcast %cst_71 : f32 to vector<8x128xf32>
    %210 = arith.mulf %209, %208 : vector<8x128xf32>
    %211 = arith.mulf %200, %145 : vector<8x128xf32>
    %212 = arith.mulf %192, %202 : vector<8x128xf32>
    %213 = arith.addf %211, %212 : vector<8x128xf32>
    %214 = math.tanh %213 : vector<8x128xf32>
    %215 = arith.mulf %210, %214 : vector<8x128xf32>
    %216 = vector.extract_strided_slice %10 {offsets = [24, 0], sizes = [8, 512], strides = [1, 1]} : vector<64x512xf32> to vector<8x512xf32>
    %cst_72 = arith.constant dense<0.000000e+00> : vector<8x512xf32>
    %217 = tpu.matmul %181, %0, %cst_72 {dimension_numbers = #tpu.dot_dimension_numbers<[1], [0], [0], [1], [0, 0, 1, 1], [], []>} : vector<8x128xf32>, vector<128x512xf32>, vector<8x512xf32> -> vector<8x512xf32>
    %218 = arith.addf %216, %217 : vector<8x512xf32>
    %219 = vector.extract_strided_slice %218 {offsets = [0, 0], sizes = [8, 128], strides = [1, 1]} : vector<8x512xf32> to vector<8x128xf32>
    %cst_73 = arith.constant 5.000000e-01 : f32
    %220 = vector.broadcast %cst_73 : f32 to vector<8x128xf32>
    %221 = arith.mulf %220, %219 : vector<8x128xf32>
    %222 = math.tanh %221 : vector<8x128xf32>
    %cst_74 = arith.constant 1.000000e+00 : f32
    %223 = vector.broadcast %cst_74 : f32 to vector<8x128xf32>
    %224 = arith.addf %222, %223 : vector<8x128xf32>
    %cst_75 = arith.constant 5.000000e-01 : f32
    %225 = vector.broadcast %cst_75 : f32 to vector<8x128xf32>
    %226 = arith.mulf %225, %224 : vector<8x128xf32>
    %227 = vector.extract_strided_slice %218 {offsets = [0, 128], sizes = [8, 128], strides = [1, 1]} : vector<8x512xf32> to vector<8x128xf32>
    %cst_76 = arith.constant 5.000000e-01 : f32
    %228 = vector.broadcast %cst_76 : f32 to vector<8x128xf32>
    %229 = arith.mulf %228, %227 : vector<8x128xf32>
    %230 = math.tanh %229 : vector<8x128xf32>
    %cst_77 = arith.constant 1.000000e+00 : f32
    %231 = vector.broadcast %cst_77 : f32 to vector<8x128xf32>
    %232 = arith.addf %230, %231 : vector<8x128xf32>
    %cst_78 = arith.constant 5.000000e-01 : f32
    %233 = vector.broadcast %cst_78 : f32 to vector<8x128xf32>
    %234 = arith.mulf %233, %232 : vector<8x128xf32>
    %235 = vector.extract_strided_slice %218 {offsets = [0, 256], sizes = [8, 128], strides = [1, 1]} : vector<8x512xf32> to vector<8x128xf32>
    %236 = math.tanh %235 : vector<8x128xf32>
    %237 = vector.extract_strided_slice %218 {offsets = [0, 384], sizes = [8, 128], strides = [1, 1]} : vector<8x512xf32> to vector<8x128xf32>
    %cst_79 = arith.constant 5.000000e-01 : f32
    %238 = vector.broadcast %cst_79 : f32 to vector<8x128xf32>
    %239 = arith.mulf %238, %237 : vector<8x128xf32>
    %240 = math.tanh %239 : vector<8x128xf32>
    %cst_80 = arith.constant 1.000000e+00 : f32
    %241 = vector.broadcast %cst_80 : f32 to vector<8x128xf32>
    %242 = arith.addf %240, %241 : vector<8x128xf32>
    %cst_81 = arith.constant 5.000000e-01 : f32
    %243 = vector.broadcast %cst_81 : f32 to vector<8x128xf32>
    %244 = arith.mulf %243, %242 : vector<8x128xf32>
    %245 = arith.mulf %234, %179 : vector<8x128xf32>
    %246 = arith.mulf %226, %236 : vector<8x128xf32>
    %247 = arith.addf %245, %246 : vector<8x128xf32>
    %248 = math.tanh %247 : vector<8x128xf32>
    %249 = arith.mulf %244, %248 : vector<8x128xf32>
    %250 = tpu.concatenate %249, %215 in 1 : vector<8x128xf32>, vector<8x128xf32> -> vector<8x256xf32>
    %cst_82 = arith.constant dense<0.000000e+00> : vector<8x512xf32>
    %251 = tpu.matmul %250, %1, %cst_82 {dimension_numbers = #tpu.dot_dimension_numbers<[1], [0], [0], [1], [0, 0, 1, 1], [], []>} : vector<8x256xf32>, vector<256x512xf32>, vector<8x512xf32> -> vector<8x512xf32>
    %252 = arith.addf %251, %4 : vector<8x512xf32>
    %253 = vector.extract_strided_slice %252 {offsets = [0, 0], sizes = [8, 128], strides = [1, 1]} : vector<8x512xf32> to vector<8x128xf32>
    %cst_83 = arith.constant 5.000000e-01 : f32
    %254 = vector.broadcast %cst_83 : f32 to vector<8x128xf32>
    %255 = arith.mulf %254, %253 : vector<8x128xf32>
    %256 = math.tanh %255 : vector<8x128xf32>
    %cst_84 = arith.constant 1.000000e+00 : f32
    %257 = vector.broadcast %cst_84 : f32 to vector<8x128xf32>
    %258 = arith.addf %256, %257 : vector<8x128xf32>
    %cst_85 = arith.constant 5.000000e-01 : f32
    %259 = vector.broadcast %cst_85 : f32 to vector<8x128xf32>
    %260 = arith.mulf %259, %258 : vector<8x128xf32>
    %261 = vector.extract_strided_slice %252 {offsets = [0, 128], sizes = [8, 128], strides = [1, 1]} : vector<8x512xf32> to vector<8x128xf32>
    %cst_86 = arith.constant 5.000000e-01 : f32
    %262 = vector.broadcast %cst_86 : f32 to vector<8x128xf32>
    %263 = arith.mulf %262, %261 : vector<8x128xf32>
    %264 = math.tanh %263 : vector<8x128xf32>
    %cst_87 = arith.constant 1.000000e+00 : f32
    %265 = vector.broadcast %cst_87 : f32 to vector<8x128xf32>
    %266 = arith.addf %264, %265 : vector<8x128xf32>
    %cst_88 = arith.constant 5.000000e-01 : f32
    %267 = vector.broadcast %cst_88 : f32 to vector<8x128xf32>
    %268 = arith.mulf %267, %266 : vector<8x128xf32>
    %269 = vector.extract_strided_slice %252 {offsets = [0, 256], sizes = [8, 128], strides = [1, 1]} : vector<8x512xf32> to vector<8x128xf32>
    %270 = math.tanh %269 : vector<8x128xf32>
    %271 = vector.extract_strided_slice %252 {offsets = [0, 384], sizes = [8, 128], strides = [1, 1]} : vector<8x512xf32> to vector<8x128xf32>
    %cst_89 = arith.constant 5.000000e-01 : f32
    %272 = vector.broadcast %cst_89 : f32 to vector<8x128xf32>
    %273 = arith.mulf %272, %271 : vector<8x128xf32>
    %274 = math.tanh %273 : vector<8x128xf32>
    %cst_90 = arith.constant 1.000000e+00 : f32
    %275 = vector.broadcast %cst_90 : f32 to vector<8x128xf32>
    %276 = arith.addf %274, %275 : vector<8x128xf32>
    %cst_91 = arith.constant 5.000000e-01 : f32
    %277 = vector.broadcast %cst_91 : f32 to vector<8x128xf32>
    %278 = arith.mulf %277, %276 : vector<8x128xf32>
    %279 = arith.mulf %268, %213 : vector<8x128xf32>
    %280 = arith.mulf %260, %270 : vector<8x128xf32>
    %281 = arith.addf %279, %280 : vector<8x128xf32>
    %282 = math.tanh %281 : vector<8x128xf32>
    %283 = arith.mulf %278, %282 : vector<8x128xf32>
    %284 = vector.extract_strided_slice %10 {offsets = [32, 0], sizes = [8, 512], strides = [1, 1]} : vector<64x512xf32> to vector<8x512xf32>
    %cst_92 = arith.constant dense<0.000000e+00> : vector<8x512xf32>
    %285 = tpu.matmul %249, %0, %cst_92 {dimension_numbers = #tpu.dot_dimension_numbers<[1], [0], [0], [1], [0, 0, 1, 1], [], []>} : vector<8x128xf32>, vector<128x512xf32>, vector<8x512xf32> -> vector<8x512xf32>
    %286 = arith.addf %284, %285 : vector<8x512xf32>
    %287 = vector.extract_strided_slice %286 {offsets = [0, 0], sizes = [8, 128], strides = [1, 1]} : vector<8x512xf32> to vector<8x128xf32>
    %cst_93 = arith.constant 5.000000e-01 : f32
    %288 = vector.broadcast %cst_93 : f32 to vector<8x128xf32>
    %289 = arith.mulf %288, %287 : vector<8x128xf32>
    %290 = math.tanh %289 : vector<8x128xf32>
    %cst_94 = arith.constant 1.000000e+00 : f32
    %291 = vector.broadcast %cst_94 : f32 to vector<8x128xf32>
    %292 = arith.addf %290, %291 : vector<8x128xf32>
    %cst_95 = arith.constant 5.000000e-01 : f32
    %293 = vector.broadcast %cst_95 : f32 to vector<8x128xf32>
    %294 = arith.mulf %293, %292 : vector<8x128xf32>
    %295 = vector.extract_strided_slice %286 {offsets = [0, 128], sizes = [8, 128], strides = [1, 1]} : vector<8x512xf32> to vector<8x128xf32>
    %cst_96 = arith.constant 5.000000e-01 : f32
    %296 = vector.broadcast %cst_96 : f32 to vector<8x128xf32>
    %297 = arith.mulf %296, %295 : vector<8x128xf32>
    %298 = math.tanh %297 : vector<8x128xf32>
    %cst_97 = arith.constant 1.000000e+00 : f32
    %299 = vector.broadcast %cst_97 : f32 to vector<8x128xf32>
    %300 = arith.addf %298, %299 : vector<8x128xf32>
    %cst_98 = arith.constant 5.000000e-01 : f32
    %301 = vector.broadcast %cst_98 : f32 to vector<8x128xf32>
    %302 = arith.mulf %301, %300 : vector<8x128xf32>
    %303 = vector.extract_strided_slice %286 {offsets = [0, 256], sizes = [8, 128], strides = [1, 1]} : vector<8x512xf32> to vector<8x128xf32>
    %304 = math.tanh %303 : vector<8x128xf32>
    %305 = vector.extract_strided_slice %286 {offsets = [0, 384], sizes = [8, 128], strides = [1, 1]} : vector<8x512xf32> to vector<8x128xf32>
    %cst_99 = arith.constant 5.000000e-01 : f32
    %306 = vector.broadcast %cst_99 : f32 to vector<8x128xf32>
    %307 = arith.mulf %306, %305 : vector<8x128xf32>
    %308 = math.tanh %307 : vector<8x128xf32>
    %cst_100 = arith.constant 1.000000e+00 : f32
    %309 = vector.broadcast %cst_100 : f32 to vector<8x128xf32>
    %310 = arith.addf %308, %309 : vector<8x128xf32>
    %cst_101 = arith.constant 5.000000e-01 : f32
    %311 = vector.broadcast %cst_101 : f32 to vector<8x128xf32>
    %312 = arith.mulf %311, %310 : vector<8x128xf32>
    %313 = arith.mulf %302, %247 : vector<8x128xf32>
    %314 = arith.mulf %294, %304 : vector<8x128xf32>
    %315 = arith.addf %313, %314 : vector<8x128xf32>
    %316 = math.tanh %315 : vector<8x128xf32>
    %317 = arith.mulf %312, %316 : vector<8x128xf32>
    %318 = tpu.concatenate %317, %283 in 1 : vector<8x128xf32>, vector<8x128xf32> -> vector<8x256xf32>
    %cst_102 = arith.constant dense<0.000000e+00> : vector<8x512xf32>
    %319 = tpu.matmul %318, %1, %cst_102 {dimension_numbers = #tpu.dot_dimension_numbers<[1], [0], [0], [1], [0, 0, 1, 1], [], []>} : vector<8x256xf32>, vector<256x512xf32>, vector<8x512xf32> -> vector<8x512xf32>
    %320 = arith.addf %319, %4 : vector<8x512xf32>
    %321 = vector.extract_strided_slice %320 {offsets = [0, 0], sizes = [8, 128], strides = [1, 1]} : vector<8x512xf32> to vector<8x128xf32>
    %cst_103 = arith.constant 5.000000e-01 : f32
    %322 = vector.broadcast %cst_103 : f32 to vector<8x128xf32>
    %323 = arith.mulf %322, %321 : vector<8x128xf32>
    %324 = math.tanh %323 : vector<8x128xf32>
    %cst_104 = arith.constant 1.000000e+00 : f32
    %325 = vector.broadcast %cst_104 : f32 to vector<8x128xf32>
    %326 = arith.addf %324, %325 : vector<8x128xf32>
    %cst_105 = arith.constant 5.000000e-01 : f32
    %327 = vector.broadcast %cst_105 : f32 to vector<8x128xf32>
    %328 = arith.mulf %327, %326 : vector<8x128xf32>
    %329 = vector.extract_strided_slice %320 {offsets = [0, 128], sizes = [8, 128], strides = [1, 1]} : vector<8x512xf32> to vector<8x128xf32>
    %cst_106 = arith.constant 5.000000e-01 : f32
    %330 = vector.broadcast %cst_106 : f32 to vector<8x128xf32>
    %331 = arith.mulf %330, %329 : vector<8x128xf32>
    %332 = math.tanh %331 : vector<8x128xf32>
    %cst_107 = arith.constant 1.000000e+00 : f32
    %333 = vector.broadcast %cst_107 : f32 to vector<8x128xf32>
    %334 = arith.addf %332, %333 : vector<8x128xf32>
    %cst_108 = arith.constant 5.000000e-01 : f32
    %335 = vector.broadcast %cst_108 : f32 to vector<8x128xf32>
    %336 = arith.mulf %335, %334 : vector<8x128xf32>
    %337 = vector.extract_strided_slice %320 {offsets = [0, 256], sizes = [8, 128], strides = [1, 1]} : vector<8x512xf32> to vector<8x128xf32>
    %338 = math.tanh %337 : vector<8x128xf32>
    %339 = vector.extract_strided_slice %320 {offsets = [0, 384], sizes = [8, 128], strides = [1, 1]} : vector<8x512xf32> to vector<8x128xf32>
    %cst_109 = arith.constant 5.000000e-01 : f32
    %340 = vector.broadcast %cst_109 : f32 to vector<8x128xf32>
    %341 = arith.mulf %340, %339 : vector<8x128xf32>
    %342 = math.tanh %341 : vector<8x128xf32>
    %cst_110 = arith.constant 1.000000e+00 : f32
    %343 = vector.broadcast %cst_110 : f32 to vector<8x128xf32>
    %344 = arith.addf %342, %343 : vector<8x128xf32>
    %cst_111 = arith.constant 5.000000e-01 : f32
    %345 = vector.broadcast %cst_111 : f32 to vector<8x128xf32>
    %346 = arith.mulf %345, %344 : vector<8x128xf32>
    %347 = arith.mulf %336, %281 : vector<8x128xf32>
    %348 = arith.mulf %328, %338 : vector<8x128xf32>
    %349 = arith.addf %347, %348 : vector<8x128xf32>
    %350 = math.tanh %349 : vector<8x128xf32>
    %351 = arith.mulf %346, %350 : vector<8x128xf32>
    %352 = vector.extract_strided_slice %10 {offsets = [40, 0], sizes = [8, 512], strides = [1, 1]} : vector<64x512xf32> to vector<8x512xf32>
    %cst_112 = arith.constant dense<0.000000e+00> : vector<8x512xf32>
    %353 = tpu.matmul %317, %0, %cst_112 {dimension_numbers = #tpu.dot_dimension_numbers<[1], [0], [0], [1], [0, 0, 1, 1], [], []>} : vector<8x128xf32>, vector<128x512xf32>, vector<8x512xf32> -> vector<8x512xf32>
    %354 = arith.addf %352, %353 : vector<8x512xf32>
    %355 = vector.extract_strided_slice %354 {offsets = [0, 0], sizes = [8, 128], strides = [1, 1]} : vector<8x512xf32> to vector<8x128xf32>
    %cst_113 = arith.constant 5.000000e-01 : f32
    %356 = vector.broadcast %cst_113 : f32 to vector<8x128xf32>
    %357 = arith.mulf %356, %355 : vector<8x128xf32>
    %358 = math.tanh %357 : vector<8x128xf32>
    %cst_114 = arith.constant 1.000000e+00 : f32
    %359 = vector.broadcast %cst_114 : f32 to vector<8x128xf32>
    %360 = arith.addf %358, %359 : vector<8x128xf32>
    %cst_115 = arith.constant 5.000000e-01 : f32
    %361 = vector.broadcast %cst_115 : f32 to vector<8x128xf32>
    %362 = arith.mulf %361, %360 : vector<8x128xf32>
    %363 = vector.extract_strided_slice %354 {offsets = [0, 128], sizes = [8, 128], strides = [1, 1]} : vector<8x512xf32> to vector<8x128xf32>
    %cst_116 = arith.constant 5.000000e-01 : f32
    %364 = vector.broadcast %cst_116 : f32 to vector<8x128xf32>
    %365 = arith.mulf %364, %363 : vector<8x128xf32>
    %366 = math.tanh %365 : vector<8x128xf32>
    %cst_117 = arith.constant 1.000000e+00 : f32
    %367 = vector.broadcast %cst_117 : f32 to vector<8x128xf32>
    %368 = arith.addf %366, %367 : vector<8x128xf32>
    %cst_118 = arith.constant 5.000000e-01 : f32
    %369 = vector.broadcast %cst_118 : f32 to vector<8x128xf32>
    %370 = arith.mulf %369, %368 : vector<8x128xf32>
    %371 = vector.extract_strided_slice %354 {offsets = [0, 256], sizes = [8, 128], strides = [1, 1]} : vector<8x512xf32> to vector<8x128xf32>
    %372 = math.tanh %371 : vector<8x128xf32>
    %373 = vector.extract_strided_slice %354 {offsets = [0, 384], sizes = [8, 128], strides = [1, 1]} : vector<8x512xf32> to vector<8x128xf32>
    %cst_119 = arith.constant 5.000000e-01 : f32
    %374 = vector.broadcast %cst_119 : f32 to vector<8x128xf32>
    %375 = arith.mulf %374, %373 : vector<8x128xf32>
    %376 = math.tanh %375 : vector<8x128xf32>
    %cst_120 = arith.constant 1.000000e+00 : f32
    %377 = vector.broadcast %cst_120 : f32 to vector<8x128xf32>
    %378 = arith.addf %376, %377 : vector<8x128xf32>
    %cst_121 = arith.constant 5.000000e-01 : f32
    %379 = vector.broadcast %cst_121 : f32 to vector<8x128xf32>
    %380 = arith.mulf %379, %378 : vector<8x128xf32>
    %381 = arith.mulf %370, %315 : vector<8x128xf32>
    %382 = arith.mulf %362, %372 : vector<8x128xf32>
    %383 = arith.addf %381, %382 : vector<8x128xf32>
    %384 = math.tanh %383 : vector<8x128xf32>
    %385 = arith.mulf %380, %384 : vector<8x128xf32>
    %386 = tpu.concatenate %385, %351 in 1 : vector<8x128xf32>, vector<8x128xf32> -> vector<8x256xf32>
    %cst_122 = arith.constant dense<0.000000e+00> : vector<8x512xf32>
    %387 = tpu.matmul %386, %1, %cst_122 {dimension_numbers = #tpu.dot_dimension_numbers<[1], [0], [0], [1], [0, 0, 1, 1], [], []>} : vector<8x256xf32>, vector<256x512xf32>, vector<8x512xf32> -> vector<8x512xf32>
    %388 = arith.addf %387, %4 : vector<8x512xf32>
    %389 = vector.extract_strided_slice %388 {offsets = [0, 0], sizes = [8, 128], strides = [1, 1]} : vector<8x512xf32> to vector<8x128xf32>
    %cst_123 = arith.constant 5.000000e-01 : f32
    %390 = vector.broadcast %cst_123 : f32 to vector<8x128xf32>
    %391 = arith.mulf %390, %389 : vector<8x128xf32>
    %392 = math.tanh %391 : vector<8x128xf32>
    %cst_124 = arith.constant 1.000000e+00 : f32
    %393 = vector.broadcast %cst_124 : f32 to vector<8x128xf32>
    %394 = arith.addf %392, %393 : vector<8x128xf32>
    %cst_125 = arith.constant 5.000000e-01 : f32
    %395 = vector.broadcast %cst_125 : f32 to vector<8x128xf32>
    %396 = arith.mulf %395, %394 : vector<8x128xf32>
    %397 = vector.extract_strided_slice %388 {offsets = [0, 128], sizes = [8, 128], strides = [1, 1]} : vector<8x512xf32> to vector<8x128xf32>
    %cst_126 = arith.constant 5.000000e-01 : f32
    %398 = vector.broadcast %cst_126 : f32 to vector<8x128xf32>
    %399 = arith.mulf %398, %397 : vector<8x128xf32>
    %400 = math.tanh %399 : vector<8x128xf32>
    %cst_127 = arith.constant 1.000000e+00 : f32
    %401 = vector.broadcast %cst_127 : f32 to vector<8x128xf32>
    %402 = arith.addf %400, %401 : vector<8x128xf32>
    %cst_128 = arith.constant 5.000000e-01 : f32
    %403 = vector.broadcast %cst_128 : f32 to vector<8x128xf32>
    %404 = arith.mulf %403, %402 : vector<8x128xf32>
    %405 = vector.extract_strided_slice %388 {offsets = [0, 256], sizes = [8, 128], strides = [1, 1]} : vector<8x512xf32> to vector<8x128xf32>
    %406 = math.tanh %405 : vector<8x128xf32>
    %407 = vector.extract_strided_slice %388 {offsets = [0, 384], sizes = [8, 128], strides = [1, 1]} : vector<8x512xf32> to vector<8x128xf32>
    %cst_129 = arith.constant 5.000000e-01 : f32
    %408 = vector.broadcast %cst_129 : f32 to vector<8x128xf32>
    %409 = arith.mulf %408, %407 : vector<8x128xf32>
    %410 = math.tanh %409 : vector<8x128xf32>
    %cst_130 = arith.constant 1.000000e+00 : f32
    %411 = vector.broadcast %cst_130 : f32 to vector<8x128xf32>
    %412 = arith.addf %410, %411 : vector<8x128xf32>
    %cst_131 = arith.constant 5.000000e-01 : f32
    %413 = vector.broadcast %cst_131 : f32 to vector<8x128xf32>
    %414 = arith.mulf %413, %412 : vector<8x128xf32>
    %415 = arith.mulf %404, %349 : vector<8x128xf32>
    %416 = arith.mulf %396, %406 : vector<8x128xf32>
    %417 = arith.addf %415, %416 : vector<8x128xf32>
    %418 = math.tanh %417 : vector<8x128xf32>
    %419 = arith.mulf %414, %418 : vector<8x128xf32>
    %420 = vector.extract_strided_slice %10 {offsets = [48, 0], sizes = [8, 512], strides = [1, 1]} : vector<64x512xf32> to vector<8x512xf32>
    %cst_132 = arith.constant dense<0.000000e+00> : vector<8x512xf32>
    %421 = tpu.matmul %385, %0, %cst_132 {dimension_numbers = #tpu.dot_dimension_numbers<[1], [0], [0], [1], [0, 0, 1, 1], [], []>} : vector<8x128xf32>, vector<128x512xf32>, vector<8x512xf32> -> vector<8x512xf32>
    %422 = arith.addf %420, %421 : vector<8x512xf32>
    %423 = vector.extract_strided_slice %422 {offsets = [0, 0], sizes = [8, 128], strides = [1, 1]} : vector<8x512xf32> to vector<8x128xf32>
    %cst_133 = arith.constant 5.000000e-01 : f32
    %424 = vector.broadcast %cst_133 : f32 to vector<8x128xf32>
    %425 = arith.mulf %424, %423 : vector<8x128xf32>
    %426 = math.tanh %425 : vector<8x128xf32>
    %cst_134 = arith.constant 1.000000e+00 : f32
    %427 = vector.broadcast %cst_134 : f32 to vector<8x128xf32>
    %428 = arith.addf %426, %427 : vector<8x128xf32>
    %cst_135 = arith.constant 5.000000e-01 : f32
    %429 = vector.broadcast %cst_135 : f32 to vector<8x128xf32>
    %430 = arith.mulf %429, %428 : vector<8x128xf32>
    %431 = vector.extract_strided_slice %422 {offsets = [0, 128], sizes = [8, 128], strides = [1, 1]} : vector<8x512xf32> to vector<8x128xf32>
    %cst_136 = arith.constant 5.000000e-01 : f32
    %432 = vector.broadcast %cst_136 : f32 to vector<8x128xf32>
    %433 = arith.mulf %432, %431 : vector<8x128xf32>
    %434 = math.tanh %433 : vector<8x128xf32>
    %cst_137 = arith.constant 1.000000e+00 : f32
    %435 = vector.broadcast %cst_137 : f32 to vector<8x128xf32>
    %436 = arith.addf %434, %435 : vector<8x128xf32>
    %cst_138 = arith.constant 5.000000e-01 : f32
    %437 = vector.broadcast %cst_138 : f32 to vector<8x128xf32>
    %438 = arith.mulf %437, %436 : vector<8x128xf32>
    %439 = vector.extract_strided_slice %422 {offsets = [0, 256], sizes = [8, 128], strides = [1, 1]} : vector<8x512xf32> to vector<8x128xf32>
    %440 = math.tanh %439 : vector<8x128xf32>
    %441 = vector.extract_strided_slice %422 {offsets = [0, 384], sizes = [8, 128], strides = [1, 1]} : vector<8x512xf32> to vector<8x128xf32>
    %cst_139 = arith.constant 5.000000e-01 : f32
    %442 = vector.broadcast %cst_139 : f32 to vector<8x128xf32>
    %443 = arith.mulf %442, %441 : vector<8x128xf32>
    %444 = math.tanh %443 : vector<8x128xf32>
    %cst_140 = arith.constant 1.000000e+00 : f32
    %445 = vector.broadcast %cst_140 : f32 to vector<8x128xf32>
    %446 = arith.addf %444, %445 : vector<8x128xf32>
    %cst_141 = arith.constant 5.000000e-01 : f32
    %447 = vector.broadcast %cst_141 : f32 to vector<8x128xf32>
    %448 = arith.mulf %447, %446 : vector<8x128xf32>
    %449 = arith.mulf %438, %383 : vector<8x128xf32>
    %450 = arith.mulf %430, %440 : vector<8x128xf32>
    %451 = arith.addf %449, %450 : vector<8x128xf32>
    %452 = math.tanh %451 : vector<8x128xf32>
    %453 = arith.mulf %448, %452 : vector<8x128xf32>
    %454 = tpu.concatenate %453, %419 in 1 : vector<8x128xf32>, vector<8x128xf32> -> vector<8x256xf32>
    %cst_142 = arith.constant dense<0.000000e+00> : vector<8x512xf32>
    %455 = tpu.matmul %454, %1, %cst_142 {dimension_numbers = #tpu.dot_dimension_numbers<[1], [0], [0], [1], [0, 0, 1, 1], [], []>} : vector<8x256xf32>, vector<256x512xf32>, vector<8x512xf32> -> vector<8x512xf32>
    %456 = arith.addf %455, %4 : vector<8x512xf32>
    %457 = vector.extract_strided_slice %456 {offsets = [0, 0], sizes = [8, 128], strides = [1, 1]} : vector<8x512xf32> to vector<8x128xf32>
    %cst_143 = arith.constant 5.000000e-01 : f32
    %458 = vector.broadcast %cst_143 : f32 to vector<8x128xf32>
    %459 = arith.mulf %458, %457 : vector<8x128xf32>
    %460 = math.tanh %459 : vector<8x128xf32>
    %cst_144 = arith.constant 1.000000e+00 : f32
    %461 = vector.broadcast %cst_144 : f32 to vector<8x128xf32>
    %462 = arith.addf %460, %461 : vector<8x128xf32>
    %cst_145 = arith.constant 5.000000e-01 : f32
    %463 = vector.broadcast %cst_145 : f32 to vector<8x128xf32>
    %464 = arith.mulf %463, %462 : vector<8x128xf32>
    %465 = vector.extract_strided_slice %456 {offsets = [0, 128], sizes = [8, 128], strides = [1, 1]} : vector<8x512xf32> to vector<8x128xf32>
    %cst_146 = arith.constant 5.000000e-01 : f32
    %466 = vector.broadcast %cst_146 : f32 to vector<8x128xf32>
    %467 = arith.mulf %466, %465 : vector<8x128xf32>
    %468 = math.tanh %467 : vector<8x128xf32>
    %cst_147 = arith.constant 1.000000e+00 : f32
    %469 = vector.broadcast %cst_147 : f32 to vector<8x128xf32>
    %470 = arith.addf %468, %469 : vector<8x128xf32>
    %cst_148 = arith.constant 5.000000e-01 : f32
    %471 = vector.broadcast %cst_148 : f32 to vector<8x128xf32>
    %472 = arith.mulf %471, %470 : vector<8x128xf32>
    %473 = vector.extract_strided_slice %456 {offsets = [0, 256], sizes = [8, 128], strides = [1, 1]} : vector<8x512xf32> to vector<8x128xf32>
    %474 = math.tanh %473 : vector<8x128xf32>
    %475 = vector.extract_strided_slice %456 {offsets = [0, 384], sizes = [8, 128], strides = [1, 1]} : vector<8x512xf32> to vector<8x128xf32>
    %cst_149 = arith.constant 5.000000e-01 : f32
    %476 = vector.broadcast %cst_149 : f32 to vector<8x128xf32>
    %477 = arith.mulf %476, %475 : vector<8x128xf32>
    %478 = math.tanh %477 : vector<8x128xf32>
    %cst_150 = arith.constant 1.000000e+00 : f32
    %479 = vector.broadcast %cst_150 : f32 to vector<8x128xf32>
    %480 = arith.addf %478, %479 : vector<8x128xf32>
    %cst_151 = arith.constant 5.000000e-01 : f32
    %481 = vector.broadcast %cst_151 : f32 to vector<8x128xf32>
    %482 = arith.mulf %481, %480 : vector<8x128xf32>
    %483 = arith.mulf %472, %417 : vector<8x128xf32>
    %484 = arith.mulf %464, %474 : vector<8x128xf32>
    %485 = arith.addf %483, %484 : vector<8x128xf32>
    %486 = math.tanh %485 : vector<8x128xf32>
    %487 = arith.mulf %482, %486 : vector<8x128xf32>
    %488 = vector.extract_strided_slice %10 {offsets = [56, 0], sizes = [8, 512], strides = [1, 1]} : vector<64x512xf32> to vector<8x512xf32>
    %cst_152 = arith.constant dense<0.000000e+00> : vector<8x512xf32>
    %489 = tpu.matmul %453, %0, %cst_152 {dimension_numbers = #tpu.dot_dimension_numbers<[1], [0], [0], [1], [0, 0, 1, 1], [], []>} : vector<8x128xf32>, vector<128x512xf32>, vector<8x512xf32> -> vector<8x512xf32>
    %490 = arith.addf %488, %489 : vector<8x512xf32>
    %491 = vector.extract_strided_slice %490 {offsets = [0, 0], sizes = [8, 128], strides = [1, 1]} : vector<8x512xf32> to vector<8x128xf32>
    %cst_153 = arith.constant 5.000000e-01 : f32
    %492 = vector.broadcast %cst_153 : f32 to vector<8x128xf32>
    %493 = arith.mulf %492, %491 : vector<8x128xf32>
    %494 = math.tanh %493 : vector<8x128xf32>
    %cst_154 = arith.constant 1.000000e+00 : f32
    %495 = vector.broadcast %cst_154 : f32 to vector<8x128xf32>
    %496 = arith.addf %494, %495 : vector<8x128xf32>
    %cst_155 = arith.constant 5.000000e-01 : f32
    %497 = vector.broadcast %cst_155 : f32 to vector<8x128xf32>
    %498 = arith.mulf %497, %496 : vector<8x128xf32>
    %499 = vector.extract_strided_slice %490 {offsets = [0, 128], sizes = [8, 128], strides = [1, 1]} : vector<8x512xf32> to vector<8x128xf32>
    %cst_156 = arith.constant 5.000000e-01 : f32
    %500 = vector.broadcast %cst_156 : f32 to vector<8x128xf32>
    %501 = arith.mulf %500, %499 : vector<8x128xf32>
    %502 = math.tanh %501 : vector<8x128xf32>
    %cst_157 = arith.constant 1.000000e+00 : f32
    %503 = vector.broadcast %cst_157 : f32 to vector<8x128xf32>
    %504 = arith.addf %502, %503 : vector<8x128xf32>
    %cst_158 = arith.constant 5.000000e-01 : f32
    %505 = vector.broadcast %cst_158 : f32 to vector<8x128xf32>
    %506 = arith.mulf %505, %504 : vector<8x128xf32>
    %507 = vector.extract_strided_slice %490 {offsets = [0, 256], sizes = [8, 128], strides = [1, 1]} : vector<8x512xf32> to vector<8x128xf32>
    %508 = math.tanh %507 : vector<8x128xf32>
    %509 = vector.extract_strided_slice %490 {offsets = [0, 384], sizes = [8, 128], strides = [1, 1]} : vector<8x512xf32> to vector<8x128xf32>
    %cst_159 = arith.constant 5.000000e-01 : f32
    %510 = vector.broadcast %cst_159 : f32 to vector<8x128xf32>
    %511 = arith.mulf %510, %509 : vector<8x128xf32>
    %512 = math.tanh %511 : vector<8x128xf32>
    %cst_160 = arith.constant 1.000000e+00 : f32
    %513 = vector.broadcast %cst_160 : f32 to vector<8x128xf32>
    %514 = arith.addf %512, %513 : vector<8x128xf32>
    %cst_161 = arith.constant 5.000000e-01 : f32
    %515 = vector.broadcast %cst_161 : f32 to vector<8x128xf32>
    %516 = arith.mulf %515, %514 : vector<8x128xf32>
    %517 = arith.mulf %506, %451 : vector<8x128xf32>
    %518 = arith.mulf %498, %508 : vector<8x128xf32>
    %519 = arith.addf %517, %518 : vector<8x128xf32>
    %520 = math.tanh %519 : vector<8x128xf32>
    %521 = arith.mulf %516, %520 : vector<8x128xf32>
    %522 = tpu.concatenate %521, %487 in 1 : vector<8x128xf32>, vector<8x128xf32> -> vector<8x256xf32>
    %cst_162 = arith.constant dense<0.000000e+00> : vector<8x512xf32>
    %523 = tpu.matmul %522, %1, %cst_162 {dimension_numbers = #tpu.dot_dimension_numbers<[1], [0], [0], [1], [0, 0, 1, 1], [], []>} : vector<8x256xf32>, vector<256x512xf32>, vector<8x512xf32> -> vector<8x512xf32>
    %524 = arith.addf %523, %4 : vector<8x512xf32>
    %525 = vector.extract_strided_slice %524 {offsets = [0, 0], sizes = [8, 128], strides = [1, 1]} : vector<8x512xf32> to vector<8x128xf32>
    %cst_163 = arith.constant 5.000000e-01 : f32
    %526 = vector.broadcast %cst_163 : f32 to vector<8x128xf32>
    %527 = arith.mulf %526, %525 : vector<8x128xf32>
    %528 = math.tanh %527 : vector<8x128xf32>
    %cst_164 = arith.constant 1.000000e+00 : f32
    %529 = vector.broadcast %cst_164 : f32 to vector<8x128xf32>
    %530 = arith.addf %528, %529 : vector<8x128xf32>
    %cst_165 = arith.constant 5.000000e-01 : f32
    %531 = vector.broadcast %cst_165 : f32 to vector<8x128xf32>
    %532 = arith.mulf %531, %530 : vector<8x128xf32>
    %533 = vector.extract_strided_slice %524 {offsets = [0, 128], sizes = [8, 128], strides = [1, 1]} : vector<8x512xf32> to vector<8x128xf32>
    %cst_166 = arith.constant 5.000000e-01 : f32
    %534 = vector.broadcast %cst_166 : f32 to vector<8x128xf32>
    %535 = arith.mulf %534, %533 : vector<8x128xf32>
    %536 = math.tanh %535 : vector<8x128xf32>
    %cst_167 = arith.constant 1.000000e+00 : f32
    %537 = vector.broadcast %cst_167 : f32 to vector<8x128xf32>
    %538 = arith.addf %536, %537 : vector<8x128xf32>
    %cst_168 = arith.constant 5.000000e-01 : f32
    %539 = vector.broadcast %cst_168 : f32 to vector<8x128xf32>
    %540 = arith.mulf %539, %538 : vector<8x128xf32>
    %541 = vector.extract_strided_slice %524 {offsets = [0, 256], sizes = [8, 128], strides = [1, 1]} : vector<8x512xf32> to vector<8x128xf32>
    %542 = math.tanh %541 : vector<8x128xf32>
    %543 = vector.extract_strided_slice %524 {offsets = [0, 384], sizes = [8, 128], strides = [1, 1]} : vector<8x512xf32> to vector<8x128xf32>
    %cst_169 = arith.constant 5.000000e-01 : f32
    %544 = vector.broadcast %cst_169 : f32 to vector<8x128xf32>
    %545 = arith.mulf %544, %543 : vector<8x128xf32>
    %546 = math.tanh %545 : vector<8x128xf32>
    %cst_170 = arith.constant 1.000000e+00 : f32
    %547 = vector.broadcast %cst_170 : f32 to vector<8x128xf32>
    %548 = arith.addf %546, %547 : vector<8x128xf32>
    %cst_171 = arith.constant 5.000000e-01 : f32
    %549 = vector.broadcast %cst_171 : f32 to vector<8x128xf32>
    %550 = arith.mulf %549, %548 : vector<8x128xf32>
    %551 = arith.mulf %540, %485 : vector<8x128xf32>
    %552 = arith.mulf %532, %542 : vector<8x128xf32>
    %553 = arith.addf %551, %552 : vector<8x128xf32>
    %554 = math.tanh %553 : vector<8x128xf32>
    %555 = arith.mulf %550, %554 : vector<8x128xf32>
    %556 = tpu.concatenate %79, %147, %215, %283, %351, %419, %487, %555 in 0 : vector<8x128xf32>, vector<8x128xf32>, vector<8x128xf32>, vector<8x128xf32>, vector<8x128xf32>, vector<8x128xf32>, vector<8x128xf32>, vector<8x128xf32> -> vector<64x128xf32>
    %c0_172 = arith.constant 0 : index
    %c0_173 = arith.constant 0 : index
    %557 = vector.load %arg7[%c0_172, %c0_173] : memref<128x128xf32, #tpu.memory_space<vmem>>, vector<128x128xf32>
    %cst_174 = arith.constant dense<0.000000e+00> : vector<64x128xf32>
    %558 = tpu.matmul %556, %557, %cst_174 {dimension_numbers = #tpu.dot_dimension_numbers<[1], [0], [0], [1], [0, 0, 1, 1], [], []>} : vector<64x128xf32>, vector<128x128xf32>, vector<64x128xf32> -> vector<64x128xf32>
    %c0_175 = arith.constant 0 : index
    %c0_176 = arith.constant 0 : index
    %559 = vector.load %arg8[%c0_175, %c0_176] : memref<1x128xf32, #tpu.memory_space<vmem>>, vector<1x128xf32>
    %560 = vector.broadcast %559 : vector<1x128xf32> to vector<64x128xf32>
    %561 = arith.addf %558, %560 : vector<64x128xf32>
    %c0_177 = arith.constant 0 : index
    %c0_178 = arith.constant 0 : index
    %562 = vector.load %arg9[%c0_177, %c0_178] : memref<64x128xf32, #tpu.memory_space<vmem>>, vector<64x128xf32>
    tpu.vector_store %arg9[%c0_177, %c0_178], %561 {strides = array<i32>} : memref<64x128xf32, #tpu.memory_space<vmem>>, vector<64x128xf32>,
    return
  }
  func.func @transform_0(%arg0: i32) -> (i32, i32) {
    %c0_i32 = arith.constant 0 : i32
    %c0_i32_0 = arith.constant 0 : i32
    %c0_i32_1 = arith.constant 0 : i32
    return %c0_i32, %c0_i32_0 : i32, i32
  }
  func.func @transform_1(%arg0: i32) -> (i32, i32) {
    %c0_i32 = arith.constant 0 : i32
    %c0_i32_0 = arith.constant 0 : i32
    %c0_i32_1 = arith.constant 0 : i32
    return %c0_i32, %c0_i32_0 : i32, i32
  }
  func.func @transform_2(%arg0: i32) -> (i32, i32) {
    %c0_i32 = arith.constant 0 : i32
    %c0_i32_0 = arith.constant 0 : i32
    %c0_i32_1 = arith.constant 0 : i32
    return %c0_i32, %c0_i32_0 : i32, i32
  }
  func.func @transform_3(%arg0: i32) -> (i32, i32) {
    %c0_i32 = arith.constant 0 : i32
    %c0_i32_0 = arith.constant 0 : i32
    %c0_i32_1 = arith.constant 0 : i32
    return %c0_i32, %c0_i32_0 : i32, i32
  }
  func.func @transform_4(%arg0: i32) -> (i32, i32) {
    %c0_i32 = arith.constant 0 : i32
    %c0_i32_0 = arith.constant 0 : i32
    %c0_i32_1 = arith.constant 0 : i32
    return %c0_i32, %c0_i32_0 : i32, i32
  }
  func.func @transform_5(%arg0: i32) -> (i32, i32) {
    %c0_i32 = arith.constant 0 : i32
    %c0_i32_0 = arith.constant 0 : i32
    %c0_i32_1 = arith.constant 0 : i32
    return %c0_i32, %c0_i32_0 : i32, i32
  }
  func.func @transform_6(%arg0: i32) -> (i32, i32) {
    %c0_i32 = arith.constant 0 : i32
    %c0_i32_0 = arith.constant 0 : i32
    %c0_i32_1 = arith.constant 0 : i32
    return %c0_i32, %c0_i32_0 : i32, i32
  }
  func.func @transform_7(%arg0: i32) -> (i32, i32) {
    %c0_i32 = arith.constant 0 : i32
    %c0_i32_0 = arith.constant 0 : i32
    %c0_i32_1 = arith.constant 0 : i32
    return %c0_i32, %c0_i32_0 : i32, i32
  }
  func.func @transform_8(%arg0: i32) -> (i32, i32) {
    %c0_i32 = arith.constant 0 : i32
    %c0_i32_0 = arith.constant 0 : i32
    %c0_i32_1 = arith.constant 0 : i32
    return %c0_i32, %c0_i32_0 : i32, i32
  }
}

</mosaic_0001>

<llo_original>
// kernel: lstm_reg_forward.1
$region0: #{lstm_reg_forward.1}
  #allocation0 [shape = 'u32[]', space=smem, size = 0x4, offset = 0x4, fixed_abs, tag = 'smem constant byte address 0x4 - core index']
  #allocation1 [shape = 'u32[144,128]{1,0:T(1,128)}', space=vmem, size = 0x12000, scoped, tag = 'internal scratch']
  %s0 = inlined_call_operand.vmem [shape: f32[64,64], index: 0, kind: input, shape index: {}]
  %s1 = inlined_call_operand.hbm [shape: f32[64,512], index: 1, kind: input, shape index: {}]
  %s2 = inlined_call_operand.hbm [shape: f32[128,512], index: 2, kind: input, shape index: {}]
  %s3 = inlined_call_operand.vmem [shape: f32[1,512], index: 3, kind: input, shape index: {}]
  %s4 = inlined_call_operand.hbm [shape: f32[256,512], index: 4, kind: input, shape index: {}]
  %s5 = inlined_call_operand.vmem [shape: f32[1,512], index: 5, kind: input, shape index: {}]
  %s6 = inlined_call_operand.hbm [shape: f32[128,128], index: 6, kind: input, shape index: {}]
  %s7 = inlined_call_operand.vmem [shape: f32[1,128], index: 7, kind: input, shape index: {}]
  %s8 = inlined_call_operand.vmem [shape: f32[64,128], index: 8, kind: output, shape index: {}]
  %s9 = sld [smem:[#allocation0]]
  $region58: #{lstm_reg_forward.1} parent=0
    _
  %s11 = ssub.s32 1, %s9
  %s12 = scalar_select 0, %s11, %s9
  $region1: #{lstm_reg_forward.1} parent=0
    #allocation2 [shape = 'u8[131072]{0}', space=vmem, size = 0x20000, scoped, tag = 'input window, operand 1, single buffered']
    #allocation3 [shape = 's32[1]{0}', space=sflag, size = 0x4, scoped, tag = 'scoped memory for lstm_reg_forward.1']
    #allocation4 [shape = 'u8[262144]{0}', space=vmem, size = 0x40000, scoped, tag = 'input window, operand 2, single buffered']
    #allocation5 [shape = 's32[1]{0}', space=sflag, size = 0x4, scoped, tag = 'scoped memory for lstm_reg_forward.1']
    #allocation6 [shape = 'u8[524288]{0}', space=vmem, size = 0x80000, scoped, tag = 'input window, operand 4, single buffered']
    #allocation7 [shape = 'u8[65536]{0}', space=vmem, size = 0x10000, scoped, tag = 'input window, operand 6, single buffered']
    #allocation8 [shape = 's32[1]{0}', space=sflag, size = 0x4, scoped, tag = 'scoped memory for lstm_reg_forward.1']
    %13 = vsyncpa [#allocation3], 0
    %14 = vsyncpa [#allocation5], 0
    %15 = vsyncpa [#allocation8], 0
    // Predicated region
    $region2: #{lstm_reg_forward.1} parent=1 // pred_check
      _
    $region3: #{lstm_reg_forward.1} parent=1 // pred_check_branch
      %17 = sbr.rel (0) target = $region5
    $region4: #{lstm_reg_forward.1} parent=1 // pred_region
      _
    $region5: #{lstm_reg_forward.1} parent=1 // pred_fallthru
      _
    // Predicated region
    $region6: #{lstm_reg_forward.1} parent=1 // pred_check
      _
    $region7: #{lstm_reg_forward.1} parent=1 // pred_check_branch
      %19 = sbr.rel (0) target = $region9
    $region8: #{lstm_reg_forward.1} parent=1 // pred_region
      %s21 = ssub.s32 4096, 4096
      %22 = vsyncadd [#allocation3], %s21
      %s23 = sshll.u32 [#allocation2], 4
      %s24 = int_to_ptr.vmem [resolvable:$true] %s23
      %29 = dma.hbm_to_vmem [thread:$0]  %s1, 4096, %s24, [#allocation3], 512, 512, 32
    $region9: #{lstm_reg_forward.1} parent=1 // pred_fallthru
      _
    // Predicated region
    $region10: #{lstm_reg_forward.1} parent=1 // pred_check
      _
    $region11: #{lstm_reg_forward.1} parent=1 // pred_check_branch
      %31 = sbr.rel (0) target = $region13
    $region12: #{lstm_reg_forward.1} parent=1 // pred_region
      %s33 = ssub.s32 8192, 8192
      %34 = vsyncadd [#allocation5], %s33
      %s35 = sshll.u32 [#allocation4], 4
      %s36 = int_to_ptr.vmem [resolvable:$true] %s35
      %41 = dma.hbm_to_vmem [thread:$0]  %s2, 8192, %s36, [#allocation5], 512, 512, 32
    $region13: #{lstm_reg_forward.1} parent=1 // pred_fallthru
      _
    // Predicated region
    $region14: #{lstm_reg_forward.1} parent=1 // pred_check
      _
    $region15: #{lstm_reg_forward.1} parent=1 // pred_check_branch
      %43 = sbr.rel (0) target = $region17
    $region16: #{lstm_reg_forward.1} parent=1 // pred_region
      _
    $region17: #{lstm_reg_forward.1} parent=1 // pred_fallthru
      _
    // Predicated region
    $region18: #{lstm_reg_forward.1} parent=1 // pred_check
      _
    $region19: #{lstm_reg_forward.1} parent=1 // pred_check_branch
      %45 = sbr.rel (0) target = $region21
    $region20: #{lstm_reg_forward.1} parent=1 // pred_region
      %s47 = ssub.s32 16384, 16384
      %48 = vsyncadd [#allocation5], %s47
      %s49 = sshll.u32 [#allocation6], 4
      %s50 = int_to_ptr.vmem [resolvable:$true] %s49
      %55 = dma.hbm_to_vmem [thread:$0]  %s4, 16384, %s50, [#allocation5], 512, 512, 32
    $region21: #{lstm_reg_forward.1} parent=1 // pred_fallthru
      _
    // Predicated region
    $region22: #{lstm_reg_forward.1} parent=1 // pred_check
      _
    $region23: #{lstm_reg_forward.1} parent=1 // pred_check_branch
      %57 = sbr.rel (0) target = $region25
    $region24: #{lstm_reg_forward.1} parent=1 // pred_region
      _
    $region25: #{lstm_reg_forward.1} parent=1 // pred_fallthru
      _
    // Predicated region
    $region26: #{lstm_reg_forward.1} parent=1 // pred_check
      _
    $region27: #{lstm_reg_forward.1} parent=1 // pred_check_branch
      %59 = sbr.rel (0) target = $region29
    $region28: #{lstm_reg_forward.1} parent=1 // pred_region
      %s61 = ssub.s32 2048, 2048
      %62 = vsyncadd [#allocation8], %s61
      %s63 = sshll.u32 [#allocation7], 4
      %s64 = int_to_ptr.vmem [resolvable:$true] %s63
      %69 = dma.hbm_to_vmem [thread:$0]  %s6, 2048, %s64, [#allocation8], 128, 128, 8
    $region29: #{lstm_reg_forward.1} parent=1 // pred_fallthru
      _
    // Predicated region
    $region30: #{lstm_reg_forward.1} parent=1 // pred_check
      _
    $region31: #{lstm_reg_forward.1} parent=1 // pred_check_branch
      %71 = sbr.rel (0) target = $region33
    $region32: #{lstm_reg_forward.1} parent=1 // pred_region
      _
    $region33: #{lstm_reg_forward.1} parent=1 // pred_fallthru
      _
    // Predicated region
    $region34: #{lstm_reg_forward.1} parent=1 // pred_check
      _
    $region35: #{lstm_reg_forward.1} parent=1 // pred_check_branch
      %73 = sbr.rel (0) target = $region37
    $region36: #{lstm_reg_forward.1} parent=1 // pred_region
      %74 = dma.done [#allocation3], 4096
    $region37: #{lstm_reg_forward.1} parent=1 // pred_fallthru
      _
    // Predicated region
    $region38: #{lstm_reg_forward.1} parent=1 // pred_check
      _
    $region39: #{lstm_reg_forward.1} parent=1 // pred_check_branch
      %76 = sbr.rel (0) target = $region41
    $region40: #{lstm_reg_forward.1} parent=1 // pred_region
      %77 = dma.done [#allocation5], 8192
    $region41: #{lstm_reg_forward.1} parent=1 // pred_fallthru
      _
    // Predicated region
    $region42: #{lstm_reg_forward.1} parent=1 // pred_check
      _
    $region43: #{lstm_reg_forward.1} parent=1 // pred_check_branch
      %79 = sbr.rel (0) target = $region45
    $region44: #{lstm_reg_forward.1} parent=1 // pred_region
      %80 = dma.done [#allocation5], 16384
    $region45: #{lstm_reg_forward.1} parent=1 // pred_fallthru
      _
    // Predicated region
    $region46: #{lstm_reg_forward.1} parent=1 // pred_check
      _
    $region47: #{lstm_reg_forward.1} parent=1 // pred_check_branch
      %82 = sbr.rel (0) target = $region49
    $region48: #{lstm_reg_forward.1} parent=1 // pred_region
      %83 = dma.done [#allocation8], 2048
    $region49: #{lstm_reg_forward.1} parent=1 // pred_fallthru
      _
    %v84 = vld [vmem:[#allocation4] sm:$0xff]
    %v85 = vld [vmem:[#allocation4 + $0x8] sm:$0xff]
    %v86 = vld [vmem:[#allocation4 + $0x10] sm:$0xff]
    %v87 = vld [vmem:[#allocation4 + $0x18] sm:$0xff]
    %v88 = vld [vmem:[#allocation4 + $0x20] sm:$0xff]
    %v89 = vld [vmem:[#allocation4 + $0x28] sm:$0xff]
    %v90 = vld [vmem:[#allocation4 + $0x30] sm:$0xff]
    %v91 = vld [vmem:[#allocation4 + $0x38] sm:$0xff]
    %v92 = vld [vmem:[#allocation4 + $0x40] sm:$0xff]
    %v93 = vld [vmem:[#allocation4 + $0x48] sm:$0xff]
    %v94 = vld [vmem:[#allocation4 + $0x50] sm:$0xff]
    %v95 = vld [vmem:[#allocation4 + $0x58] sm:$0xff]
    %v96 = vld [vmem:[#allocation4 + $0x60] sm:$0xff]
    %v97 = vld [vmem:[#allocation4 + $0x68] sm:$0xff]
    %v98 = vld [vmem:[#allocation4 + $0x70] sm:$0xff]
    %v99 = vld [vmem:[#allocation4 + $0x78] sm:$0xff]
    %v100 = vld [vmem:[#allocation4 + $0x80] sm:$0xff]
    %v101 = vld [vmem:[#allocation4 + $0x88] sm:$0xff]
    %v102 = vld [vmem:[#allocation4 + $0x90] sm:$0xff]
    %v103 = vld [vmem:[#allocation4 + $0x98] sm:$0xff]
    %v104 = vld [vmem:[#allocation4 + $0xa0] sm:$0xff]
    %v105 = vld [vmem:[#allocation4 + $0xa8] sm:$0xff]
    %v106 = vld [vmem:[#allocation4 + $0xb0] sm:$0xff]
    %v107 = vld [vmem:[#allocation4 + $0xb8] sm:$0xff]
    %v108 = vld [vmem:[#allocation4 + $0xc0] sm:$0xff]
    %v109 = vld [vmem:[#allocation4 + $0xc8] sm:$0xff]
    %v110 = vld [vmem:[#allocation4 + $0xd0] sm:$0xff]
    %v111 = vld [vmem:[#allocation4 + $0xd8] sm:$0xff]
    %v112 = vld [vmem:[#allocation4 + $0xe0] sm:$0xff]
    %v113 = vld [vmem:[#allocation4 + $0xe8] sm:$0xff]
    %v114 = vld [vmem:[#allocation4 + $0xf0] sm:$0xff]
    %v115 = vld [vmem:[#allocation4 + $0xf8] sm:$0xff]
    %v116 = vld [vmem:[#allocation4 + $0x100] sm:$0xff]
    %v117 = vld [vmem:[#allocation4 + $0x108] sm:$0xff]
    %v118 = vld [vmem:[#allocation4 + $0x110] sm:$0xff]
    %v119 = vld [vmem:[#allocation4 + $0x118] sm:$0xff]
    %v120 = vld [vmem:[#allocation4 + $0x120] sm:$0xff]
    %v121 = vld [vmem:[#allocation4 + $0x128] sm:$0xff]
    %v122 = vld [vmem:[#allocation4 + $0x130] sm:$0xff]
    %v123 = vld [vmem:[#allocation4 + $0x138] sm:$0xff]
    %v124 = vld [vmem:[#allocation4 + $0x140] sm:$0xff]
    %v125 = vld [vmem:[#allocation4 + $0x148] sm:$0xff]
    %v126 = vld [vmem:[#allocation4 + $0x150] sm:$0xff]
    %v127 = vld [vmem:[#allocation4 + $0x158] sm:$0xff]
    %v128 = vld [vmem:[#allocation4 + $0x160] sm:$0xff]
    %v129 = vld [vmem:[#allocation4 + $0x168] sm:$0xff]
    %v130 = vld [vmem:[#allocation4 + $0x170] sm:$0xff]
    %v131 = vld [vmem:[#allocation4 + $0x178] sm:$0xff]
    %v132 = vld [vmem:[#allocation4 + $0x180] sm:$0xff]
    %v133 = vld [vmem:[#allocation4 + $0x188] sm:$0xff]
    %v134 = vld [vmem:[#allocation4 + $0x190] sm:$0xff]
    %v135 = vld [vmem:[#allocation4 + $0x198] sm:$0xff]
    %v136 = vld [vmem:[#allocation4 + $0x1a0] sm:$0xff]
    %v137 = vld [vmem:[#allocation4 + $0x1a8] sm:$0xff]
    %v138 = vld [vmem:[#allocation4 + $0x1b0] sm:$0xff]
    %v139 = vld [vmem:[#allocation4 + $0x1b8] sm:$0xff]
    %v140 = vld [vmem:[#allocation4 + $0x1c0] sm:$0xff]
    %v141 = vld [vmem:[#allocation4 + $0x1c8] sm:$0xff]
    %v142 = vld [vmem:[#allocation4 + $0x1d0] sm:$0xff]
    %v143 = vld [vmem:[#allocation4 + $0x1d8] sm:$0xff]
    %v144 = vld [vmem:[#allocation4 + $0x1e0] sm:$0xff]
    %v145 = vld [vmem:[#allocation4 + $0x1e8] sm:$0xff]
    %v146 = vld [vmem:[#allocation4 + $0x1f0] sm:$0xff]
    %v147 = vld [vmem:[#allocation4 + $0x1f8] sm:$0xff]
    %v148 = vld [vmem:[#allocation6] sm:$0xff]
    %v149 = vld [vmem:[#allocation6 + $0x8] sm:$0xff]
    %v150 = vld [vmem:[#allocation6 + $0x10] sm:$0xff]
    %v151 = vld [vmem:[#allocation6 + $0x18] sm:$0xff]
    %v152 = vld [vmem:[#allocation6 + $0x20] sm:$0xff]
    %v153 = vld [vmem:[#allocation6 + $0x28] sm:$0xff]
    %v154 = vld [vmem:[#allocation6 + $0x30] sm:$0xff]
    %v155 = vld [vmem:[#allocation6 + $0x38] sm:$0xff]
    %v156 = vld [vmem:[#allocation6 + $0x40] sm:$0xff]
    %v157 = vld [vmem:[#allocation6 + $0x48] sm:$0xff]
    %v158 = vld [vmem:[#allocation6 + $0x50] sm:$0xff]
    %v159 = vld [vmem:[#allocation6 + $0x58] sm:$0xff]
    %v160 = vld [vmem:[#allocation6 + $0x60] sm:$0xff]
    %v161 = vld [vmem:[#allocation6 + $0x68] sm:$0xff]
    %v162 = vld [vmem:[#allocation6 + $0x70] sm:$0xff]
    %v163 = vld [vmem:[#allocation6 + $0x78] sm:$0xff]
    %v164 = vld [vmem:[#allocation6 + $0x80] sm:$0xff]
    %v165 = vld [vmem:[#allocation6 + $0x88] sm:$0xff]
    %v166 = vld [vmem:[#allocation6 + $0x90] sm:$0xff]
    %v167 = vld [vmem:[#allocation6 + $0x98] sm:$0xff]
    %v168 = vld [vmem:[#allocation6 + $0xa0] sm:$0xff]
    %v169 = vld [vmem:[#allocation6 + $0xa8] sm:$0xff]
    %v170 = vld [vmem:[#allocation6 + $0xb0] sm:$0xff]
    %v171 = vld [vmem:[#allocation6 + $0xb8] sm:$0xff]
    %v172 = vld [vmem:[#allocation6 + $0xc0] sm:$0xff]
    %v173 = vld [vmem:[#allocation6 + $0xc8] sm:$0xff]
    %v174 = vld [vmem:[#allocation6 + $0xd0] sm:$0xff]
    %v175 = vld [vmem:[#allocation6 + $0xd8] sm:$0xff]
    %v176 = vld [vmem:[#allocation6 + $0xe0] sm:$0xff]
    %v177 = vld [vmem:[#allocation6 + $0xe8] sm:$0xff]
    %v178 = vld [vmem:[#allocation6 + $0xf0] sm:$0xff]
    %v179 = vld [vmem:[#allocation6 + $0xf8] sm:$0xff]
    %v180 = vld [vmem:[#allocation6 + $0x100] sm:$0xff]
    %v181 = vld [vmem:[#allocation6 + $0x108] sm:$0xff]
    %v182 = vld [vmem:[#allocation6 + $0x110] sm:$0xff]
    %v183 = vld [vmem:[#allocation6 + $0x118] sm:$0xff]
    %v184 = vld [vmem:[#allocation6 + $0x120] sm:$0xff]
    %v185 = vld [vmem:[#allocation6 + $0x128] sm:$0xff]
    %v186 = vld [vmem:[#allocation6 + $0x130] sm:$0xff]
    %v187 = vld [vmem:[#allocation6 + $0x138] sm:$0xff]
    %v188 = vld [vmem:[#allocation6 + $0x140] sm:$0xff]
    %v189 = vld [vmem:[#allocation6 + $0x148] sm:$0xff]
    %v190 = vld [vmem:[#allocation6 + $0x150] sm:$0xff]
    %v191 = vld [vmem:[#allocation6 + $0x158] sm:$0xff]
    %v192 = vld [vmem:[#allocation6 + $0x160] sm:$0xff]
    %v193 = vld [vmem:[#allocation6 + $0x168] sm:$0xff]
    %v194 = vld [vmem:[#allocation6 + $0x170] sm:$0xff]
    %v195 = vld [vmem:[#allocation6 + $0x178] sm:$0xff]
    %v196 = vld [vmem:[#allocation6 + $0x180] sm:$0xff]
    %v197 = vld [vmem:[#allocation6 + $0x188] sm:$0xff]
    %v198 = vld [vmem:[#allocation6 + $0x190] sm:$0xff]
    %v199 = vld [vmem:[#allocation6 + $0x198] sm:$0xff]
    %v200 = vld [vmem:[#allocation6 + $0x1a0] sm:$0xff]
    %v201 = vld [vmem:[#allocation6 + $0x1a8] sm:$0xff]
    %v202 = vld [vmem:[#allocation6 + $0x1b0] sm:$0xff]
    %v203 = vld [vmem:[#allocation6 + $0x1b8] sm:$0xff]
    %v204 = vld [vmem:[#allocation6 + $0x1c0] sm:$0xff]
    %v205 = vld [vmem:[#allocation6 + $0x1c8] sm:$0xff]
    %v206 = vld [vmem:[#allocation6 + $0x1d0] sm:$0xff]
    %v207 = vld [vmem:[#allocation6 + $0x1d8] sm:$0xff]
    %v208 = vld [vmem:[#allocation6 + $0x1e0] sm:$0xff]
    %v209 = vld [vmem:[#allocation6 + $0x1e8] sm:$0xff]
    %v210 = vld [vmem:[#allocation6 + $0x1f0] sm:$0xff]
    %v211 = vld [vmem:[#allocation6 + $0x1f8] sm:$0xff]
    %v212 = vld [vmem:[#allocation6 + $0x200] sm:$0xff]
    %v213 = vld [vmem:[#allocation6 + $0x208] sm:$0xff]
    %v214 = vld [vmem:[#allocation6 + $0x210] sm:$0xff]
    %v215 = vld [vmem:[#allocation6 + $0x218] sm:$0xff]
    %v216 = vld [vmem:[#allocation6 + $0x220] sm:$0xff]
    %v217 = vld [vmem:[#allocation6 + $0x228] sm:$0xff]
    %v218 = vld [vmem:[#allocation6 + $0x230] sm:$0xff]
    %v219 = vld [vmem:[#allocation6 + $0x238] sm:$0xff]
    %v220 = vld [vmem:[#allocation6 + $0x240] sm:$0xff]
    %v221 = vld [vmem:[#allocation6 + $0x248] sm:$0xff]
    %v222 = vld [vmem:[#allocation6 + $0x250] sm:$0xff]
    %v223 = vld [vmem:[#allocation6 + $0x258] sm:$0xff]
    %v224 = vld [vmem:[#allocation6 + $0x260] sm:$0xff]
    %v225 = vld [vmem:[#allocation6 + $0x268] sm:$0xff]
    %v226 = vld [vmem:[#allocation6 + $0x270] sm:$0xff]
    %v227 = vld [vmem:[#allocation6 + $0x278] sm:$0xff]
    %v228 = vld [vmem:[#allocation6 + $0x280] sm:$0xff]
    %v229 = vld [vmem:[#allocation6 + $0x288] sm:$0xff]
    %v230 = vld [vmem:[#allocation6 + $0x290] sm:$0xff]
    %v231 = vld [vmem:[#allocation6 + $0x298] sm:$0xff]
    %v232 = vld [vmem:[#allocation6 + $0x2a0] sm:$0xff]
    %v233 = vld [vmem:[#allocation6 + $0x2a8] sm:$0xff]
    %v234 = vld [vmem:[#allocation6 + $0x2b0] sm:$0xff]
    %v235 = vld [vmem:[#allocation6 + $0x2b8] sm:$0xff]
    %v236 = vld [vmem:[#allocation6 + $0x2c0] sm:$0xff]
    %v237 = vld [vmem:[#allocation6 + $0x2c8] sm:$0xff]
    %v238 = vld [vmem:[#allocation6 + $0x2d0] sm:$0xff]
    %v239 = vld [vmem:[#allocation6 + $0x2d8] sm:$0xff]
    %v240 = vld [vmem:[#allocation6 + $0x2e0] sm:$0xff]
    %v241 = vld [vmem:[#allocation6 + $0x2e8] sm:$0xff]
    %v242 = vld [vmem:[#allocation6 + $0x2f0] sm:$0xff]
    %v243 = vld [vmem:[#allocation6 + $0x2f8] sm:$0xff]
    %v244 = vld [vmem:[#allocation6 + $0x300] sm:$0xff]
    %v245 = vld [vmem:[#allocation6 + $0x308] sm:$0xff]
    %v246 = vld [vmem:[#allocation6 + $0x310] sm:$0xff]
    %v247 = vld [vmem:[#allocation6 + $0x318] sm:$0xff]
    %v248 = vld [vmem:[#allocation6 + $0x320] sm:$0xff]
    %v249 = vld [vmem:[#allocation6 + $0x328] sm:$0xff]
    %v250 = vld [vmem:[#allocation6 + $0x330] sm:$0xff]
    %v251 = vld [vmem:[#allocation6 + $0x338] sm:$0xff]
    %v252 = vld [vmem:[#allocation6 + $0x340] sm:$0xff]
    %v253 = vld [vmem:[#allocation6 + $0x348] sm:$0xff]
    %v254 = vld [vmem:[#allocation6 + $0x350] sm:$0xff]
    %v255 = vld [vmem:[#allocation6 + $0x358] sm:$0xff]
    %v256 = vld [vmem:[#allocation6 + $0x360] sm:$0xff]
    %v257 = vld [vmem:[#allocation6 + $0x368] sm:$0xff]
    %v258 = vld [vmem:[#allocation6 + $0x370] sm:$0xff]
    %v259 = vld [vmem:[#allocation6 + $0x378] sm:$0xff]
    %v260 = vld [vmem:[#allocation6 + $0x380] sm:$0xff]
    %v261 = vld [vmem:[#allocation6 + $0x388] sm:$0xff]
    %v262 = vld [vmem:[#allocation6 + $0x390] sm:$0xff]
    %v263 = vld [vmem:[#allocation6 + $0x398] sm:$0xff]
    %v264 = vld [vmem:[#allocation6 + $0x3a0] sm:$0xff]
    %v265 = vld [vmem:[#allocation6 + $0x3a8] sm:$0xff]
    %v266 = vld [vmem:[#allocation6 + $0x3b0] sm:$0xff]
    %v267 = vld [vmem:[#allocation6 + $0x3b8] sm:$0xff]
    %v268 = vld [vmem:[#allocation6 + $0x3c0] sm:$0xff]
    %v269 = vld [vmem:[#allocation6 + $0x3c8] sm:$0xff]
    %v270 = vld [vmem:[#allocation6 + $0x3d0] sm:$0xff]
    %v271 = vld [vmem:[#allocation6 + $0x3d8] sm:$0xff]
    %v272 = vld [vmem:[#allocation6 + $0x3e0] sm:$0xff]
    %v273 = vld [vmem:[#allocation6 + $0x3e8] sm:$0xff]
    %v274 = vld [vmem:[#allocation6 + $0x3f0] sm:$0xff]
    %v275 = vld [vmem:[#allocation6 + $0x3f8] sm:$0xff]
    %v276 = vld [vmem:[%s5] sm:$0xf]
    %v278 = vlaneseq
    %v279 = vshrl.u32 %v278, 7
    %v280 = vsub.s32 0, %v279
    %v281 = vrot.slane %v276, %v280
    %v282 = vlaneseq
    %v283 = vshrl.u32 %v282, 7
    %v284 = vsub.s32 1, %v283
    %v285 = vrot.slane %v276, %v284
    %v286 = vlaneseq
    %v287 = vshrl.u32 %v286, 7
    %v288 = vsub.s32 2, %v287
    %v289 = vrot.slane %v276, %v288
    %v290 = vlaneseq
    %v291 = vshrl.u32 %v290, 7
    %v292 = vsub.s32 3, %v291
    %v293 = vrot.slane %v276, %v292
    %v298 = vld [vmem:[%s0] sm:$0xff]
    %v299 = vld [vmem:[%s0 + $0x8] sm:$0xff]
    %v300 = vld [vmem:[%s0 + $0x10] sm:$0xff]
    %v301 = vld [vmem:[%s0 + $0x18] sm:$0xff]
    %v302 = vld [vmem:[%s0 + $0x20] sm:$0xff]
    %v303 = vld [vmem:[%s0 + $0x28] sm:$0xff]
    %v304 = vld [vmem:[%s0 + $0x30] sm:$0xff]
    %v305 = vld [vmem:[%s0 + $0x38] sm:$0xff]
    %v306 = vld [vmem:[#allocation2] sm:$0xff]
    %v307 = vld [vmem:[#allocation2 + $0x8] sm:$0xff]
    %v308 = vld [vmem:[#allocation2 + $0x10] sm:$0xff]
    %v309 = vld [vmem:[#allocation2 + $0x18] sm:$0xff]
    %v310 = vld [vmem:[#allocation2 + $0x20] sm:$0xff]
    %v311 = vld [vmem:[#allocation2 + $0x28] sm:$0xff]
    %v312 = vld [vmem:[#allocation2 + $0x30] sm:$0xff]
    %v313 = vld [vmem:[#allocation2 + $0x38] sm:$0xff]
    %v314 = vld [vmem:[#allocation2 + $0x40] sm:$0xff]
    %v315 = vld [vmem:[#allocation2 + $0x48] sm:$0xff]
    %v316 = vld [vmem:[#allocation2 + $0x50] sm:$0xff]
    %v317 = vld [vmem:[#allocation2 + $0x58] sm:$0xff]
    %v318 = vld [vmem:[#allocation2 + $0x60] sm:$0xff]
    %v319 = vld [vmem:[#allocation2 + $0x68] sm:$0xff]
    %v320 = vld [vmem:[#allocation2 + $0x70] sm:$0xff]
    %v321 = vld [vmem:[#allocation2 + $0x78] sm:$0xff]
    %v322 = vld [vmem:[#allocation2 + $0x80] sm:$0xff]
    %v323 = vld [vmem:[#allocation2 + $0x88] sm:$0xff]
    %v324 = vld [vmem:[#allocation2 + $0x90] sm:$0xff]
    %v325 = vld [vmem:[#allocation2 + $0x98] sm:$0xff]
    %v326 = vld [vmem:[#allocation2 + $0xa0] sm:$0xff]
    %v327 = vld [vmem:[#allocation2 + $0xa8] sm:$0xff]
    %v328 = vld [vmem:[#allocation2 + $0xb0] sm:$0xff]
    %v329 = vld [vmem:[#allocation2 + $0xb8] sm:$0xff]
    %v330 = vld [vmem:[#allocation2 + $0xc0] sm:$0xff]
    %v331 = vld [vmem:[#allocation2 + $0xc8] sm:$0xff]
    %v332 = vld [vmem:[#allocation2 + $0xd0] sm:$0xff]
    %v333 = vld [vmem:[#allocation2 + $0xd8] sm:$0xff]
    %v334 = vld [vmem:[#allocation2 + $0xe0] sm:$0xff]
    %v335 = vld [vmem:[#allocation2 + $0xe8] sm:$0xff]
    %v336 = vld [vmem:[#allocation2 + $0xf0] sm:$0xff]
    %v337 = vld [vmem:[#allocation2 + $0xf8] sm:$0xff]
    %v338 = vld [vmem:[%s3] sm:$0xf]
    %v340 = vlaneseq
    %v341 = vshrl.u32 %v340, 7
    %v342 = vsub.s32 0, %v341
    %v343 = vrot.slane %v338, %v342
    %v344 = vlaneseq
    %v345 = vshrl.u32 %v344, 7
    %v346 = vsub.s32 1, %v345
    %v347 = vrot.slane %v338, %v346
    %v348 = vlaneseq
    %v349 = vshrl.u32 %v348, 7
    %v350 = vsub.s32 2, %v349
    %v351 = vrot.slane %v338, %v350
    %v352 = vlaneseq
    %v353 = vshrl.u32 %v352, 7
    %v354 = vsub.s32 3, %v353
    %v355 = vrot.slane %v338, %v354
    %vm360 = vcmask 523264
    %v362 = vsel %vm360, %v298, 0
    %v365 = vsel %vm360, %v299, 0
    %v368 = vsel %vm360, %v300, 0
    %v371 = vsel %vm360, %v301, 0
    %v374 = vsel %vm360, %v302, 0
    %v377 = vsel %vm360, %v303, 0
    %v380 = vsel %vm360, %v304, 0
    %v383 = vsel %vm360, %v305, 0
    %385 = vmatprep.subr.mxu0 %v307
    %386 = vmatpush1.msra.mxu0 %v306
    %387 = vmatprep.subr.mxu0 %v311
    %388 = vmatpush1.msra.mxu0 %v310
    %389 = vmatprep.subr.mxu0 %v315
    %390 = vmatpush1.msra.mxu0 %v314
    %391 = vmatprep.subr.mxu0 %v319
    %392 = vmatpush1.msra.mxu0 %v318
    %393 = vmatprep.subr.mxu0 %v323
    %394 = vmatpush1.msra.mxu0 %v322
    %395 = vmatprep.subr.mxu0 %v327
    %396 = vmatpush1.msra.mxu0 %v326
    %397 = vmatprep.subr.mxu0 %v331
    %398 = vmatpush1.msra.mxu0 %v330
    %399 = vmatprep.subr.mxu0 %v335
    %400 = vmatpush1.msra.mxu0 %v334
    %401 = vmatprep.subr.mxu0 0.0
    %402 = vmatpush1.msra.mxu0 0.0
    %403 = vmatprep.subr.mxu0 0.0
    %404 = vmatpush1.msra.mxu0 0.0
    %405 = vmatprep.subr.mxu0 0.0
    %406 = vmatpush1.msra.mxu0 0.0
    %407 = vmatprep.subr.mxu0 0.0
    %408 = vmatpush1.msra.mxu0 0.0
    %409 = vmatprep.subr.mxu0 0.0
    %410 = vmatpush1.msra.mxu0 0.0
    %411 = vmatprep.subr.mxu0 0.0
    %412 = vmatpush1.msra.mxu0 0.0
    %413 = vmatprep.subr.mxu0 0.0
    %414 = vmatpush1.msra.mxu0 0.0
    %415 = vmatprep.subr.mxu0 0.0
    %416 = vmatpush1.msra.mxu0 0.0
    %417 = vmatprep.subr.mxu0 0.0
    %418 = vmatpush1.msra.mxu0 0.0
    %419 = vmatprep.subr.mxu0 0.0
    %420 = vmatpush1.msra.mxu0 0.0
    %421 = vmatprep.subr.mxu0 0.0
    %422 = vmatpush1.msra.mxu0 0.0
    %423 = vmatprep.subr.mxu0 0.0
    %424 = vmatpush1.msra.mxu0 0.0
    %425 = vmatprep.subr.mxu0 0.0
    %426 = vmatpush1.msra.mxu0 0.0
    %427 = vmatprep.subr.mxu0 0.0
    %428 = vmatpush1.msra.mxu0 0.0
    %429 = vmatprep.subr.mxu0 0.0
    %430 = vmatpush1.msra.mxu0 0.0
    %431 = vmatprep.subr.mxu0 0.0
    %432 = vmatpush1.msra.mxu0 0.0
    %433 = vmatprep.subr.mxu0 0.0
    %434 = vmatpush1.msra.mxu0 0.0
    %435 = vmatprep.subr.mxu0 0.0
    %436 = vmatpush1.msra.mxu0 0.0
    %437 = vmatprep.subr.mxu0 0.0
    %438 = vmatpush1.msra.mxu0 0.0
    %439 = vmatprep.subr.mxu0 0.0
    %440 = vmatpush1.msra.mxu0 0.0
    %441 = vmatprep.subr.mxu0 0.0
    %442 = vmatpush1.msra.mxu0 0.0
    %443 = vmatprep.subr.mxu0 0.0
    %444 = vmatpush1.msra.mxu0 0.0
    %445 = vmatprep.subr.mxu0 0.0
    %446 = vmatpush1.msra.mxu0 0.0
    %447 = vmatprep.subr.mxu0 0.0
    %448 = vmatpush1.msra.mxu0 0.0
    %449 = vmatprep.mubr.f32.mxu0 0.0
    %450 = vmatmul.mubr.f32.gmra.mrb[0].mxu0 %v362
    %v451 = vpop.f32.mrb[0].mxu0
    %v452 = vadd.f32 %v343, %v451
    %v453 = vpop.f32.mrb[0].mxu0
    %v454 = vadd.f32 %v347, %v453
    %455 = vmatprep.mubr.f32.mxu0 0.0
    %456 = vmatmul.mubr.f32.gmra.mrb[0].mxu0 %v365
    %v457 = vpop.f32.mrb[0].mxu0
    %v458 = vadd.f32 %v343, %v457
    %v459 = vpop.f32.mrb[0].mxu0
    %v460 = vadd.f32 %v347, %v459
    %461 = vmatprep.mubr.f32.mxu0 0.0
    %462 = vmatmul.mubr.f32.gmra.mrb[0].mxu0 %v368
    %v463 = vpop.f32.mrb[0].mxu0
    %v464 = vadd.f32 %v343, %v463
    %v465 = vpop.f32.mrb[0].mxu0
    %v466 = vadd.f32 %v347, %v465
    %467 = vmatprep.mubr.f32.mxu0 0.0
    %468 = vmatmul.mubr.f32.gmra.mrb[0].mxu0 %v371
    %v469 = vpop.f32.mrb[0].mxu0
    %v470 = vadd.f32 %v343, %v469
    %v471 = vpop.f32.mrb[0].mxu0
    %v472 = vadd.f32 %v347, %v471
    %473 = vmatprep.mubr.f32.mxu0 0.0
    %474 = vmatmul.mubr.f32.gmra.mrb[0].mxu0 %v374
    %v475 = vpop.f32.mrb[0].mxu0
    %v476 = vadd.f32 %v343, %v475
    %v477 = vpop.f32.mrb[0].mxu0
    %v478 = vadd.f32 %v347, %v477
    %479 = vmatprep.mubr.f32.mxu0 0.0
    %480 = vmatmul.mubr.f32.gmra.mrb[0].mxu0 %v377
    %v481 = vpop.f32.mrb[0].mxu0
    %v482 = vadd.f32 %v343, %v481
    %v483 = vpop.f32.mrb[0].mxu0
    %v484 = vadd.f32 %v347, %v483
    %485 = vmatprep.mubr.f32.mxu0 0.0
    %486 = vmatmul.mubr.f32.gmra.mrb[0].mxu0 %v380
    %v487 = vpop.f32.mrb[0].mxu0
    %v488 = vadd.f32 %v343, %v487
    %v489 = vpop.f32.mrb[0].mxu0
    %v490 = vadd.f32 %v347, %v489
    %491 = vmatprep.mubr.f32.mxu0 0.0
    %492 = vmatmul.mubr.f32.gmra.mrb[0].mxu0 %v383
    %v493 = vpop.f32.mrb[0].mxu0
    %v494 = vadd.f32 %v343, %v493
    %v495 = vpop.f32.mrb[0].mxu0
    %v496 = vadd.f32 %v347, %v495
    %497 = vdwg.mxu0
    %498 = vmatprep.subr.mxu0 %v309
    %499 = vmatpush1.msra.mxu0 %v308
    %500 = vmatprep.subr.mxu0 %v313
    %501 = vmatpush1.msra.mxu0 %v312
    %502 = vmatprep.subr.mxu0 %v317
    %503 = vmatpush1.msra.mxu0 %v316
    %504 = vmatprep.subr.mxu0 %v321
    %505 = vmatpush1.msra.mxu0 %v320
    %506 = vmatprep.subr.mxu0 %v325
    %507 = vmatpush1.msra.mxu0 %v324
    %508 = vmatprep.subr.mxu0 %v329
    %509 = vmatpush1.msra.mxu0 %v328
    %510 = vmatprep.subr.mxu0 %v333
    %511 = vmatpush1.msra.mxu0 %v332
    %512 = vmatprep.subr.mxu0 %v337
    %513 = vmatpush1.msra.mxu0 %v336
    %514 = vmatprep.subr.mxu0 0.0
    %515 = vmatpush1.msra.mxu0 0.0
    %516 = vmatprep.subr.mxu0 0.0
    %517 = vmatpush1.msra.mxu0 0.0
    %518 = vmatprep.subr.mxu0 0.0
    %519 = vmatpush1.msra.mxu0 0.0
    %520 = vmatprep.subr.mxu0 0.0
    %521 = vmatpush1.msra.mxu0 0.0
    %522 = vmatprep.subr.mxu0 0.0
    %523 = vmatpush1.msra.mxu0 0.0
    %524 = vmatprep.subr.mxu0 0.0
    %525 = vmatpush1.msra.mxu0 0.0
    %526 = vmatprep.subr.mxu0 0.0
    %527 = vmatpush1.msra.mxu0 0.0
    %528 = vmatprep.subr.mxu0 0.0
    %529 = vmatpush1.msra.mxu0 0.0
    %530 = vmatprep.subr.mxu0 0.0
    %531 = vmatpush1.msra.mxu0 0.0
    %532 = vmatprep.subr.mxu0 0.0
    %533 = vmatpush1.msra.mxu0 0.0
    %534 = vmatprep.subr.mxu0 0.0
    %535 = vmatpush1.msra.mxu0 0.0
    %536 = vmatprep.subr.mxu0 0.0
    %537 = vmatpush1.msra.mxu0 0.0
    %538 = vmatprep.subr.mxu0 0.0
    %539 = vmatpush1.msra.mxu0 0.0
    %540 = vmatprep.subr.mxu0 0.0
    %541 = vmatpush1.msra.mxu0 0.0
    %542 = vmatprep.subr.mxu0 0.0
    %543 = vmatpush1.msra.mxu0 0.0
    %544 = vmatprep.subr.mxu0 0.0
    %545 = vmatpush1.msra.mxu0 0.0
    %546 = vmatprep.subr.mxu0 0.0
    %547 = vmatpush1.msra.mxu0 0.0
    %548 = vmatprep.subr.mxu0 0.0
    %549 = vmatpush1.msra.mxu0 0.0
    %550 = vmatprep.subr.mxu0 0.0
    %551 = vmatpush1.msra.mxu0 0.0
    %552 = vmatprep.subr.mxu0 0.0
    %553 = vmatpush1.msra.mxu0 0.0
    %554 = vmatprep.subr.mxu0 0.0
    %555 = vmatpush1.msra.mxu0 0.0
    %556 = vmatprep.subr.mxu0 0.0
    %557 = vmatpush1.msra.mxu0 0.0
    %558 = vmatprep.subr.mxu0 0.0
    %559 = vmatpush1.msra.mxu0 0.0
    %560 = vmatprep.subr.mxu0 0.0
    %561 = vmatpush1.msra.mxu0 0.0
    %562 = vmatprep.mubr.f32.mxu0 0.0
    %563 = vmatmul.mubr.f32.gmra.mrb[0].mxu0 %v362
    %v564 = vpop.f32.mrb[0].mxu0
    %v565 = vadd.f32 %v351, %v564
    %v566 = vpop.f32.mrb[0].mxu0
    %v567 = vadd.f32 %v355, %v566
    %568 = vmatprep.mubr.f32.mxu0 0.0
    %569 = vmatmul.mubr.f32.gmra.mrb[0].mxu0 %v365
    %v570 = vpop.f32.mrb[0].mxu0
    %v571 = vadd.f32 %v351, %v570
    %v572 = vpop.f32.mrb[0].mxu0
    %v573 = vadd.f32 %v355, %v572
    %574 = vmatprep.mubr.f32.mxu0 0.0
    %575 = vmatmul.mubr.f32.gmra.mrb[0].mxu0 %v368
    %v576 = vpop.f32.mrb[0].mxu0
    %v577 = vadd.f32 %v351, %v576
    %v578 = vpop.f32.mrb[0].mxu0
    %v579 = vadd.f32 %v355, %v578
    %580 = vmatprep.mubr.f32.mxu0 0.0
    %581 = vmatmul.mubr.f32.gmra.mrb[0].mxu0 %v371
    %v582 = vpop.f32.mrb[0].mxu0
    %v583 = vadd.f32 %v351, %v582
    %v584 = vpop.f32.mrb[0].mxu0
    %v585 = vadd.f32 %v355, %v584
    %586 = vmatprep.mubr.f32.mxu0 0.0
    %587 = vmatmul.mubr.f32.gmra.mrb[0].mxu0 %v374
    %v588 = vpop.f32.mrb[0].mxu0
    %v589 = vadd.f32 %v351, %v588
    %v590 = vpop.f32.mrb[0].mxu0
    %v591 = vadd.f32 %v355, %v590
    %592 = vmatprep.mubr.f32.mxu0 0.0
    %593 = vmatmul.mubr.f32.gmra.mrb[0].mxu0 %v377
    %v594 = vpop.f32.mrb[0].mxu0
    %v595 = vadd.f32 %v351, %v594
    %v596 = vpop.f32.mrb[0].mxu0
    %v597 = vadd.f32 %v355, %v596
    %598 = vmatprep.mubr.f32.mxu0 0.0
    %599 = vmatmul.mubr.f32.gmra.mrb[0].mxu0 %v380
    %v600 = vpop.f32.mrb[0].mxu0
    %v601 = vadd.f32 %v351, %v600
    %v602 = vpop.f32.mrb[0].mxu0
    %v603 = vadd.f32 %v355, %v602
    %604 = vmatprep.mubr.f32.mxu0 0.0
    %605 = vmatmul.mubr.f32.gmra.mrb[0].mxu0 %v383
    %v606 = vpop.f32.mrb[0].mxu0
    %v607 = vadd.f32 %v351, %v606
    %v608 = vpop.f32.mrb[0].mxu0
    %v609 = vadd.f32 %v355, %v608
    %610 = vdwg.mxu0
    %611 = vmatprep.subr.mxu0 %v85
    %612 = vmatpush1.msra.mxu0 %v84
    %613 = vmatprep.subr.mxu0 %v89
    %614 = vmatpush1.msra.mxu0 %v88
    %615 = vmatprep.subr.mxu0 %v93
    %616 = vmatpush1.msra.mxu0 %v92
    %617 = vmatprep.subr.mxu0 %v97
    %618 = vmatpush1.msra.mxu0 %v96
    %619 = vmatprep.subr.mxu0 %v101
    %620 = vmatpush1.msra.mxu0 %v100
    %621 = vmatprep.subr.mxu0 %v105
    %622 = vmatpush1.msra.mxu0 %v104
    %623 = vmatprep.subr.mxu0 %v109
    %624 = vmatpush1.msra.mxu0 %v108
    %625 = vmatprep.subr.mxu0 %v113
    %626 = vmatpush1.msra.mxu0 %v112
    %627 = vmatprep.subr.mxu0 %v117
    %628 = vmatpush1.msra.mxu0 %v116
    %629 = vmatprep.subr.mxu0 %v121
    %630 = vmatpush1.msra.mxu0 %v120
    %631 = vmatprep.subr.mxu0 %v125
    %632 = vmatpush1.msra.mxu0 %v124
    %633 = vmatprep.subr.mxu0 %v129
    %634 = vmatpush1.msra.mxu0 %v128
    %635 = vmatprep.subr.mxu0 %v133
    %636 = vmatpush1.msra.mxu0 %v132
    %637 = vmatprep.subr.mxu0 %v137
    %638 = vmatpush1.msra.mxu0 %v136
    %639 = vmatprep.subr.mxu0 %v141
    %640 = vmatpush1.msra.mxu0 %v140
    %641 = vmatprep.subr.mxu0 %v145
    %642 = vmatpush1.msra.mxu0 %v144
    %643 = vmatprep.subr.mxu0 0.0
    %644 = vmatpush1.msra.mxu0 0.0
    %645 = vmatprep.subr.mxu0 0.0
    %646 = vmatpush1.msra.mxu0 0.0
    %647 = vmatprep.subr.mxu0 0.0
    %648 = vmatpush1.msra.mxu0 0.0
    %649 = vmatprep.subr.mxu0 0.0
    %650 = vmatpush1.msra.mxu0 0.0
    %651 = vmatprep.subr.mxu0 0.0
    %652 = vmatpush1.msra.mxu0 0.0
    %653 = vmatprep.subr.mxu0 0.0
    %654 = vmatpush1.msra.mxu0 0.0
    %655 = vmatprep.subr.mxu0 0.0
    %656 = vmatpush1.msra.mxu0 0.0
    %657 = vmatprep.subr.mxu0 0.0
    %658 = vmatpush1.msra.mxu0 0.0
    %659 = vmatprep.subr.mxu0 0.0
    %660 = vmatpush1.msra.mxu0 0.0
    %661 = vmatprep.subr.mxu0 0.0
    %662 = vmatpush1.msra.mxu0 0.0
    %663 = vmatprep.subr.mxu0 0.0
    %664 = vmatpush1.msra.mxu0 0.0
    %665 = vmatprep.subr.mxu0 0.0
    %666 = vmatpush1.msra.mxu0 0.0
    %667 = vmatprep.subr.mxu0 0.0
    %668 = vmatpush1.msra.mxu0 0.0
    %669 = vmatprep.subr.mxu0 0.0
    %670 = vmatpush1.msra.mxu0 0.0
    %671 = vmatprep.subr.mxu0 0.0
    %672 = vmatpush1.msra.mxu0 0.0
    %673 = vmatprep.subr.mxu0 0.0
    %674 = vmatpush1.msra.mxu0 0.0
    %675 = vmatprep.mubr.f32.mxu0 0.0
    %676 = vmatmul.mubr.f32.gmra.mrb[0].mxu0 0.0
    %v677 = vpop.f32.mrb[0].mxu0
    %v678 = vadd.f32 0.0, %v677
    %v679 = vpop.f32.mrb[0].mxu0
    %v680 = vadd.f32 0.0, %v679
    %681 = vdwg.mxu0
    %682 = vmatprep.subr.mxu0 %v87
    %683 = vmatpush1.msra.mxu0 %v86
    %684 = vmatprep.subr.mxu0 %v91
    %685 = vmatpush1.msra.mxu0 %v90
    %686 = vmatprep.subr.mxu0 %v95
    %687 = vmatpush1.msra.mxu0 %v94
    %688 = vmatprep.subr.mxu0 %v99
    %689 = vmatpush1.msra.mxu0 %v98
    %690 = vmatprep.subr.mxu0 %v103
    %691 = vmatpush1.msra.mxu0 %v102
    %692 = vmatprep.subr.mxu0 %v107
    %693 = vmatpush1.msra.mxu0 %v106
    %694 = vmatprep.subr.mxu0 %v111
    %695 = vmatpush1.msra.mxu0 %v110
    %696 = vmatprep.subr.mxu0 %v115
    %697 = vmatpush1.msra.mxu0 %v114
    %698 = vmatprep.subr.mxu0 %v119
    %699 = vmatpush1.msra.mxu0 %v118
    %700 = vmatprep.subr.mxu0 %v123
    %701 = vmatpush1.msra.mxu0 %v122
    %702 = vmatprep.subr.mxu0 %v127
    %703 = vmatpush1.msra.mxu0 %v126
    %704 = vmatprep.subr.mxu0 %v131
    %705 = vmatpush1.msra.mxu0 %v130
    %706 = vmatprep.subr.mxu0 %v135
    %707 = vmatpush1.msra.mxu0 %v134
    %708 = vmatprep.subr.mxu0 %v139
    %709 = vmatpush1.msra.mxu0 %v138
    %710 = vmatprep.subr.mxu0 %v143
    %711 = vmatpush1.msra.mxu0 %v142
    %712 = vmatprep.subr.mxu0 %v147
    %713 = vmatpush1.msra.mxu0 %v146
    %714 = vmatprep.subr.mxu0 0.0
    %715 = vmatpush1.msra.mxu0 0.0
    %716 = vmatprep.subr.mxu0 0.0
    %717 = vmatpush1.msra.mxu0 0.0
    %718 = vmatprep.subr.mxu0 0.0
    %719 = vmatpush1.msra.mxu0 0.0
    %720 = vmatprep.subr.mxu0 0.0
    %721 = vmatpush1.msra.mxu0 0.0
    %722 = vmatprep.subr.mxu0 0.0
    %723 = vmatpush1.msra.mxu0 0.0
    %724 = vmatprep.subr.mxu0 0.0
    %725 = vmatpush1.msra.mxu0 0.0
    %726 = vmatprep.subr.mxu0 0.0
    %727 = vmatpush1.msra.mxu0 0.0
    %728 = vmatprep.subr.mxu0 0.0
    %729 = vmatpush1.msra.mxu0 0.0
    %730 = vmatprep.subr.mxu0 0.0
    %731 = vmatpush1.msra.mxu0 0.0
    %732 = vmatprep.subr.mxu0 0.0
    %733 = vmatpush1.msra.mxu0 0.0
    %734 = vmatprep.subr.mxu0 0.0
    %735 = vmatpush1.msra.mxu0 0.0
    %736 = vmatprep.subr.mxu0 0.0
    %737 = vmatpush1.msra.mxu0 0.0
    %738 = vmatprep.subr.mxu0 0.0
    %739 = vmatpush1.msra.mxu0 0.0
    %740 = vmatprep.subr.mxu0 0.0
    %741 = vmatpush1.msra.mxu0 0.0
    %742 = vmatprep.subr.mxu0 0.0
    %743 = vmatpush1.msra.mxu0 0.0
    %744 = vmatprep.subr.mxu0 0.0
    %745 = vmatpush1.msra.mxu0 0.0
    %746 = vmatprep.mubr.f32.mxu0 0.0
    %747 = vmatmul.mubr.f32.gmra.mrb[0].mxu0 0.0
    %v748 = vpop.f32.mrb[0].mxu0
    %v749 = vadd.f32 0.0, %v748
    %v750 = vpop.f32.mrb[0].mxu0
    %v751 = vadd.f32 0.0, %v750
    %752 = vdwg.mxu0
    %v753 = vadd.f32 %v452, %v678
    %v754 = vadd.f32 %v454, %v680
    %v755 = vadd.f32 %v565, %v749
    %v756 = vadd.f32 %v567, %v751
    %v757 = vmul.f32 %v753, 0.5
    %v758 = vtanh.pop %v757
    %v759 = vadd.f32 %v758, 1.0
    %v760 = vmul.f32 %v759, 0.5
    %v761 = vmul.f32 %v754, 0.5
    %v762 = vtanh.pop %v761
    %v763 = vadd.f32 %v762, 1.0
    %v764 = vmul.f32 %v763, 0.5
    %v765 = vtanh.pop %v755
    %v766 = vmul.f32 %v756, 0.5
    %v767 = vtanh.pop %v766
    %v768 = vadd.f32 %v767, 1.0
    %v769 = vmul.f32 %v768, 0.5
    %v770 = vmul.f32 %v764, 0.0
    %v771 = vmul.f32 %v760, %v765
    %v772 = vadd.f32 %v770, %v771
    %v773 = vtanh.pop %v772
    %v774 = vmul.f32 %v769, %v773
    %775 = vmatprep.subr.mxu0 %v149
    %776 = vmatpush1.msra.mxu0 %v148
    %777 = vmatprep.subr.mxu0 %v153
    %778 = vmatpush1.msra.mxu0 %v152
    %779 = vmatprep.subr.mxu0 %v157
    %780 = vmatpush1.msra.mxu0 %v156
    %781 = vmatprep.subr.mxu0 %v161
    %782 = vmatpush1.msra.mxu0 %v160
    %783 = vmatprep.subr.mxu0 %v165
    %784 = vmatpush1.msra.mxu0 %v164
    %785 = vmatprep.subr.mxu0 %v169
    %786 = vmatpush1.msra.mxu0 %v168
    %787 = vmatprep.subr.mxu0 %v173
    %788 = vmatpush1.msra.mxu0 %v172
    %789 = vmatprep.subr.mxu0 %v177
    %790 = vmatpush1.msra.mxu0 %v176
    %791 = vmatprep.subr.mxu0 %v181
    %792 = vmatpush1.msra.mxu0 %v180
    %793 = vmatprep.subr.mxu0 %v185
    %794 = vmatpush1.msra.mxu0 %v184
    %795 = vmatprep.subr.mxu0 %v189
    %796 = vmatpush1.msra.mxu0 %v188
    %797 = vmatprep.subr.mxu0 %v193
    %798 = vmatpush1.msra.mxu0 %v192
    %799 = vmatprep.subr.mxu0 %v197
    %800 = vmatpush1.msra.mxu0 %v196
    %801 = vmatprep.subr.mxu0 %v201
    %802 = vmatpush1.msra.mxu0 %v200
    %803 = vmatprep.subr.mxu0 %v205
    %804 = vmatpush1.msra.mxu0 %v204
    %805 = vmatprep.subr.mxu0 %v209
    %806 = vmatpush1.msra.mxu0 %v208
    %807 = vmatprep.subr.mxu0 %v213
    %808 = vmatpush1.msra.mxu0 %v212
    %809 = vmatprep.subr.mxu0 %v217
    %810 = vmatpush1.msra.mxu0 %v216
    %811 = vmatprep.subr.mxu0 %v221
    %812 = vmatpush1.msra.mxu0 %v220
    %813 = vmatprep.subr.mxu0 %v225
    %814 = vmatpush1.msra.mxu0 %v224
    %815 = vmatprep.subr.mxu0 %v229
    %816 = vmatpush1.msra.mxu0 %v228
    %817 = vmatprep.subr.mxu0 %v233
    %818 = vmatpush1.msra.mxu0 %v232
    %819 = vmatprep.subr.mxu0 %v237
    %820 = vmatpush1.msra.mxu0 %v236
    %821 = vmatprep.subr.mxu0 %v241
    %822 = vmatpush1.msra.mxu0 %v240
    %823 = vmatprep.subr.mxu0 %v245
    %824 = vmatpush1.msra.mxu0 %v244
    %825 = vmatprep.subr.mxu0 %v249
    %826 = vmatpush1.msra.mxu0 %v248
    %827 = vmatprep.subr.mxu0 %v253
    %828 = vmatpush1.msra.mxu0 %v252
    %829 = vmatprep.subr.mxu0 %v257
    %830 = vmatpush1.msra.mxu0 %v256
    %831 = vmatprep.subr.mxu0 %v261
    %832 = vmatpush1.msra.mxu0 %v260
    %833 = vmatprep.subr.mxu0 %v265
    %834 = vmatpush1.msra.mxu0 %v264
    %835 = vmatprep.subr.mxu0 %v269
    %836 = vmatpush1.msra.mxu0 %v268
    %837 = vmatprep.subr.mxu0 %v273
    %838 = vmatpush1.msra.mxu0 %v272
    %839 = vmatprep.mubr.f32.mxu0 0.0
    %840 = vmatmul.mubr.f32.gmra.mrb[0].mxu0 %v774
    %v841 = vpop.f32.mrb[0].mxu0
    %v842 = vadd.f32 %v281, %v841
    %v843 = vpop.f32.mrb[0].mxu0
    %v844 = vadd.f32 %v285, %v843
    %845 = vdwg.mxu0
    %846 = vmatprep.subr.mxu0 %v151
    %847 = vmatpush1.msra.mxu0 %v150
    %848 = vmatprep.subr.mxu0 %v155
    %849 = vmatpush1.msra.mxu0 %v154
    %850 = vmatprep.subr.mxu0 %v159
    %851 = vmatpush1.msra.mxu0 %v158
    %852 = vmatprep.subr.mxu0 %v163
    %853 = vmatpush1.msra.mxu0 %v162
    %854 = vmatprep.subr.mxu0 %v167
    %855 = vmatpush1.msra.mxu0 %v166
    %856 = vmatprep.subr.mxu0 %v171
    %857 = vmatpush1.msra.mxu0 %v170
    %858 = vmatprep.subr.mxu0 %v175
    %859 = vmatpush1.msra.mxu0 %v174
    %860 = vmatprep.subr.mxu0 %v179
    %861 = vmatpush1.msra.mxu0 %v178
    %862 = vmatprep.subr.mxu0 %v183
    %863 = vmatpush1.msra.mxu0 %v182
    %864 = vmatprep.subr.mxu0 %v187
    %865 = vmatpush1.msra.mxu0 %v186
    %866 = vmatprep.subr.mxu0 %v191
    %867 = vmatpush1.msra.mxu0 %v190
    %868 = vmatprep.subr.mxu0 %v195
    %869 = vmatpush1.msra.mxu0 %v194
    %870 = vmatprep.subr.mxu0 %v199
    %871 = vmatpush1.msra.mxu0 %v198
    %872 = vmatprep.subr.mxu0 %v203
    %873 = vmatpush1.msra.mxu0 %v202
    %874 = vmatprep.subr.mxu0 %v207
    %875 = vmatpush1.msra.mxu0 %v206
    %876 = vmatprep.subr.mxu0 %v211
    %877 = vmatpush1.msra.mxu0 %v210
    %878 = vmatprep.subr.mxu0 %v215
    %879 = vmatpush1.msra.mxu0 %v214
    %880 = vmatprep.subr.mxu0 %v219
    %881 = vmatpush1.msra.mxu0 %v218
    %882 = vmatprep.subr.mxu0 %v223
    %883 = vmatpush1.msra.mxu0 %v222
    %884 = vmatprep.subr.mxu0 %v227
    %885 = vmatpush1.msra.mxu0 %v226
    %886 = vmatprep.subr.mxu0 %v231
    %887 = vmatpush1.msra.mxu0 %v230
    %888 = vmatprep.subr.mxu0 %v235
    %889 = vmatpush1.msra.mxu0 %v234
    %890 = vmatprep.subr.mxu0 %v239
    %891 = vmatpush1.msra.mxu0 %v238
    %892 = vmatprep.subr.mxu0 %v243
    %893 = vmatpush1.msra.mxu0 %v242
    %894 = vmatprep.subr.mxu0 %v247
    %895 = vmatpush1.msra.mxu0 %v246
    %896 = vmatprep.subr.mxu0 %v251
    %897 = vmatpush1.msra.mxu0 %v250
    %898 = vmatprep.subr.mxu0 %v255
    %899 = vmatpush1.msra.mxu0 %v254
    %900 = vmatprep.subr.mxu0 %v259
    %901 = vmatpush1.msra.mxu0 %v258
    %902 = vmatprep.subr.mxu0 %v263
    %903 = vmatpush1.msra.mxu0 %v262
    %904 = vmatprep.subr.mxu0 %v267
    %905 = vmatpush1.msra.mxu0 %v266
    %906 = vmatprep.subr.mxu0 %v271
    %907 = vmatpush1.msra.mxu0 %v270
    %908 = vmatprep.subr.mxu0 %v275
    %909 = vmatpush1.msra.mxu0 %v274
    %910 = vmatprep.mubr.f32.mxu0 0.0
    %911 = vmatmul.mubr.f32.gmra.mrb[0].mxu0 %v774
    %v912 = vpop.f32.mrb[0].mxu0
    %v913 = vadd.f32 %v289, %v912
    %v914 = vpop.f32.mrb[0].mxu0
    %v915 = vadd.f32 %v293, %v914
    %916 = vdwg.mxu0
    %v917 = vmul.f32 %v842, 0.5
    %v918 = vtanh.pop %v917
    %v919 = vadd.f32 %v918, 1.0
    %v920 = vmul.f32 %v919, 0.5
    %v921 = vmul.f32 %v844, 0.5
    %v922 = vtanh.pop %v921
    %v923 = vadd.f32 %v922, 1.0
    %v924 = vmul.f32 %v923, 0.5
    %v925 = vtanh.pop %v913
    %v926 = vmul.f32 %v915, 0.5
    %v927 = vtanh.pop %v926
    %v928 = vadd.f32 %v927, 1.0
    %v929 = vmul.f32 %v928, 0.5
    %v930 = vmul.f32 %v924, 0.0
    %v931 = vmul.f32 %v920, %v925
    %v932 = vadd.f32 %v930, %v931
    %v933 = vtanh.pop %v932
    %v934 = vmul.f32 %v929, %v933
    %935 = vmatprep.subr.mxu0 %v85
    %936 = vmatpush1.msra.mxu0 %v84
    %937 = vmatprep.subr.mxu0 %v89
    %938 = vmatpush1.msra.mxu0 %v88
    %939 = vmatprep.subr.mxu0 %v93
    %940 = vmatpush1.msra.mxu0 %v92
    %941 = vmatprep.subr.mxu0 %v97
    %942 = vmatpush1.msra.mxu0 %v96
    %943 = vmatprep.subr.mxu0 %v101
    %944 = vmatpush1.msra.mxu0 %v100
    %945 = vmatprep.subr.mxu0 %v105
    %946 = vmatpush1.msra.mxu0 %v104
    %947 = vmatprep.subr.mxu0 %v109
    %948 = vmatpush1.msra.mxu0 %v108
    %949 = vmatprep.subr.mxu0 %v113
    %950 = vmatpush1.msra.mxu0 %v112
    %951 = vmatprep.subr.mxu0 %v117
    %952 = vmatpush1.msra.mxu0 %v116
    %953 = vmatprep.subr.mxu0 %v121
    %954 = vmatpush1.msra.mxu0 %v120
    %955 = vmatprep.subr.mxu0 %v125
    %956 = vmatpush1.msra.mxu0 %v124
    %957 = vmatprep.subr.mxu0 %v129
    %958 = vmatpush1.msra.mxu0 %v128
    %959 = vmatprep.subr.mxu0 %v133
    %960 = vmatpush1.msra.mxu0 %v132
    %961 = vmatprep.subr.mxu0 %v137
    %962 = vmatpush1.msra.mxu0 %v136
    %963 = vmatprep.subr.mxu0 %v141
    %964 = vmatpush1.msra.mxu0 %v140
    %965 = vmatprep.subr.mxu0 %v145
    %966 = vmatpush1.msra.mxu0 %v144
    %967 = vmatprep.subr.mxu0 0.0
    %968 = vmatpush1.msra.mxu0 0.0
    %969 = vmatprep.subr.mxu0 0.0
    %970 = vmatpush1.msra.mxu0 0.0
    %971 = vmatprep.subr.mxu0 0.0
    %972 = vmatpush1.msra.mxu0 0.0
    %973 = vmatprep.subr.mxu0 0.0
    %974 = vmatpush1.msra.mxu0 0.0
    %975 = vmatprep.subr.mxu0 0.0
    %976 = vmatpush1.msra.mxu0 0.0
    %977 = vmatprep.subr.mxu0 0.0
    %978 = vmatpush1.msra.mxu0 0.0
    %979 = vmatprep.subr.mxu0 0.0
    %980 = vmatpush1.msra.mxu0 0.0
    %981 = vmatprep.subr.mxu0 0.0
    %982 = vmatpush1.msra.mxu0 0.0
    %983 = vmatprep.subr.mxu0 0.0
    %984 = vmatpush1.msra.mxu0 0.0
    %985 = vmatprep.subr.mxu0 0.0
    %986 = vmatpush1.msra.mxu0 0.0
    %987 = vmatprep.subr.mxu0 0.0
    %988 = vmatpush1.msra.mxu0 0.0
    %989 = vmatprep.subr.mxu0 0.0
    %990 = vmatpush1.msra.mxu0 0.0
    %991 = vmatprep.subr.mxu0 0.0
    %992 = vmatpush1.msra.mxu0 0.0
    %993 = vmatprep.subr.mxu0 0.0
    %994 = vmatpush1.msra.mxu0 0.0
    %995 = vmatprep.subr.mxu0 0.0
    %996 = vmatpush1.msra.mxu0 0.0
    %997 = vmatprep.subr.mxu0 0.0
    %998 = vmatpush1.msra.mxu0 0.0
    %999 = vmatprep.mubr.f32.mxu0 0.0
    %1000 = vmatmul.mubr.f32.gmra.mrb[0].mxu0 %v774
    %v1001 = vpop.f32.mrb[0].mxu0
    %v1002 = vadd.f32 0.0, %v1001
    %v1003 = vpop.f32.mrb[0].mxu0
    %v1004 = vadd.f32 0.0, %v1003
    %1005 = vdwg.mxu0
    %1006 = vmatprep.subr.mxu0 %v87
    %1007 = vmatpush1.msra.mxu0 %v86
    %1008 = vmatprep.subr.mxu0 %v91
    %1009 = vmatpush1.msra.mxu0 %v90
    %1010 = vmatprep.subr.mxu0 %v95
    %1011 = vmatpush1.msra.mxu0 %v94
    %1012 = vmatprep.subr.mxu0 %v99
    %1013 = vmatpush1.msra.mxu0 %v98
    %1014 = vmatprep.subr.mxu0 %v103
    %1015 = vmatpush1.msra.mxu0 %v102
    %1016 = vmatprep.subr.mxu0 %v107
    %1017 = vmatpush1.msra.mxu0 %v106
    %1018 = vmatprep.subr.mxu0 %v111
    %1019 = vmatpush1.msra.mxu0 %v110
    %1020 = vmatprep.subr.mxu0 %v115
    %1021 = vmatpush1.msra.mxu0 %v114
    %1022 = vmatprep.subr.mxu0 %v119
    %1023 = vmatpush1.msra.mxu0 %v118
    %1024 = vmatprep.subr.mxu0 %v123
    %1025 = vmatpush1.msra.mxu0 %v122
    %1026 = vmatprep.subr.mxu0 %v127
    %1027 = vmatpush1.msra.mxu0 %v126
    %1028 = vmatprep.subr.mxu0 %v131
    %1029 = vmatpush1.msra.mxu0 %v130
    %1030 = vmatprep.subr.mxu0 %v135
    %1031 = vmatpush1.msra.mxu0 %v134
    %1032 = vmatprep.subr.mxu0 %v139
    %1033 = vmatpush1.msra.mxu0 %v138
    %1034 = vmatprep.subr.mxu0 %v143
    %1035 = vmatpush1.msra.mxu0 %v142
    %1036 = vmatprep.subr.mxu0 %v147
    %1037 = vmatpush1.msra.mxu0 %v146
    %1038 = vmatprep.subr.mxu0 0.0
    %1039 = vmatpush1.msra.mxu0 0.0
    %1040 = vmatprep.subr.mxu0 0.0
    %1041 = vmatpush1.msra.mxu0 0.0
    %1042 = vmatprep.subr.mxu0 0.0
    %1043 = vmatpush1.msra.mxu0 0.0
    %1044 = vmatprep.subr.mxu0 0.0
    %1045 = vmatpush1.msra.mxu0 0.0
    %1046 = vmatprep.subr.mxu0 0.0
    %1047 = vmatpush1.msra.mxu0 0.0
    %1048 = vmatprep.subr.mxu0 0.0
    %1049 = vmatpush1.msra.mxu0 0.0
    %1050 = vmatprep.subr.mxu0 0.0
    %1051 = vmatpush1.msra.mxu0 0.0
    %1052 = vmatprep.subr.mxu0 0.0
    %1053 = vmatpush1.msra.mxu0 0.0
    %1054 = vmatprep.subr.mxu0 0.0
    %1055 = vmatpush1.msra.mxu0 0.0
    %1056 = vmatprep.subr.mxu0 0.0
    %1057 = vmatpush1.msra.mxu0 0.0
    %1058 = vmatprep.subr.mxu0 0.0
    %1059 = vmatpush1.msra.mxu0 0.0
    %1060 = vmatprep.subr.mxu0 0.0
    %1061 = vmatpush1.msra.mxu0 0.0
    %1062 = vmatprep.subr.mxu0 0.0
    %1063 = vmatpush1.msra.mxu0 0.0
    %1064 = vmatprep.subr.mxu0 0.0
    %1065 = vmatpush1.msra.mxu0 0.0
    %1066 = vmatprep.subr.mxu0 0.0
    %1067 = vmatpush1.msra.mxu0 0.0
    %1068 = vmatprep.subr.mxu0 0.0
    %1069 = vmatpush1.msra.mxu0 0.0
    %1070 = vmatprep.mubr.f32.mxu0 0.0
    %1071 = vmatmul.mubr.f32.gmra.mrb[0].mxu0 %v774
    %v1072 = vpop.f32.mrb[0].mxu0
    %v1073 = vadd.f32 0.0, %v1072
    %v1074 = vpop.f32.mrb[0].mxu0
    %v1075 = vadd.f32 0.0, %v1074
    %1076 = vdwg.mxu0
    %v1077 = vadd.f32 %v458, %v1002
    %v1078 = vadd.f32 %v460, %v1004
    %v1079 = vadd.f32 %v571, %v1073
    %v1080 = vadd.f32 %v573, %v1075
    %v1081 = vmul.f32 %v1077, 0.5
    %v1082 = vtanh.pop %v1081
    %v1083 = vadd.f32 %v1082, 1.0
    %v1084 = vmul.f32 %v1083, 0.5
    %v1085 = vmul.f32 %v1078, 0.5
    %v1086 = vtanh.pop %v1085
    %v1087 = vadd.f32 %v1086, 1.0
    %v1088 = vmul.f32 %v1087, 0.5
    %v1089 = vtanh.pop %v1079
    %v1090 = vmul.f32 %v1080, 0.5
    %v1091 = vtanh.pop %v1090
    %v1092 = vadd.f32 %v1091, 1.0
    %v1093 = vmul.f32 %v1092, 0.5
    %v1094 = vmul.f32 %v1088, %v772
    %v1095 = vmul.f32 %v1084, %v1089
    %v1096 = vadd.f32 %v1094, %v1095
    %v1097 = vtanh.pop %v1096
    %v1098 = vmul.f32 %v1093, %v1097
    %1099 = vmatprep.subr.mxu0 %v149
    %1100 = vmatpush1.msra.mxu0 %v148
    %1101 = vmatprep.subr.mxu0 %v153
    %1102 = vmatpush1.msra.mxu0 %v152
    %1103 = vmatprep.subr.mxu0 %v157
    %1104 = vmatpush1.msra.mxu0 %v156
    %1105 = vmatprep.subr.mxu0 %v161
    %1106 = vmatpush1.msra.mxu0 %v160
    %1107 = vmatprep.subr.mxu0 %v165
    %1108 = vmatpush1.msra.mxu0 %v164
    %1109 = vmatprep.subr.mxu0 %v169
    %1110 = vmatpush1.msra.mxu0 %v168
    %1111 = vmatprep.subr.mxu0 %v173
    %1112 = vmatpush1.msra.mxu0 %v172
    %1113 = vmatprep.subr.mxu0 %v177
    %1114 = vmatpush1.msra.mxu0 %v176
    %1115 = vmatprep.subr.mxu0 %v181
    %1116 = vmatpush1.msra.mxu0 %v180
    %1117 = vmatprep.subr.mxu0 %v185
    %1118 = vmatpush1.msra.mxu0 %v184
    %1119 = vmatprep.subr.mxu0 %v189
    %1120 = vmatpush1.msra.mxu0 %v188
    %1121 = vmatprep.subr.mxu0 %v193
    %1122 = vmatpush1.msra.mxu0 %v192
    %1123 = vmatprep.subr.mxu0 %v197
    %1124 = vmatpush1.msra.mxu0 %v196
    %1125 = vmatprep.subr.mxu0 %v201
    %1126 = vmatpush1.msra.mxu0 %v200
    %1127 = vmatprep.subr.mxu0 %v205
    %1128 = vmatpush1.msra.mxu0 %v204
    %1129 = vmatprep.subr.mxu0 %v209
    %1130 = vmatpush1.msra.mxu0 %v208
    %1131 = vmatprep.subr.mxu0 %v213
    %1132 = vmatpush1.msra.mxu0 %v212
    %1133 = vmatprep.subr.mxu0 %v217
    %1134 = vmatpush1.msra.mxu0 %v216
    %1135 = vmatprep.subr.mxu0 %v221
    %1136 = vmatpush1.msra.mxu0 %v220
    %1137 = vmatprep.subr.mxu0 %v225
    %1138 = vmatpush1.msra.mxu0 %v224
    %1139 = vmatprep.subr.mxu0 %v229
    %1140 = vmatpush1.msra.mxu0 %v228
    %1141 = vmatprep.subr.mxu0 %v233
    %1142 = vmatpush1.msra.mxu0 %v232
    %1143 = vmatprep.subr.mxu0 %v237
    %1144 = vmatpush1.msra.mxu0 %v236
    %1145 = vmatprep.subr.mxu0 %v241
    %1146 = vmatpush1.msra.mxu0 %v240
    %1147 = vmatprep.subr.mxu0 %v245
    %1148 = vmatpush1.msra.mxu0 %v244
    %1149 = vmatprep.subr.mxu0 %v249
    %1150 = vmatpush1.msra.mxu0 %v248
    %1151 = vmatprep.subr.mxu0 %v253
    %1152 = vmatpush1.msra.mxu0 %v252
    %1153 = vmatprep.subr.mxu0 %v257
    %1154 = vmatpush1.msra.mxu0 %v256
    %1155 = vmatprep.subr.mxu0 %v261
    %1156 = vmatpush1.msra.mxu0 %v260
    %1157 = vmatprep.subr.mxu0 %v265
    %1158 = vmatpush1.msra.mxu0 %v264
    %1159 = vmatprep.subr.mxu0 %v269
    %1160 = vmatpush1.msra.mxu0 %v268
    %1161 = vmatprep.subr.mxu0 %v273
    %1162 = vmatpush1.msra.mxu0 %v272
    %1163 = vmatprep.mubr.f32.mxu0 %v934
    %1164 = vmatmul.mubr.f32.gmra.mrb[0].mxu0 %v1098
    %v1165 = vpop.f32.mrb[0].mxu0
    %v1166 = vadd.f32 %v281, %v1165
    %v1167 = vpop.f32.mrb[0].mxu0
    %v1168 = vadd.f32 %v285, %v1167
    %1169 = vdwg.mxu0
    %1170 = vmatprep.subr.mxu0 %v151
    %1171 = vmatpush1.msra.mxu0 %v150
    %1172 = vmatprep.subr.mxu0 %v155
    %1173 = vmatpush1.msra.mxu0 %v154
    %1174 = vmatprep.subr.mxu0 %v159
    %1175 = vmatpush1.msra.mxu0 %v158
    %1176 = vmatprep.subr.mxu0 %v163
    %1177 = vmatpush1.msra.mxu0 %v162
    %1178 = vmatprep.subr.mxu0 %v167
    %1179 = vmatpush1.msra.mxu0 %v166
    %1180 = vmatprep.subr.mxu0 %v171
    %1181 = vmatpush1.msra.mxu0 %v170
    %1182 = vmatprep.subr.mxu0 %v175
    %1183 = vmatpush1.msra.mxu0 %v174
    %1184 = vmatprep.subr.mxu0 %v179
    %1185 = vmatpush1.msra.mxu0 %v178
    %1186 = vmatprep.subr.mxu0 %v183
    %1187 = vmatpush1.msra.mxu0 %v182
    %1188 = vmatprep.subr.mxu0 %v187
    %1189 = vmatpush1.msra.mxu0 %v186
    %1190 = vmatprep.subr.mxu0 %v191
    %1191 = vmatpush1.msra.mxu0 %v190
    %1192 = vmatprep.subr.mxu0 %v195
    %1193 = vmatpush1.msra.mxu0 %v194
    %1194 = vmatprep.subr.mxu0 %v199
    %1195 = vmatpush1.msra.mxu0 %v198
    %1196 = vmatprep.subr.mxu0 %v203
    %1197 = vmatpush1.msra.mxu0 %v202
    %1198 = vmatprep.subr.mxu0 %v207
    %1199 = vmatpush1.msra.mxu0 %v206
    %1200 = vmatprep.subr.mxu0 %v211
    %1201 = vmatpush1.msra.mxu0 %v210
    %1202 = vmatprep.subr.mxu0 %v215
    %1203 = vmatpush1.msra.mxu0 %v214
    %1204 = vmatprep.subr.mxu0 %v219
    %1205 = vmatpush1.msra.mxu0 %v218
    %1206 = vmatprep.subr.mxu0 %v223
    %1207 = vmatpush1.msra.mxu0 %v222
    %1208 = vmatprep.subr.mxu0 %v227
    %1209 = vmatpush1.msra.mxu0 %v226
    %1210 = vmatprep.subr.mxu0 %v231
    %1211 = vmatpush1.msra.mxu0 %v230
    %1212 = vmatprep.subr.mxu0 %v235
    %1213 = vmatpush1.msra.mxu0 %v234
    %1214 = vmatprep.subr.mxu0 %v239
    %1215 = vmatpush1.msra.mxu0 %v238
    %1216 = vmatprep.subr.mxu0 %v243
    %1217 = vmatpush1.msra.mxu0 %v242
    %1218 = vmatprep.subr.mxu0 %v247
    %1219 = vmatpush1.msra.mxu0 %v246
    %1220 = vmatprep.subr.mxu0 %v251
    %1221 = vmatpush1.msra.mxu0 %v250
    %1222 = vmatprep.subr.mxu0 %v255
    %1223 = vmatpush1.msra.mxu0 %v254
    %1224 = vmatprep.subr.mxu0 %v259
    %1225 = vmatpush1.msra.mxu0 %v258
    %1226 = vmatprep.subr.mxu0 %v263
    %1227 = vmatpush1.msra.mxu0 %v262
    %1228 = vmatprep.subr.mxu0 %v267
    %1229 = vmatpush1.msra.mxu0 %v266
    %1230 = vmatprep.subr.mxu0 %v271
    %1231 = vmatpush1.msra.mxu0 %v270
    %1232 = vmatprep.subr.mxu0 %v275
    %1233 = vmatpush1.msra.mxu0 %v274
    %1234 = vmatprep.mubr.f32.mxu0 %v934
    %1235 = vmatmul.mubr.f32.gmra.mrb[0].mxu0 %v1098
    %v1236 = vpop.f32.mrb[0].mxu0
    %v1237 = vadd.f32 %v289, %v1236
    %v1238 = vpop.f32.mrb[0].mxu0
    %v1239 = vadd.f32 %v293, %v1238
    %1240 = vdwg.mxu0
    %v1241 = vmul.f32 %v1166, 0.5
    %v1242 = vtanh.pop %v1241
    %v1243 = vadd.f32 %v1242, 1.0
    %v1244 = vmul.f32 %v1243, 0.5
    %v1245 = vmul.f32 %v1168, 0.5
    %v1246 = vtanh.pop %v1245
    %v1247 = vadd.f32 %v1246, 1.0
    %v1248 = vmul.f32 %v1247, 0.5
    %v1249 = vtanh.pop %v1237
    %v1250 = vmul.f32 %v1239, 0.5
    %v1251 = vtanh.pop %v1250
    %v1252 = vadd.f32 %v1251, 1.0
    %v1253 = vmul.f32 %v1252, 0.5
    %v1254 = vmul.f32 %v1248, %v932
    %v1255 = vmul.f32 %v1244, %v1249
    %v1256 = vadd.f32 %v1254, %v1255
    %v1257 = vtanh.pop %v1256
    %v1258 = vmul.f32 %v1253, %v1257
    %1259 = vmatprep.subr.mxu0 %v85
    %1260 = vmatpush1.msra.mxu0 %v84
    %1261 = vmatprep.subr.mxu0 %v89
    %1262 = vmatpush1.msra.mxu0 %v88
    %1263 = vmatprep.subr.mxu0 %v93
    %1264 = vmatpush1.msra.mxu0 %v92
    %1265 = vmatprep.subr.mxu0 %v97
    %1266 = vmatpush1.msra.mxu0 %v96
    %1267 = vmatprep.subr.mxu0 %v101
    %1268 = vmatpush1.msra.mxu0 %v100
    %1269 = vmatprep.subr.mxu0 %v105
    %1270 = vmatpush1.msra.mxu0 %v104
    %1271 = vmatprep.subr.mxu0 %v109
    %1272 = vmatpush1.msra.mxu0 %v108
    %1273 = vmatprep.subr.mxu0 %v113
    %1274 = vmatpush1.msra.mxu0 %v112
    %1275 = vmatprep.subr.mxu0 %v117
    %1276 = vmatpush1.msra.mxu0 %v116
    %1277 = vmatprep.subr.mxu0 %v121
    %1278 = vmatpush1.msra.mxu0 %v120
    %1279 = vmatprep.subr.mxu0 %v125
    %1280 = vmatpush1.msra.mxu0 %v124
    %1281 = vmatprep.subr.mxu0 %v129
    %1282 = vmatpush1.msra.mxu0 %v128
    %1283 = vmatprep.subr.mxu0 %v133
    %1284 = vmatpush1.msra.mxu0 %v132
    %1285 = vmatprep.subr.mxu0 %v137
    %1286 = vmatpush1.msra.mxu0 %v136
    %1287 = vmatprep.subr.mxu0 %v141
    %1288 = vmatpush1.msra.mxu0 %v140
    %1289 = vmatprep.subr.mxu0 %v145
    %1290 = vmatpush1.msra.mxu0 %v144
    %1291 = vmatprep.subr.mxu0 0.0
    %1292 = vmatpush1.msra.mxu0 0.0
    %1293 = vmatprep.subr.mxu0 0.0
    %1294 = vmatpush1.msra.mxu0 0.0
    %1295 = vmatprep.subr.mxu0 0.0
    %1296 = vmatpush1.msra.mxu0 0.0
    %1297 = vmatprep.subr.mxu0 0.0
    %1298 = vmatpush1.msra.mxu0 0.0
    %1299 = vmatprep.subr.mxu0 0.0
    %1300 = vmatpush1.msra.mxu0 0.0
    %1301 = vmatprep.subr.mxu0 0.0
    %1302 = vmatpush1.msra.mxu0 0.0
    %1303 = vmatprep.subr.mxu0 0.0
    %1304 = vmatpush1.msra.mxu0 0.0
    %1305 = vmatprep.subr.mxu0 0.0
    %1306 = vmatpush1.msra.mxu0 0.0
    %1307 = vmatprep.subr.mxu0 0.0
    %1308 = vmatpush1.msra.mxu0 0.0
    %1309 = vmatprep.subr.mxu0 0.0
    %1310 = vmatpush1.msra.mxu0 0.0
    %1311 = vmatprep.subr.mxu0 0.0
    %1312 = vmatpush1.msra.mxu0 0.0
    %1313 = vmatprep.subr.mxu0 0.0
    %1314 = vmatpush1.msra.mxu0 0.0
    %1315 = vmatprep.subr.mxu0 0.0
    %1316 = vmatpush1.msra.mxu0 0.0
    %1317 = vmatprep.subr.mxu0 0.0
    %1318 = vmatpush1.msra.mxu0 0.0
    %1319 = vmatprep.subr.mxu0 0.0
    %1320 = vmatpush1.msra.mxu0 0.0
    %1321 = vmatprep.subr.mxu0 0.0
    %1322 = vmatpush1.msra.mxu0 0.0
    %1323 = vmatprep.mubr.f32.mxu0 0.0
    %1324 = vmatmul.mubr.f32.gmra.mrb[0].mxu0 %v1098
    %v1325 = vpop.f32.mrb[0].mxu0
    %v1326 = vadd.f32 0.0, %v1325
    %v1327 = vpop.f32.mrb[0].mxu0
    %v1328 = vadd.f32 0.0, %v1327
    %1329 = vdwg.mxu0
    %1330 = vmatprep.subr.mxu0 %v87
    %1331 = vmatpush1.msra.mxu0 %v86
    %1332 = vmatprep.subr.mxu0 %v91
    %1333 = vmatpush1.msra.mxu0 %v90
    %1334 = vmatprep.subr.mxu0 %v95
    %1335 = vmatpush1.msra.mxu0 %v94
    %1336 = vmatprep.subr.mxu0 %v99
    %1337 = vmatpush1.msra.mxu0 %v98
    %1338 = vmatprep.subr.mxu0 %v103
    %1339 = vmatpush1.msra.mxu0 %v102
    %1340 = vmatprep.subr.mxu0 %v107
    %1341 = vmatpush1.msra.mxu0 %v106
    %1342 = vmatprep.subr.mxu0 %v111
    %1343 = vmatpush1.msra.mxu0 %v110
    %1344 = vmatprep.subr.mxu0 %v115
    %1345 = vmatpush1.msra.mxu0 %v114
    %1346 = vmatprep.subr.mxu0 %v119
    %1347 = vmatpush1.msra.mxu0 %v118
    %1348 = vmatprep.subr.mxu0 %v123
    %1349 = vmatpush1.msra.mxu0 %v122
    %1350 = vmatprep.subr.mxu0 %v127
    %1351 = vmatpush1.msra.mxu0 %v126
    %1352 = vmatprep.subr.mxu0 %v131
    %1353 = vmatpush1.msra.mxu0 %v130
    %1354 = vmatprep.subr.mxu0 %v135
    %1355 = vmatpush1.msra.mxu0 %v134
    %1356 = vmatprep.subr.mxu0 %v139
    %1357 = vmatpush1.msra.mxu0 %v138
    %1358 = vmatprep.subr.mxu0 %v143
    %1359 = vmatpush1.msra.mxu0 %v142
    %1360 = vmatprep.subr.mxu0 %v147
    %1361 = vmatpush1.msra.mxu0 %v146
    %1362 = vmatprep.subr.mxu0 0.0
    %1363 = vmatpush1.msra.mxu0 0.0
    %1364 = vmatprep.subr.mxu0 0.0
    %1365 = vmatpush1.msra.mxu0 0.0
    %1366 = vmatprep.subr.mxu0 0.0
    %1367 = vmatpush1.msra.mxu0 0.0
    %1368 = vmatprep.subr.mxu0 0.0
    %1369 = vmatpush1.msra.mxu0 0.0
    %1370 = vmatprep.subr.mxu0 0.0
    %1371 = vmatpush1.msra.mxu0 0.0
    %1372 = vmatprep.subr.mxu0 0.0
    %1373 = vmatpush1.msra.mxu0 0.0
    %1374 = vmatprep.subr.mxu0 0.0
    %1375 = vmatpush1.msra.mxu0 0.0
    %1376 = vmatprep.subr.mxu0 0.0
    %1377 = vmatpush1.msra.mxu0 0.0
    %1378 = vmatprep.subr.mxu0 0.0
    %1379 = vmatpush1.msra.mxu0 0.0
    %1380 = vmatprep.subr.mxu0 0.0
    %1381 = vmatpush1.msra.mxu0 0.0
    %1382 = vmatprep.subr.mxu0 0.0
    %1383 = vmatpush1.msra.mxu0 0.0
    %1384 = vmatprep.subr.mxu0 0.0
    %1385 = vmatpush1.msra.mxu0 0.0
    %1386 = vmatprep.subr.mxu0 0.0
    %1387 = vmatpush1.msra.mxu0 0.0
    %1388 = vmatprep.subr.mxu0 0.0
    %1389 = vmatpush1.msra.mxu0 0.0
    %1390 = vmatprep.subr.mxu0 0.0
    %1391 = vmatpush1.msra.mxu0 0.0
    %1392 = vmatprep.subr.mxu0 0.0
    %1393 = vmatpush1.msra.mxu0 0.0
    %1394 = vmatprep.mubr.f32.mxu0 0.0
    %1395 = vmatmul.mubr.f32.gmra.mrb[0].mxu0 %v1098
    %v1396 = vpop.f32.mrb[0].mxu0
    %v1397 = vadd.f32 0.0, %v1396
    %v1398 = vpop.f32.mrb[0].mxu0
    %v1399 = vadd.f32 0.0, %v1398
    %1400 = vdwg.mxu0
    %v1401 = vadd.f32 %v464, %v1326
    %v1402 = vadd.f32 %v466, %v1328
    %v1403 = vadd.f32 %v577, %v1397
    %v1404 = vadd.f32 %v579, %v1399
    %v1405 = vmul.f32 %v1401, 0.5
    %v1406 = vtanh.pop %v1405
    %v1407 = vadd.f32 %v1406, 1.0
    %v1408 = vmul.f32 %v1407, 0.5
    %v1409 = vmul.f32 %v1402, 0.5
    %v1410 = vtanh.pop %v1409
    %v1411 = vadd.f32 %v1410, 1.0
    %v1412 = vmul.f32 %v1411, 0.5
    %v1413 = vtanh.pop %v1403
    %v1414 = vmul.f32 %v1404, 0.5
    %v1415 = vtanh.pop %v1414
    %v1416 = vadd.f32 %v1415, 1.0
    %v1417 = vmul.f32 %v1416, 0.5
    %v1418 = vmul.f32 %v1412, %v1096
    %v1419 = vmul.f32 %v1408, %v1413
    %v1420 = vadd.f32 %v1418, %v1419
    %v1421 = vtanh.pop %v1420
    %v1422 = vmul.f32 %v1417, %v1421
    %1423 = vmatprep.subr.mxu0 %v149
    %1424 = vmatpush1.msra.mxu0 %v148
    %1425 = vmatprep.subr.mxu0 %v153
    %1426 = vmatpush1.msra.mxu0 %v152
    %1427 = vmatprep.subr.mxu0 %v157
    %1428 = vmatpush1.msra.mxu0 %v156
    %1429 = vmatprep.subr.mxu0 %v161
    %1430 = vmatpush1.msra.mxu0 %v160
    %1431 = vmatprep.subr.mxu0 %v165
    %1432 = vmatpush1.msra.mxu0 %v164
    %1433 = vmatprep.subr.mxu0 %v169
    %1434 = vmatpush1.msra.mxu0 %v168
    %1435 = vmatprep.subr.mxu0 %v173
    %1436 = vmatpush1.msra.mxu0 %v172
    %1437 = vmatprep.subr.mxu0 %v177
    %1438 = vmatpush1.msra.mxu0 %v176
    %1439 = vmatprep.subr.mxu0 %v181
    %1440 = vmatpush1.msra.mxu0 %v180
    %1441 = vmatprep.subr.mxu0 %v185
    %1442 = vmatpush1.msra.mxu0 %v184
    %1443 = vmatprep.subr.mxu0 %v189
    %1444 = vmatpush1.msra.mxu0 %v188
    %1445 = vmatprep.subr.mxu0 %v193
    %1446 = vmatpush1.msra.mxu0 %v192
    %1447 = vmatprep.subr.mxu0 %v197
    %1448 = vmatpush1.msra.mxu0 %v196
    %1449 = vmatprep.subr.mxu0 %v201
    %1450 = vmatpush1.msra.mxu0 %v200
    %1451 = vmatprep.subr.mxu0 %v205
    %1452 = vmatpush1.msra.mxu0 %v204
    %1453 = vmatprep.subr.mxu0 %v209
    %1454 = vmatpush1.msra.mxu0 %v208
    %1455 = vmatprep.subr.mxu0 %v213
    %1456 = vmatpush1.msra.mxu0 %v212
    %1457 = vmatprep.subr.mxu0 %v217
    %1458 = vmatpush1.msra.mxu0 %v216
    %1459 = vmatprep.subr.mxu0 %v221
    %1460 = vmatpush1.msra.mxu0 %v220
    %1461 = vmatprep.subr.mxu0 %v225
    %1462 = vmatpush1.msra.mxu0 %v224
    %1463 = vmatprep.subr.mxu0 %v229
    %1464 = vmatpush1.msra.mxu0 %v228
    %1465 = vmatprep.subr.mxu0 %v233
    %1466 = vmatpush1.msra.mxu0 %v232
    %1467 = vmatprep.subr.mxu0 %v237
    %1468 = vmatpush1.msra.mxu0 %v236
    %1469 = vmatprep.subr.mxu0 %v241
    %1470 = vmatpush1.msra.mxu0 %v240
    %1471 = vmatprep.subr.mxu0 %v245
    %1472 = vmatpush1.msra.mxu0 %v244
    %1473 = vmatprep.subr.mxu0 %v249
    %1474 = vmatpush1.msra.mxu0 %v248
    %1475 = vmatprep.subr.mxu0 %v253
    %1476 = vmatpush1.msra.mxu0 %v252
    %1477 = vmatprep.subr.mxu0 %v257
    %1478 = vmatpush1.msra.mxu0 %v256
    %1479 = vmatprep.subr.mxu0 %v261
    %1480 = vmatpush1.msra.mxu0 %v260
    %1481 = vmatprep.subr.mxu0 %v265
    %1482 = vmatpush1.msra.mxu0 %v264
    %1483 = vmatprep.subr.mxu0 %v269
    %1484 = vmatpush1.msra.mxu0 %v268
    %1485 = vmatprep.subr.mxu0 %v273
    %1486 = vmatpush1.msra.mxu0 %v272
    %1487 = vmatprep.mubr.f32.mxu0 %v1258
    %1488 = vmatmul.mubr.f32.gmra.mrb[0].mxu0 %v1422
    %v1489 = vpop.f32.mrb[0].mxu0
    %v1490 = vadd.f32 %v281, %v1489
    %v1491 = vpop.f32.mrb[0].mxu0
    %v1492 = vadd.f32 %v285, %v1491
    %1493 = vdwg.mxu0
    %1494 = vmatprep.subr.mxu0 %v151
    %1495 = vmatpush1.msra.mxu0 %v150
    %1496 = vmatprep.subr.mxu0 %v155
    %1497 = vmatpush1.msra.mxu0 %v154
    %1498 = vmatprep.subr.mxu0 %v159
    %1499 = vmatpush1.msra.mxu0 %v158
    %1500 = vmatprep.subr.mxu0 %v163
    %1501 = vmatpush1.msra.mxu0 %v162
    %1502 = vmatprep.subr.mxu0 %v167
    %1503 = vmatpush1.msra.mxu0 %v166
    %1504 = vmatprep.subr.mxu0 %v171
    %1505 = vmatpush1.msra.mxu0 %v170
    %1506 = vmatprep.subr.mxu0 %v175
    %1507 = vmatpush1.msra.mxu0 %v174
    %1508 = vmatprep.subr.mxu0 %v179
    %1509 = vmatpush1.msra.mxu0 %v178
    %1510 = vmatprep.subr.mxu0 %v183
    %1511 = vmatpush1.msra.mxu0 %v182
    %1512 = vmatprep.subr.mxu0 %v187
    %1513 = vmatpush1.msra.mxu0 %v186
    %1514 = vmatprep.subr.mxu0 %v191
    %1515 = vmatpush1.msra.mxu0 %v190
    %1516 = vmatprep.subr.mxu0 %v195
    %1517 = vmatpush1.msra.mxu0 %v194
    %1518 = vmatprep.subr.mxu0 %v199
    %1519 = vmatpush1.msra.mxu0 %v198
    %1520 = vmatprep.subr.mxu0 %v203
    %1521 = vmatpush1.msra.mxu0 %v202
    %1522 = vmatprep.subr.mxu0 %v207
    %1523 = vmatpush1.msra.mxu0 %v206
    %1524 = vmatprep.subr.mxu0 %v211
    %1525 = vmatpush1.msra.mxu0 %v210
    %1526 = vmatprep.subr.mxu0 %v215
    %1527 = vmatpush1.msra.mxu0 %v214
    %1528 = vmatprep.subr.mxu0 %v219
    %1529 = vmatpush1.msra.mxu0 %v218
    %1530 = vmatprep.subr.mxu0 %v223
    %1531 = vmatpush1.msra.mxu0 %v222
    %1532 = vmatprep.subr.mxu0 %v227
    %1533 = vmatpush1.msra.mxu0 %v226
    %1534 = vmatprep.subr.mxu0 %v231
    %1535 = vmatpush1.msra.mxu0 %v230
    %1536 = vmatprep.subr.mxu0 %v235
    %1537 = vmatpush1.msra.mxu0 %v234
    %1538 = vmatprep.subr.mxu0 %v239
    %1539 = vmatpush1.msra.mxu0 %v238
    %1540 = vmatprep.subr.mxu0 %v243
    %1541 = vmatpush1.msra.mxu0 %v242
    %1542 = vmatprep.subr.mxu0 %v247
    %1543 = vmatpush1.msra.mxu0 %v246
    %1544 = vmatprep.subr.mxu0 %v251
    %1545 = vmatpush1.msra.mxu0 %v250
    %1546 = vmatprep.subr.mxu0 %v255
    %1547 = vmatpush1.msra.mxu0 %v254
    %1548 = vmatprep.subr.mxu0 %v259
    %1549 = vmatpush1.msra.mxu0 %v258
    %1550 = vmatprep.subr.mxu0 %v263
    %1551 = vmatpush1.msra.mxu0 %v262
    %1552 = vmatprep.subr.mxu0 %v267
    %1553 = vmatpush1.msra.mxu0 %v266
    %1554 = vmatprep.subr.mxu0 %v271
    %1555 = vmatpush1.msra.mxu0 %v270
    %1556 = vmatprep.subr.mxu0 %v275
    %1557 = vmatpush1.msra.mxu0 %v274
    %1558 = vmatprep.mubr.f32.mxu0 %v1258
    %1559 = vmatmul.mubr.f32.gmra.mrb[0].mxu0 %v1422
    %v1560 = vpop.f32.mrb[0].mxu0
    %v1561 = vadd.f32 %v289, %v1560
    %v1562 = vpop.f32.mrb[0].mxu0
    %v1563 = vadd.f32 %v293, %v1562
    %1564 = vdwg.mxu0
    %v1565 = vmul.f32 %v1490, 0.5
    %v1566 = vtanh.pop %v1565
    %v1567 = vadd.f32 %v1566, 1.0
    %v1568 = vmul.f32 %v1567, 0.5
    %v1569 = vmul.f32 %v1492, 0.5
    %v1570 = vtanh.pop %v1569
    %v1571 = vadd.f32 %v1570, 1.0
    %v1572 = vmul.f32 %v1571, 0.5
    %v1573 = vtanh.pop %v1561
    %v1574 = vmul.f32 %v1563, 0.5
    %v1575 = vtanh.pop %v1574
    %v1576 = vadd.f32 %v1575, 1.0
    %v1577 = vmul.f32 %v1576, 0.5
    %v1578 = vmul.f32 %v1572, %v1256
    %v1579 = vmul.f32 %v1568, %v1573
    %v1580 = vadd.f32 %v1578, %v1579
    %v1581 = vtanh.pop %v1580
    %v1582 = vmul.f32 %v1577, %v1581
    %1583 = vmatprep.subr.mxu0 %v85
    %1584 = vmatpush1.msra.mxu0 %v84
    %1585 = vmatprep.subr.mxu0 %v89
    %1586 = vmatpush1.msra.mxu0 %v88
    %1587 = vmatprep.subr.mxu0 %v93
    %1588 = vmatpush1.msra.mxu0 %v92
    %1589 = vmatprep.subr.mxu0 %v97
    %1590 = vmatpush1.msra.mxu0 %v96
    %1591 = vmatprep.subr.mxu0 %v101
    %1592 = vmatpush1.msra.mxu0 %v100
    %1593 = vmatprep.subr.mxu0 %v105
    %1594 = vmatpush1.msra.mxu0 %v104
    %1595 = vmatprep.subr.mxu0 %v109
    %1596 = vmatpush1.msra.mxu0 %v108
    %1597 = vmatprep.subr.mxu0 %v113
    %1598 = vmatpush1.msra.mxu0 %v112
    %1599 = vmatprep.subr.mxu0 %v117
    %1600 = vmatpush1.msra.mxu0 %v116
    %1601 = vmatprep.subr.mxu0 %v121
    %1602 = vmatpush1.msra.mxu0 %v120
    %1603 = vmatprep.subr.mxu0 %v125
    %1604 = vmatpush1.msra.mxu0 %v124
    %1605 = vmatprep.subr.mxu0 %v129
    %1606 = vmatpush1.msra.mxu0 %v128
    %1607 = vmatprep.subr.mxu0 %v133
    %1608 = vmatpush1.msra.mxu0 %v132
    %1609 = vmatprep.subr.mxu0 %v137
    %1610 = vmatpush1.msra.mxu0 %v136
    %1611 = vmatprep.subr.mxu0 %v141
    %1612 = vmatpush1.msra.mxu0 %v140
    %1613 = vmatprep.subr.mxu0 %v145
    %1614 = vmatpush1.msra.mxu0 %v144
    %1615 = vmatprep.subr.mxu0 0.0
    %1616 = vmatpush1.msra.mxu0 0.0
    %1617 = vmatprep.subr.mxu0 0.0
    %1618 = vmatpush1.msra.mxu0 0.0
    %1619 = vmatprep.subr.mxu0 0.0
    %1620 = vmatpush1.msra.mxu0 0.0
    %1621 = vmatprep.subr.mxu0 0.0
    %1622 = vmatpush1.msra.mxu0 0.0
    %1623 = vmatprep.subr.mxu0 0.0
    %1624 = vmatpush1.msra.mxu0 0.0
    %1625 = vmatprep.subr.mxu0 0.0
    %1626 = vmatpush1.msra.mxu0 0.0
    %1627 = vmatprep.subr.mxu0 0.0
    %1628 = vmatpush1.msra.mxu0 0.0
    %1629 = vmatprep.subr.mxu0 0.0
    %1630 = vmatpush1.msra.mxu0 0.0
    %1631 = vmatprep.subr.mxu0 0.0
    %1632 = vmatpush1.msra.mxu0 0.0
    %1633 = vmatprep.subr.mxu0 0.0
    %1634 = vmatpush1.msra.mxu0 0.0
    %1635 = vmatprep.subr.mxu0 0.0
    %1636 = vmatpush1.msra.mxu0 0.0
    %1637 = vmatprep.subr.mxu0 0.0
    %1638 = vmatpush1.msra.mxu0 0.0
    %1639 = vmatprep.subr.mxu0 0.0
    %1640 = vmatpush1.msra.mxu0 0.0
    %1641 = vmatprep.subr.mxu0 0.0
    %1642 = vmatpush1.msra.mxu0 0.0
    %1643 = vmatprep.subr.mxu0 0.0
    %1644 = vmatpush1.msra.mxu0 0.0
    %1645 = vmatprep.subr.mxu0 0.0
    %1646 = vmatpush1.msra.mxu0 0.0
    %1647 = vmatprep.mubr.f32.mxu0 0.0
    %1648 = vmatmul.mubr.f32.gmra.mrb[0].mxu0 %v1422
    %v1649 = vpop.f32.mrb[0].mxu0
    %v1650 = vadd.f32 0.0, %v1649
    %v1651 = vpop.f32.mrb[0].mxu0
    %v1652 = vadd.f32 0.0, %v1651
    %1653 = vdwg.mxu0
    %1654 = vmatprep.subr.mxu0 %v87
    %1655 = vmatpush1.msra.mxu0 %v86
    %1656 = vmatprep.subr.mxu0 %v91
    %1657 = vmatpush1.msra.mxu0 %v90
    %1658 = vmatprep.subr.mxu0 %v95
    %1659 = vmatpush1.msra.mxu0 %v94
    %1660 = vmatprep.subr.mxu0 %v99
    %1661 = vmatpush1.msra.mxu0 %v98
    %1662 = vmatprep.subr.mxu0 %v103
    %1663 = vmatpush1.msra.mxu0 %v102
    %1664 = vmatprep.subr.mxu0 %v107
    %1665 = vmatpush1.msra.mxu0 %v106
    %1666 = vmatprep.subr.mxu0 %v111
    %1667 = vmatpush1.msra.mxu0 %v110
    %1668 = vmatprep.subr.mxu0 %v115
    %1669 = vmatpush1.msra.mxu0 %v114
    %1670 = vmatprep.subr.mxu0 %v119
    %1671 = vmatpush1.msra.mxu0 %v118
    %1672 = vmatprep.subr.mxu0 %v123
    %1673 = vmatpush1.msra.mxu0 %v122
    %1674 = vmatprep.subr.mxu0 %v127
    %1675 = vmatpush1.msra.mxu0 %v126
    %1676 = vmatprep.subr.mxu0 %v131
    %1677 = vmatpush1.msra.mxu0 %v130
    %1678 = vmatprep.subr.mxu0 %v135
    %1679 = vmatpush1.msra.mxu0 %v134
    %1680 = vmatprep.subr.mxu0 %v139
    %1681 = vmatpush1.msra.mxu0 %v138
    %1682 = vmatprep.subr.mxu0 %v143
    %1683 = vmatpush1.msra.mxu0 %v142
    %1684 = vmatprep.subr.mxu0 %v147
    %1685 = vmatpush1.msra.mxu0 %v146
    %1686 = vmatprep.subr.mxu0 0.0
    %1687 = vmatpush1.msra.mxu0 0.0
    %1688 = vmatprep.subr.mxu0 0.0
    %1689 = vmatpush1.msra.mxu0 0.0
    %1690 = vmatprep.subr.mxu0 0.0
    %1691 = vmatpush1.msra.mxu0 0.0
    %1692 = vmatprep.subr.mxu0 0.0
    %1693 = vmatpush1.msra.mxu0 0.0
    %1694 = vmatprep.subr.mxu0 0.0
    %1695 = vmatpush1.msra.mxu0 0.0
    %1696 = vmatprep.subr.mxu0 0.0
    %1697 = vmatpush1.msra.mxu0 0.0
    %1698 = vmatprep.subr.mxu0 0.0
    %1699 = vmatpush1.msra.mxu0 0.0
    %1700 = vmatprep.subr.mxu0 0.0
    %1701 = vmatpush1.msra.mxu0 0.0
    %1702 = vmatprep.subr.mxu0 0.0
    %1703 = vmatpush1.msra.mxu0 0.0
    %1704 = vmatprep.subr.mxu0 0.0
    %1705 = vmatpush1.msra.mxu0 0.0
    %1706 = vmatprep.subr.mxu0 0.0
    %1707 = vmatpush1.msra.mxu0 0.0
    %1708 = vmatprep.subr.mxu0 0.0
    %1709 = vmatpush1.msra.mxu0 0.0
    %1710 = vmatprep.subr.mxu0 0.0
    %1711 = vmatpush1.msra.mxu0 0.0
    %1712 = vmatprep.subr.mxu0 0.0
    %1713 = vmatpush1.msra.mxu0 0.0
    %1714 = vmatprep.subr.mxu0 0.0
    %1715 = vmatpush1.msra.mxu0 0.0
    %1716 = vmatprep.subr.mxu0 0.0
    %1717 = vmatpush1.msra.mxu0 0.0
    %1718 = vmatprep.mubr.f32.mxu0 0.0
    %1719 = vmatmul.mubr.f32.gmra.mrb[0].mxu0 %v1422
    %v1720 = vpop.f32.mrb[0].mxu0
    %v1721 = vadd.f32 0.0, %v1720
    %v1722 = vpop.f32.mrb[0].mxu0
    %v1723 = vadd.f32 0.0, %v1722
    %1724 = vdwg.mxu0
    %v1725 = vadd.f32 %v470, %v1650
    %v1726 = vadd.f32 %v472, %v1652
    %v1727 = vadd.f32 %v583, %v1721
    %v1728 = vadd.f32 %v585, %v1723
    %v1729 = vmul.f32 %v1725, 0.5
    %v1730 = vtanh.pop %v1729
    %v1731 = vadd.f32 %v1730, 1.0
    %v1732 = vmul.f32 %v1731, 0.5
    %v1733 = vmul.f32 %v1726, 0.5
    %v1734 = vtanh.pop %v1733
    %v1735 = vadd.f32 %v1734, 1.0
    %v1736 = vmul.f32 %v1735, 0.5
    %v1737 = vtanh.pop %v1727
    %v1738 = vmul.f32 %v1728, 0.5
    %v1739 = vtanh.pop %v1738
    %v1740 = vadd.f32 %v1739, 1.0
    %v1741 = vmul.f32 %v1740, 0.5
    %v1742 = vmul.f32 %v1736, %v1420
    %v1743 = vmul.f32 %v1732, %v1737
    %v1744 = vadd.f32 %v1742, %v1743
    %v1745 = vtanh.pop %v1744
    %v1746 = vmul.f32 %v1741, %v1745
    %1747 = vmatprep.subr.mxu0 %v149
    %1748 = vmatpush1.msra.mxu0 %v148
    %1749 = vmatprep.subr.mxu0 %v153
    %1750 = vmatpush1.msra.mxu0 %v152
    %1751 = vmatprep.subr.mxu0 %v157
    %1752 = vmatpush1.msra.mxu0 %v156
    %1753 = vmatprep.subr.mxu0 %v161
    %1754 = vmatpush1.msra.mxu0 %v160
    %1755 = vmatprep.subr.mxu0 %v165
    %1756 = vmatpush1.msra.mxu0 %v164
    %1757 = vmatprep.subr.mxu0 %v169
    %1758 = vmatpush1.msra.mxu0 %v168
    %1759 = vmatprep.subr.mxu0 %v173
    %1760 = vmatpush1.msra.mxu0 %v172
    %1761 = vmatprep.subr.mxu0 %v177
    %1762 = vmatpush1.msra.mxu0 %v176
    %1763 = vmatprep.subr.mxu0 %v181
    %1764 = vmatpush1.msra.mxu0 %v180
    %1765 = vmatprep.subr.mxu0 %v185
    %1766 = vmatpush1.msra.mxu0 %v184
    %1767 = vmatprep.subr.mxu0 %v189
    %1768 = vmatpush1.msra.mxu0 %v188
    %1769 = vmatprep.subr.mxu0 %v193
    %1770 = vmatpush1.msra.mxu0 %v192
    %1771 = vmatprep.subr.mxu0 %v197
    %1772 = vmatpush1.msra.mxu0 %v196
    %1773 = vmatprep.subr.mxu0 %v201
    %1774 = vmatpush1.msra.mxu0 %v200
    %1775 = vmatprep.subr.mxu0 %v205
    %1776 = vmatpush1.msra.mxu0 %v204
    %1777 = vmatprep.subr.mxu0 %v209
    %1778 = vmatpush1.msra.mxu0 %v208
    %1779 = vmatprep.subr.mxu0 %v213
    %1780 = vmatpush1.msra.mxu0 %v212
    %1781 = vmatprep.subr.mxu0 %v217
    %1782 = vmatpush1.msra.mxu0 %v216
    %1783 = vmatprep.subr.mxu0 %v221
    %1784 = vmatpush1.msra.mxu0 %v220
    %1785 = vmatprep.subr.mxu0 %v225
    %1786 = vmatpush1.msra.mxu0 %v224
    %1787 = vmatprep.subr.mxu0 %v229
    %1788 = vmatpush1.msra.mxu0 %v228
    %1789 = vmatprep.subr.mxu0 %v233
    %1790 = vmatpush1.msra.mxu0 %v232
    %1791 = vmatprep.subr.mxu0 %v237
    %1792 = vmatpush1.msra.mxu0 %v236
    %1793 = vmatprep.subr.mxu0 %v241
    %1794 = vmatpush1.msra.mxu0 %v240
    %1795 = vmatprep.subr.mxu0 %v245
    %1796 = vmatpush1.msra.mxu0 %v244
    %1797 = vmatprep.subr.mxu0 %v249
    %1798 = vmatpush1.msra.mxu0 %v248
    %1799 = vmatprep.subr.mxu0 %v253
    %1800 = vmatpush1.msra.mxu0 %v252
    %1801 = vmatprep.subr.mxu0 %v257
    %1802 = vmatpush1.msra.mxu0 %v256
    %1803 = vmatprep.subr.mxu0 %v261
    %1804 = vmatpush1.msra.mxu0 %v260
    %1805 = vmatprep.subr.mxu0 %v265
    %1806 = vmatpush1.msra.mxu0 %v264
    %1807 = vmatprep.subr.mxu0 %v269
    %1808 = vmatpush1.msra.mxu0 %v268
    %1809 = vmatprep.subr.mxu0 %v273
    %1810 = vmatpush1.msra.mxu0 %v272
    %1811 = vmatprep.mubr.f32.mxu0 %v1582
    %1812 = vmatmul.mubr.f32.gmra.mrb[0].mxu0 %v1746
    %v1813 = vpop.f32.mrb[0].mxu0
    %v1814 = vadd.f32 %v281, %v1813
    %v1815 = vpop.f32.mrb[0].mxu0
    %v1816 = vadd.f32 %v285, %v1815
    %1817 = vdwg.mxu0
    %1818 = vmatprep.subr.mxu0 %v151
    %1819 = vmatpush1.msra.mxu0 %v150
    %1820 = vmatprep.subr.mxu0 %v155
    %1821 = vmatpush1.msra.mxu0 %v154
    %1822 = vmatprep.subr.mxu0 %v159
    %1823 = vmatpush1.msra.mxu0 %v158
    %1824 = vmatprep.subr.mxu0 %v163
    %1825 = vmatpush1.msra.mxu0 %v162
    %1826 = vmatprep.subr.mxu0 %v167
    %1827 = vmatpush1.msra.mxu0 %v166
    %1828 = vmatprep.subr.mxu0 %v171
    %1829 = vmatpush1.msra.mxu0 %v170
    %1830 = vmatprep.subr.mxu0 %v175
    %1831 = vmatpush1.msra.mxu0 %v174
    %1832 = vmatprep.subr.mxu0 %v179
    %1833 = vmatpush1.msra.mxu0 %v178
    %1834 = vmatprep.subr.mxu0 %v183
    %1835 = vmatpush1.msra.mxu0 %v182
    %1836 = vmatprep.subr.mxu0 %v187
    %1837 = vmatpush1.msra.mxu0 %v186
    %1838 = vmatprep.subr.mxu0 %v191
    %1839 = vmatpush1.msra.mxu0 %v190
    %1840 = vmatprep.subr.mxu0 %v195
    %1841 = vmatpush1.msra.mxu0 %v194
    %1842 = vmatprep.subr.mxu0 %v199
    %1843 = vmatpush1.msra.mxu0 %v198
    %1844 = vmatprep.subr.mxu0 %v203
    %1845 = vmatpush1.msra.mxu0 %v202
    %1846 = vmatprep.subr.mxu0 %v207
    %1847 = vmatpush1.msra.mxu0 %v206
    %1848 = vmatprep.subr.mxu0 %v211
    %1849 = vmatpush1.msra.mxu0 %v210
    %1850 = vmatprep.subr.mxu0 %v215
    %1851 = vmatpush1.msra.mxu0 %v214
    %1852 = vmatprep.subr.mxu0 %v219
    %1853 = vmatpush1.msra.mxu0 %v218
    %1854 = vmatprep.subr.mxu0 %v223
    %1855 = vmatpush1.msra.mxu0 %v222
    %1856 = vmatprep.subr.mxu0 %v227
    %1857 = vmatpush1.msra.mxu0 %v226
    %1858 = vmatprep.subr.mxu0 %v231
    %1859 = vmatpush1.msra.mxu0 %v230
    %1860 = vmatprep.subr.mxu0 %v235
    %1861 = vmatpush1.msra.mxu0 %v234
    %1862 = vmatprep.subr.mxu0 %v239
    %1863 = vmatpush1.msra.mxu0 %v238
    %1864 = vmatprep.subr.mxu0 %v243
    %1865 = vmatpush1.msra.mxu0 %v242
    %1866 = vmatprep.subr.mxu0 %v247
    %1867 = vmatpush1.msra.mxu0 %v246
    %1868 = vmatprep.subr.mxu0 %v251
    %1869 = vmatpush1.msra.mxu0 %v250
    %1870 = vmatprep.subr.mxu0 %v255
    %1871 = vmatpush1.msra.mxu0 %v254
    %1872 = vmatprep.subr.mxu0 %v259
    %1873 = vmatpush1.msra.mxu0 %v258
    %1874 = vmatprep.subr.mxu0 %v263
    %1875 = vmatpush1.msra.mxu0 %v262
    %1876 = vmatprep.subr.mxu0 %v267
    %1877 = vmatpush1.msra.mxu0 %v266
    %1878 = vmatprep.subr.mxu0 %v271
    %1879 = vmatpush1.msra.mxu0 %v270
    %1880 = vmatprep.subr.mxu0 %v275
    %1881 = vmatpush1.msra.mxu0 %v274
    %1882 = vmatprep.mubr.f32.mxu0 %v1582
    %1883 = vmatmul.mubr.f32.gmra.mrb[0].mxu0 %v1746
    %v1884 = vpop.f32.mrb[0].mxu0
    %v1885 = vadd.f32 %v289, %v1884
    %v1886 = vpop.f32.mrb[0].mxu0
    %v1887 = vadd.f32 %v293, %v1886
    %1888 = vdwg.mxu0
    %v1889 = vmul.f32 %v1814, 0.5
    %v1890 = vtanh.pop %v1889
    %v1891 = vadd.f32 %v1890, 1.0
    %v1892 = vmul.f32 %v1891, 0.5
    %v1893 = vmul.f32 %v1816, 0.5
    %v1894 = vtanh.pop %v1893
    %v1895 = vadd.f32 %v1894, 1.0
    %v1896 = vmul.f32 %v1895, 0.5
    %v1897 = vtanh.pop %v1885
    %v1898 = vmul.f32 %v1887, 0.5
    %v1899 = vtanh.pop %v1898
    %v1900 = vadd.f32 %v1899, 1.0
    %v1901 = vmul.f32 %v1900, 0.5
    %v1902 = vmul.f32 %v1896, %v1580
    %v1903 = vmul.f32 %v1892, %v1897
    %v1904 = vadd.f32 %v1902, %v1903
    %v1905 = vtanh.pop %v1904
    %v1906 = vmul.f32 %v1901, %v1905
    %1907 = vmatprep.subr.mxu0 %v85
    %1908 = vmatpush1.msra.mxu0 %v84
    %1909 = vmatprep.subr.mxu0 %v89
    %1910 = vmatpush1.msra.mxu0 %v88
    %1911 = vmatprep.subr.mxu0 %v93
    %1912 = vmatpush1.msra.mxu0 %v92
    %1913 = vmatprep.subr.mxu0 %v97
    %1914 = vmatpush1.msra.mxu0 %v96
    %1915 = vmatprep.subr.mxu0 %v101
    %1916 = vmatpush1.msra.mxu0 %v100
    %1917 = vmatprep.subr.mxu0 %v105
    %1918 = vmatpush1.msra.mxu0 %v104
    %1919 = vmatprep.subr.mxu0 %v109
    %1920 = vmatpush1.msra.mxu0 %v108
    %1921 = vmatprep.subr.mxu0 %v113
    %1922 = vmatpush1.msra.mxu0 %v112
    %1923 = vmatprep.subr.mxu0 %v117
    %1924 = vmatpush1.msra.mxu0 %v116
    %1925 = vmatprep.subr.mxu0 %v121
    %1926 = vmatpush1.msra.mxu0 %v120
    %1927 = vmatprep.subr.mxu0 %v125
    %1928 = vmatpush1.msra.mxu0 %v124
    %1929 = vmatprep.subr.mxu0 %v129
    %1930 = vmatpush1.msra.mxu0 %v128
    %1931 = vmatprep.subr.mxu0 %v133
    %1932 = vmatpush1.msra.mxu0 %v132
    %1933 = vmatprep.subr.mxu0 %v137
    %1934 = vmatpush1.msra.mxu0 %v136
    %1935 = vmatprep.subr.mxu0 %v141
    %1936 = vmatpush1.msra.mxu0 %v140
    %1937 = vmatprep.subr.mxu0 %v145
    %1938 = vmatpush1.msra.mxu0 %v144
    %1939 = vmatprep.subr.mxu0 0.0
    %1940 = vmatpush1.msra.mxu0 0.0
    %1941 = vmatprep.subr.mxu0 0.0
    %1942 = vmatpush1.msra.mxu0 0.0
    %1943 = vmatprep.subr.mxu0 0.0
    %1944 = vmatpush1.msra.mxu0 0.0
    %1945 = vmatprep.subr.mxu0 0.0
    %1946 = vmatpush1.msra.mxu0 0.0
    %1947 = vmatprep.subr.mxu0 0.0
    %1948 = vmatpush1.msra.mxu0 0.0
    %1949 = vmatprep.subr.mxu0 0.0
    %1950 = vmatpush1.msra.mxu0 0.0
    %1951 = vmatprep.subr.mxu0 0.0
    %1952 = vmatpush1.msra.mxu0 0.0
    %1953 = vmatprep.subr.mxu0 0.0
    %1954 = vmatpush1.msra.mxu0 0.0
    %1955 = vmatprep.subr.mxu0 0.0
    %1956 = vmatpush1.msra.mxu0 0.0
    %1957 = vmatprep.subr.mxu0 0.0
    %1958 = vmatpush1.msra.mxu0 0.0
    %1959 = vmatprep.subr.mxu0 0.0
    %1960 = vmatpush1.msra.mxu0 0.0
    %1961 = vmatprep.subr.mxu0 0.0
    %1962 = vmatpush1.msra.mxu0 0.0
    %1963 = vmatprep.subr.mxu0 0.0
    %1964 = vmatpush1.msra.mxu0 0.0
    %1965 = vmatprep.subr.mxu0 0.0
    %1966 = vmatpush1.msra.mxu0 0.0
    %1967 = vmatprep.subr.mxu0 0.0
    %1968 = vmatpush1.msra.mxu0 0.0
    %1969 = vmatprep.subr.mxu0 0.0
    %1970 = vmatpush1.msra.mxu0 0.0
    %1971 = vmatprep.mubr.f32.mxu0 0.0
    %1972 = vmatmul.mubr.f32.gmra.mrb[0].mxu0 %v1746
    %v1973 = vpop.f32.mrb[0].mxu0
    %v1974 = vadd.f32 0.0, %v1973
    %v1975 = vpop.f32.mrb[0].mxu0
    %v1976 = vadd.f32 0.0, %v1975
    %1977 = vdwg.mxu0
    %1978 = vmatprep.subr.mxu0 %v87
    %1979 = vmatpush1.msra.mxu0 %v86
    %1980 = vmatprep.subr.mxu0 %v91
    %1981 = vmatpush1.msra.mxu0 %v90
    %1982 = vmatprep.subr.mxu0 %v95
    %1983 = vmatpush1.msra.mxu0 %v94
    %1984 = vmatprep.subr.mxu0 %v99
    %1985 = vmatpush1.msra.mxu0 %v98
    %1986 = vmatprep.subr.mxu0 %v103
    %1987 = vmatpush1.msra.mxu0 %v102
    %1988 = vmatprep.subr.mxu0 %v107
    %1989 = vmatpush1.msra.mxu0 %v106
    %1990 = vmatprep.subr.mxu0 %v111
    %1991 = vmatpush1.msra.mxu0 %v110
    %1992 = vmatprep.subr.mxu0 %v115
    %1993 = vmatpush1.msra.mxu0 %v114
    %1994 = vmatprep.subr.mxu0 %v119
    %1995 = vmatpush1.msra.mxu0 %v118
    %1996 = vmatprep.subr.mxu0 %v123
    %1997 = vmatpush1.msra.mxu0 %v122
    %1998 = vmatprep.subr.mxu0 %v127
    %1999 = vmatpush1.msra.mxu0 %v126
    %2000 = vmatprep.subr.mxu0 %v131
    %2001 = vmatpush1.msra.mxu0 %v130
    %2002 = vmatprep.subr.mxu0 %v135
    %2003 = vmatpush1.msra.mxu0 %v134
    %2004 = vmatprep.subr.mxu0 %v139
    %2005 = vmatpush1.msra.mxu0 %v138
    %2006 = vmatprep.subr.mxu0 %v143
    %2007 = vmatpush1.msra.mxu0 %v142
    %2008 = vmatprep.subr.mxu0 %v147
    %2009 = vmatpush1.msra.mxu0 %v146
    %2010 = vmatprep.subr.mxu0 0.0
    %2011 = vmatpush1.msra.mxu0 0.0
    %2012 = vmatprep.subr.mxu0 0.0
    %2013 = vmatpush1.msra.mxu0 0.0
    %2014 = vmatprep.subr.mxu0 0.0
    %2015 = vmatpush1.msra.mxu0 0.0
    %2016 = vmatprep.subr.mxu0 0.0
    %2017 = vmatpush1.msra.mxu0 0.0
    %2018 = vmatprep.subr.mxu0 0.0
    %2019 = vmatpush1.msra.mxu0 0.0
    %2020 = vmatprep.subr.mxu0 0.0
    %2021 = vmatpush1.msra.mxu0 0.0
    %2022 = vmatprep.subr.mxu0 0.0
    %2023 = vmatpush1.msra.mxu0 0.0
    %2024 = vmatprep.subr.mxu0 0.0
    %2025 = vmatpush1.msra.mxu0 0.0
    %2026 = vmatprep.subr.mxu0 0.0
    %2027 = vmatpush1.msra.mxu0 0.0
    %2028 = vmatprep.subr.mxu0 0.0
    %2029 = vmatpush1.msra.mxu0 0.0
    %2030 = vmatprep.subr.mxu0 0.0
    %2031 = vmatpush1.msra.mxu0 0.0
    %2032 = vmatprep.subr.mxu0 0.0
    %2033 = vmatpush1.msra.mxu0 0.0
    %2034 = vmatprep.subr.mxu0 0.0
    %2035 = vmatpush1.msra.mxu0 0.0
    %2036 = vmatprep.subr.mxu0 0.0
    %2037 = vmatpush1.msra.mxu0 0.0
    %2038 = vmatprep.subr.mxu0 0.0
    %2039 = vmatpush1.msra.mxu0 0.0
    %2040 = vmatprep.subr.mxu0 0.0
    %2041 = vmatpush1.msra.mxu0 0.0
    %2042 = vmatprep.mubr.f32.mxu0 0.0
    %2043 = vmatmul.mubr.f32.gmra.mrb[0].mxu0 %v1746
    %v2044 = vpop.f32.mrb[0].mxu0
    %v2045 = vadd.f32 0.0, %v2044
    %v2046 = vpop.f32.mrb[0].mxu0
    %v2047 = vadd.f32 0.0, %v2046
    %2048 = vdwg.mxu0
    %v2049 = vadd.f32 %v476, %v1974
    %v2050 = vadd.f32 %v478, %v1976
    %v2051 = vadd.f32 %v589, %v2045
    %v2052 = vadd.f32 %v591, %v2047
    %v2053 = vmul.f32 %v2049, 0.5
    %v2054 = vtanh.pop %v2053
    %v2055 = vadd.f32 %v2054, 1.0
    %v2056 = vmul.f32 %v2055, 0.5
    %v2057 = vmul.f32 %v2050, 0.5
    %v2058 = vtanh.pop %v2057
    %v2059 = vadd.f32 %v2058, 1.0
    %v2060 = vmul.f32 %v2059, 0.5
    %v2061 = vtanh.pop %v2051
    %v2062 = vmul.f32 %v2052, 0.5
    %v2063 = vtanh.pop %v2062
    %v2064 = vadd.f32 %v2063, 1.0
    %v2065 = vmul.f32 %v2064, 0.5
    %v2066 = vmul.f32 %v2060, %v1744
    %v2067 = vmul.f32 %v2056, %v2061
    %v2068 = vadd.f32 %v2066, %v2067
    %v2069 = vtanh.pop %v2068
    %v2070 = vmul.f32 %v2065, %v2069
    %2071 = vmatprep.subr.mxu0 %v149
    %2072 = vmatpush1.msra.mxu0 %v148
    %2073 = vmatprep.subr.mxu0 %v153
    %2074 = vmatpush1.msra.mxu0 %v152
    %2075 = vmatprep.subr.mxu0 %v157
    %2076 = vmatpush1.msra.mxu0 %v156
    %2077 = vmatprep.subr.mxu0 %v161
    %2078 = vmatpush1.msra.mxu0 %v160
    %2079 = vmatprep.subr.mxu0 %v165
    %2080 = vmatpush1.msra.mxu0 %v164
    %2081 = vmatprep.subr.mxu0 %v169
    %2082 = vmatpush1.msra.mxu0 %v168
    %2083 = vmatprep.subr.mxu0 %v173
    %2084 = vmatpush1.msra.mxu0 %v172
    %2085 = vmatprep.subr.mxu0 %v177
    %2086 = vmatpush1.msra.mxu0 %v176
    %2087 = vmatprep.subr.mxu0 %v181
    %2088 = vmatpush1.msra.mxu0 %v180
    %2089 = vmatprep.subr.mxu0 %v185
    %2090 = vmatpush1.msra.mxu0 %v184
    %2091 = vmatprep.subr.mxu0 %v189
    %2092 = vmatpush1.msra.mxu0 %v188
    %2093 = vmatprep.subr.mxu0 %v193
    %2094 = vmatpush1.msra.mxu0 %v192
    %2095 = vmatprep.subr.mxu0 %v197
    %2096 = vmatpush1.msra.mxu0 %v196
    %2097 = vmatprep.subr.mxu0 %v201
    %2098 = vmatpush1.msra.mxu0 %v200
    %2099 = vmatprep.subr.mxu0 %v205
    %2100 = vmatpush1.msra.mxu0 %v204
    %2101 = vmatprep.subr.mxu0 %v209
    %2102 = vmatpush1.msra.mxu0 %v208
    %2103 = vmatprep.subr.mxu0 %v213
    %2104 = vmatpush1.msra.mxu0 %v212
    %2105 = vmatprep.subr.mxu0 %v217
    %2106 = vmatpush1.msra.mxu0 %v216
    %2107 = vmatprep.subr.mxu0 %v221
    %2108 = vmatpush1.msra.mxu0 %v220
    %2109 = vmatprep.subr.mxu0 %v225
    %2110 = vmatpush1.msra.mxu0 %v224
    %2111 = vmatprep.subr.mxu0 %v229
    %2112 = vmatpush1.msra.mxu0 %v228
    %2113 = vmatprep.subr.mxu0 %v233
    %2114 = vmatpush1.msra.mxu0 %v232
    %2115 = vmatprep.subr.mxu0 %v237
    %2116 = vmatpush1.msra.mxu0 %v236
    %2117 = vmatprep.subr.mxu0 %v241
    %2118 = vmatpush1.msra.mxu0 %v240
    %2119 = vmatprep.subr.mxu0 %v245
    %2120 = vmatpush1.msra.mxu0 %v244
    %2121 = vmatprep.subr.mxu0 %v249
    %2122 = vmatpush1.msra.mxu0 %v248
    %2123 = vmatprep.subr.mxu0 %v253
    %2124 = vmatpush1.msra.mxu0 %v252
    %2125 = vmatprep.subr.mxu0 %v257
    %2126 = vmatpush1.msra.mxu0 %v256
    %2127 = vmatprep.subr.mxu0 %v261
    %2128 = vmatpush1.msra.mxu0 %v260
    %2129 = vmatprep.subr.mxu0 %v265
    %2130 = vmatpush1.msra.mxu0 %v264
    %2131 = vmatprep.subr.mxu0 %v269
    %2132 = vmatpush1.msra.mxu0 %v268
    %2133 = vmatprep.subr.mxu0 %v273
    %2134 = vmatpush1.msra.mxu0 %v272
    %2135 = vmatprep.mubr.f32.mxu0 %v1906
    %2136 = vmatmul.mubr.f32.gmra.mrb[0].mxu0 %v2070
    %v2137 = vpop.f32.mrb[0].mxu0
    %v2138 = vadd.f32 %v281, %v2137
    %v2139 = vpop.f32.mrb[0].mxu0
    %v2140 = vadd.f32 %v285, %v2139
    %2141 = vdwg.mxu0
    %2142 = vmatprep.subr.mxu0 %v151
    %2143 = vmatpush1.msra.mxu0 %v150
    %2144 = vmatprep.subr.mxu0 %v155
    %2145 = vmatpush1.msra.mxu0 %v154
    %2146 = vmatprep.subr.mxu0 %v159
    %2147 = vmatpush1.msra.mxu0 %v158
    %2148 = vmatprep.subr.mxu0 %v163
    %2149 = vmatpush1.msra.mxu0 %v162
    %2150 = vmatprep.subr.mxu0 %v167
    %2151 = vmatpush1.msra.mxu0 %v166
    %2152 = vmatprep.subr.mxu0 %v171
    %2153 = vmatpush1.msra.mxu0 %v170
    %2154 = vmatprep.subr.mxu0 %v175
    %2155 = vmatpush1.msra.mxu0 %v174
    %2156 = vmatprep.subr.mxu0 %v179
    %2157 = vmatpush1.msra.mxu0 %v178
    %2158 = vmatprep.subr.mxu0 %v183
    %2159 = vmatpush1.msra.mxu0 %v182
    %2160 = vmatprep.subr.mxu0 %v187
    %2161 = vmatpush1.msra.mxu0 %v186
    %2162 = vmatprep.subr.mxu0 %v191
    %2163 = vmatpush1.msra.mxu0 %v190
    %2164 = vmatprep.subr.mxu0 %v195
    %2165 = vmatpush1.msra.mxu0 %v194
    %2166 = vmatprep.subr.mxu0 %v199
    %2167 = vmatpush1.msra.mxu0 %v198
    %2168 = vmatprep.subr.mxu0 %v203
    %2169 = vmatpush1.msra.mxu0 %v202
    %2170 = vmatprep.subr.mxu0 %v207
    %2171 = vmatpush1.msra.mxu0 %v206
    %2172 = vmatprep.subr.mxu0 %v211
    %2173 = vmatpush1.msra.mxu0 %v210
    %2174 = vmatprep.subr.mxu0 %v215
    %2175 = vmatpush1.msra.mxu0 %v214
    %2176 = vmatprep.subr.mxu0 %v219
    %2177 = vmatpush1.msra.mxu0 %v218
    %2178 = vmatprep.subr.mxu0 %v223
    %2179 = vmatpush1.msra.mxu0 %v222
    %2180 = vmatprep.subr.mxu0 %v227
    %2181 = vmatpush1.msra.mxu0 %v226
    %2182 = vmatprep.subr.mxu0 %v231
    %2183 = vmatpush1.msra.mxu0 %v230
    %2184 = vmatprep.subr.mxu0 %v235
    %2185 = vmatpush1.msra.mxu0 %v234
    %2186 = vmatprep.subr.mxu0 %v239
    %2187 = vmatpush1.msra.mxu0 %v238
    %2188 = vmatprep.subr.mxu0 %v243
    %2189 = vmatpush1.msra.mxu0 %v242
    %2190 = vmatprep.subr.mxu0 %v247
    %2191 = vmatpush1.msra.mxu0 %v246
    %2192 = vmatprep.subr.mxu0 %v251
    %2193 = vmatpush1.msra.mxu0 %v250
    %2194 = vmatprep.subr.mxu0 %v255
    %2195 = vmatpush1.msra.mxu0 %v254
    %2196 = vmatprep.subr.mxu0 %v259
    %2197 = vmatpush1.msra.mxu0 %v258
    %2198 = vmatprep.subr.mxu0 %v263
    %2199 = vmatpush1.msra.mxu0 %v262
    %2200 = vmatprep.subr.mxu0 %v267
    %2201 = vmatpush1.msra.mxu0 %v266
    %2202 = vmatprep.subr.mxu0 %v271
    %2203 = vmatpush1.msra.mxu0 %v270
    %2204 = vmatprep.subr.mxu0 %v275
    %2205 = vmatpush1.msra.mxu0 %v274
    %2206 = vmatprep.mubr.f32.mxu0 %v1906
    %2207 = vmatmul.mubr.f32.gmra.mrb[0].mxu0 %v2070
    %v2208 = vpop.f32.mrb[0].mxu0
    %v2209 = vadd.f32 %v289, %v2208
    %v2210 = vpop.f32.mrb[0].mxu0
    %v2211 = vadd.f32 %v293, %v2210
    %2212 = vdwg.mxu0
    %v2213 = vmul.f32 %v2138, 0.5
    %v2214 = vtanh.pop %v2213
    %v2215 = vadd.f32 %v2214, 1.0
    %v2216 = vmul.f32 %v2215, 0.5
    %v2217 = vmul.f32 %v2140, 0.5
    %v2218 = vtanh.pop %v2217
    %v2219 = vadd.f32 %v2218, 1.0
    %v2220 = vmul.f32 %v2219, 0.5
    %v2221 = vtanh.pop %v2209
    %v2222 = vmul.f32 %v2211, 0.5
    %v2223 = vtanh.pop %v2222
    %v2224 = vadd.f32 %v2223, 1.0
    %v2225 = vmul.f32 %v2224, 0.5
    %v2226 = vmul.f32 %v2220, %v1904
    %v2227 = vmul.f32 %v2216, %v2221
    %v2228 = vadd.f32 %v2226, %v2227
    %v2229 = vtanh.pop %v2228
    %v2230 = vmul.f32 %v2225, %v2229
    %2231 = vmatprep.subr.mxu0 %v85
    %2232 = vmatpush1.msra.mxu0 %v84
    %2233 = vmatprep.subr.mxu0 %v89
    %2234 = vmatpush1.msra.mxu0 %v88
    %2235 = vmatprep.subr.mxu0 %v93
    %2236 = vmatpush1.msra.mxu0 %v92
    %2237 = vmatprep.subr.mxu0 %v97
    %2238 = vmatpush1.msra.mxu0 %v96
    %2239 = vmatprep.subr.mxu0 %v101
    %2240 = vmatpush1.msra.mxu0 %v100
    %2241 = vmatprep.subr.mxu0 %v105
    %2242 = vmatpush1.msra.mxu0 %v104
    %2243 = vmatprep.subr.mxu0 %v109
    %2244 = vmatpush1.msra.mxu0 %v108
    %2245 = vmatprep.subr.mxu0 %v113
    %2246 = vmatpush1.msra.mxu0 %v112
    %2247 = vmatprep.subr.mxu0 %v117
    %2248 = vmatpush1.msra.mxu0 %v116
    %2249 = vmatprep.subr.mxu0 %v121
    %2250 = vmatpush1.msra.mxu0 %v120
    %2251 = vmatprep.subr.mxu0 %v125
    %2252 = vmatpush1.msra.mxu0 %v124
    %2253 = vmatprep.subr.mxu0 %v129
    %2254 = vmatpush1.msra.mxu0 %v128
    %2255 = vmatprep.subr.mxu0 %v133
    %2256 = vmatpush1.msra.mxu0 %v132
    %2257 = vmatprep.subr.mxu0 %v137
    %2258 = vmatpush1.msra.mxu0 %v136
    %2259 = vmatprep.subr.mxu0 %v141
    %2260 = vmatpush1.msra.mxu0 %v140
    %2261 = vmatprep.subr.mxu0 %v145
    %2262 = vmatpush1.msra.mxu0 %v144
    %2263 = vmatprep.subr.mxu0 0.0
    %2264 = vmatpush1.msra.mxu0 0.0
    %2265 = vmatprep.subr.mxu0 0.0
    %2266 = vmatpush1.msra.mxu0 0.0
    %2267 = vmatprep.subr.mxu0 0.0
    %2268 = vmatpush1.msra.mxu0 0.0
    %2269 = vmatprep.subr.mxu0 0.0
    %2270 = vmatpush1.msra.mxu0 0.0
    %2271 = vmatprep.subr.mxu0 0.0
    %2272 = vmatpush1.msra.mxu0 0.0
    %2273 = vmatprep.subr.mxu0 0.0
    %2274 = vmatpush1.msra.mxu0 0.0
    %2275 = vmatprep.subr.mxu0 0.0
    %2276 = vmatpush1.msra.mxu0 0.0
    %2277 = vmatprep.subr.mxu0 0.0
    %2278 = vmatpush1.msra.mxu0 0.0
    %2279 = vmatprep.subr.mxu0 0.0
    %2280 = vmatpush1.msra.mxu0 0.0
    %2281 = vmatprep.subr.mxu0 0.0
    %2282 = vmatpush1.msra.mxu0 0.0
    %2283 = vmatprep.subr.mxu0 0.0
    %2284 = vmatpush1.msra.mxu0 0.0
    %2285 = vmatprep.subr.mxu0 0.0
    %2286 = vmatpush1.msra.mxu0 0.0
    %2287 = vmatprep.subr.mxu0 0.0
    %2288 = vmatpush1.msra.mxu0 0.0
    %2289 = vmatprep.subr.mxu0 0.0
    %2290 = vmatpush1.msra.mxu0 0.0
    %2291 = vmatprep.subr.mxu0 0.0
    %2292 = vmatpush1.msra.mxu0 0.0
    %2293 = vmatprep.subr.mxu0 0.0
    %2294 = vmatpush1.msra.mxu0 0.0
    %2295 = vmatprep.mubr.f32.mxu0 0.0
    %2296 = vmatmul.mubr.f32.gmra.mrb[0].mxu0 %v2070
    %v2297 = vpop.f32.mrb[0].mxu0
    %v2298 = vadd.f32 0.0, %v2297
    %v2299 = vpop.f32.mrb[0].mxu0
    %v2300 = vadd.f32 0.0, %v2299
    %2301 = vdwg.mxu0
    %2302 = vmatprep.subr.mxu0 %v87
    %2303 = vmatpush1.msra.mxu0 %v86
    %2304 = vmatprep.subr.mxu0 %v91
    %2305 = vmatpush1.msra.mxu0 %v90
    %2306 = vmatprep.subr.mxu0 %v95
    %2307 = vmatpush1.msra.mxu0 %v94
    %2308 = vmatprep.subr.mxu0 %v99
    %2309 = vmatpush1.msra.mxu0 %v98
    %2310 = vmatprep.subr.mxu0 %v103
    %2311 = vmatpush1.msra.mxu0 %v102
    %2312 = vmatprep.subr.mxu0 %v107
    %2313 = vmatpush1.msra.mxu0 %v106
    %2314 = vmatprep.subr.mxu0 %v111
    %2315 = vmatpush1.msra.mxu0 %v110
    %2316 = vmatprep.subr.mxu0 %v115
    %2317 = vmatpush1.msra.mxu0 %v114
    %2318 = vmatprep.subr.mxu0 %v119
    %2319 = vmatpush1.msra.mxu0 %v118
    %2320 = vmatprep.subr.mxu0 %v123
    %2321 = vmatpush1.msra.mxu0 %v122
    %2322 = vmatprep.subr.mxu0 %v127
    %2323 = vmatpush1.msra.mxu0 %v126
    %2324 = vmatprep.subr.mxu0 %v131
    %2325 = vmatpush1.msra.mxu0 %v130
    %2326 = vmatprep.subr.mxu0 %v135
    %2327 = vmatpush1.msra.mxu0 %v134
    %2328 = vmatprep.subr.mxu0 %v139
    %2329 = vmatpush1.msra.mxu0 %v138
    %2330 = vmatprep.subr.mxu0 %v143
    %2331 = vmatpush1.msra.mxu0 %v142
    %2332 = vmatprep.subr.mxu0 %v147
    %2333 = vmatpush1.msra.mxu0 %v146
    %2334 = vmatprep.subr.mxu0 0.0
    %2335 = vmatpush1.msra.mxu0 0.0
    %2336 = vmatprep.subr.mxu0 0.0
    %2337 = vmatpush1.msra.mxu0 0.0
    %2338 = vmatprep.subr.mxu0 0.0
    %2339 = vmatpush1.msra.mxu0 0.0
    %2340 = vmatprep.subr.mxu0 0.0
    %2341 = vmatpush1.msra.mxu0 0.0
    %2342 = vmatprep.subr.mxu0 0.0
    %2343 = vmatpush1.msra.mxu0 0.0
    %2344 = vmatprep.subr.mxu0 0.0
    %2345 = vmatpush1.msra.mxu0 0.0
    %2346 = vmatprep.subr.mxu0 0.0
    %2347 = vmatpush1.msra.mxu0 0.0
    %2348 = vmatprep.subr.mxu0 0.0
    %2349 = vmatpush1.msra.mxu0 0.0
    %2350 = vmatprep.subr.mxu0 0.0
    %2351 = vmatpush1.msra.mxu0 0.0
    %2352 = vmatprep.subr.mxu0 0.0
    %2353 = vmatpush1.msra.mxu0 0.0
    %2354 = vmatprep.subr.mxu0 0.0
    %2355 = vmatpush1.msra.mxu0 0.0
    %2356 = vmatprep.subr.mxu0 0.0
    %2357 = vmatpush1.msra.mxu0 0.0
    %2358 = vmatprep.subr.mxu0 0.0
    %2359 = vmatpush1.msra.mxu0 0.0
    %2360 = vmatprep.subr.mxu0 0.0
    %2361 = vmatpush1.msra.mxu0 0.0
    %2362 = vmatprep.subr.mxu0 0.0
    %2363 = vmatpush1.msra.mxu0 0.0
    %2364 = vmatprep.subr.mxu0 0.0
    %2365 = vmatpush1.msra.mxu0 0.0
    %2366 = vmatprep.mubr.f32.mxu0 0.0
    %2367 = vmatmul.mubr.f32.gmra.mrb[0].mxu0 %v2070
    %v2368 = vpop.f32.mrb[0].mxu0
    %v2369 = vadd.f32 0.0, %v2368
    %v2370 = vpop.f32.mrb[0].mxu0
    %v2371 = vadd.f32 0.0, %v2370
    %2372 = vdwg.mxu0
    %v2373 = vadd.f32 %v482, %v2298
    %v2374 = vadd.f32 %v484, %v2300
    %v2375 = vadd.f32 %v595, %v2369
    %v2376 = vadd.f32 %v597, %v2371
    %v2377 = vmul.f32 %v2373, 0.5
    %v2378 = vtanh.pop %v2377
    %v2379 = vadd.f32 %v2378, 1.0
    %v2380 = vmul.f32 %v2379, 0.5
    %v2381 = vmul.f32 %v2374, 0.5
    %v2382 = vtanh.pop %v2381
    %v2383 = vadd.f32 %v2382, 1.0
    %v2384 = vmul.f32 %v2383, 0.5
    %v2385 = vtanh.pop %v2375
    %v2386 = vmul.f32 %v2376, 0.5
    %v2387 = vtanh.pop %v2386
    %v2388 = vadd.f32 %v2387, 1.0
    %v2389 = vmul.f32 %v2388, 0.5
    %v2390 = vmul.f32 %v2384, %v2068
    %v2391 = vmul.f32 %v2380, %v2385
    %v2392 = vadd.f32 %v2390, %v2391
    %v2393 = vtanh.pop %v2392
    %v2394 = vmul.f32 %v2389, %v2393
    %2395 = vmatprep.subr.mxu0 %v149
    %2396 = vmatpush1.msra.mxu0 %v148
    %2397 = vmatprep.subr.mxu0 %v153
    %2398 = vmatpush1.msra.mxu0 %v152
    %2399 = vmatprep.subr.mxu0 %v157
    %2400 = vmatpush1.msra.mxu0 %v156
    %2401 = vmatprep.subr.mxu0 %v161
    %2402 = vmatpush1.msra.mxu0 %v160
    %2403 = vmatprep.subr.mxu0 %v165
    %2404 = vmatpush1.msra.mxu0 %v164
    %2405 = vmatprep.subr.mxu0 %v169
    %2406 = vmatpush1.msra.mxu0 %v168
    %2407 = vmatprep.subr.mxu0 %v173
    %2408 = vmatpush1.msra.mxu0 %v172
    %2409 = vmatprep.subr.mxu0 %v177
    %2410 = vmatpush1.msra.mxu0 %v176
    %2411 = vmatprep.subr.mxu0 %v181
    %2412 = vmatpush1.msra.mxu0 %v180
    %2413 = vmatprep.subr.mxu0 %v185
    %2414 = vmatpush1.msra.mxu0 %v184
    %2415 = vmatprep.subr.mxu0 %v189
    %2416 = vmatpush1.msra.mxu0 %v188
    %2417 = vmatprep.subr.mxu0 %v193
    %2418 = vmatpush1.msra.mxu0 %v192
    %2419 = vmatprep.subr.mxu0 %v197
    %2420 = vmatpush1.msra.mxu0 %v196
    %2421 = vmatprep.subr.mxu0 %v201
    %2422 = vmatpush1.msra.mxu0 %v200
    %2423 = vmatprep.subr.mxu0 %v205
    %2424 = vmatpush1.msra.mxu0 %v204
    %2425 = vmatprep.subr.mxu0 %v209
    %2426 = vmatpush1.msra.mxu0 %v208
    %2427 = vmatprep.subr.mxu0 %v213
    %2428 = vmatpush1.msra.mxu0 %v212
    %2429 = vmatprep.subr.mxu0 %v217
    %2430 = vmatpush1.msra.mxu0 %v216
    %2431 = vmatprep.subr.mxu0 %v221
    %2432 = vmatpush1.msra.mxu0 %v220
    %2433 = vmatprep.subr.mxu0 %v225
    %2434 = vmatpush1.msra.mxu0 %v224
    %2435 = vmatprep.subr.mxu0 %v229
    %2436 = vmatpush1.msra.mxu0 %v228
    %2437 = vmatprep.subr.mxu0 %v233
    %2438 = vmatpush1.msra.mxu0 %v232
    %2439 = vmatprep.subr.mxu0 %v237
    %2440 = vmatpush1.msra.mxu0 %v236
    %2441 = vmatprep.subr.mxu0 %v241
    %2442 = vmatpush1.msra.mxu0 %v240
    %2443 = vmatprep.subr.mxu0 %v245
    %2444 = vmatpush1.msra.mxu0 %v244
    %2445 = vmatprep.subr.mxu0 %v249
    %2446 = vmatpush1.msra.mxu0 %v248
    %2447 = vmatprep.subr.mxu0 %v253
    %2448 = vmatpush1.msra.mxu0 %v252
    %2449 = vmatprep.subr.mxu0 %v257
    %2450 = vmatpush1.msra.mxu0 %v256
    %2451 = vmatprep.subr.mxu0 %v261
    %2452 = vmatpush1.msra.mxu0 %v260
    %2453 = vmatprep.subr.mxu0 %v265
    %2454 = vmatpush1.msra.mxu0 %v264
    %2455 = vmatprep.subr.mxu0 %v269
    %2456 = vmatpush1.msra.mxu0 %v268
    %2457 = vmatprep.subr.mxu0 %v273
    %2458 = vmatpush1.msra.mxu0 %v272
    %2459 = vmatprep.mubr.f32.mxu0 %v2230
    %2460 = vmatmul.mubr.f32.gmra.mrb[0].mxu0 %v2394
    %v2461 = vpop.f32.mrb[0].mxu0
    %v2462 = vadd.f32 %v281, %v2461
    %v2463 = vpop.f32.mrb[0].mxu0
    %v2464 = vadd.f32 %v285, %v2463
    %2465 = vdwg.mxu0
    %2466 = vmatprep.subr.mxu0 %v151
    %2467 = vmatpush1.msra.mxu0 %v150
    %2468 = vmatprep.subr.mxu0 %v155
    %2469 = vmatpush1.msra.mxu0 %v154
    %2470 = vmatprep.subr.mxu0 %v159
    %2471 = vmatpush1.msra.mxu0 %v158
    %2472 = vmatprep.subr.mxu0 %v163
    %2473 = vmatpush1.msra.mxu0 %v162
    %2474 = vmatprep.subr.mxu0 %v167
    %2475 = vmatpush1.msra.mxu0 %v166
    %2476 = vmatprep.subr.mxu0 %v171
    %2477 = vmatpush1.msra.mxu0 %v170
    %2478 = vmatprep.subr.mxu0 %v175
    %2479 = vmatpush1.msra.mxu0 %v174
    %2480 = vmatprep.subr.mxu0 %v179
    %2481 = vmatpush1.msra.mxu0 %v178
    %2482 = vmatprep.subr.mxu0 %v183
    %2483 = vmatpush1.msra.mxu0 %v182
    %2484 = vmatprep.subr.mxu0 %v187
    %2485 = vmatpush1.msra.mxu0 %v186
    %2486 = vmatprep.subr.mxu0 %v191
    %2487 = vmatpush1.msra.mxu0 %v190
    %2488 = vmatprep.subr.mxu0 %v195
    %2489 = vmatpush1.msra.mxu0 %v194
    %2490 = vmatprep.subr.mxu0 %v199
    %2491 = vmatpush1.msra.mxu0 %v198
    %2492 = vmatprep.subr.mxu0 %v203
    %2493 = vmatpush1.msra.mxu0 %v202
    %2494 = vmatprep.subr.mxu0 %v207
    %2495 = vmatpush1.msra.mxu0 %v206
    %2496 = vmatprep.subr.mxu0 %v211
    %2497 = vmatpush1.msra.mxu0 %v210
    %2498 = vmatprep.subr.mxu0 %v215
    %2499 = vmatpush1.msra.mxu0 %v214
    %2500 = vmatprep.subr.mxu0 %v219
    %2501 = vmatpush1.msra.mxu0 %v218
    %2502 = vmatprep.subr.mxu0 %v223
    %2503 = vmatpush1.msra.mxu0 %v222
    %2504 = vmatprep.subr.mxu0 %v227
    %2505 = vmatpush1.msra.mxu0 %v226
    %2506 = vmatprep.subr.mxu0 %v231
    %2507 = vmatpush1.msra.mxu0 %v230
    %2508 = vmatprep.subr.mxu0 %v235
    %2509 = vmatpush1.msra.mxu0 %v234
    %2510 = vmatprep.subr.mxu0 %v239
    %2511 = vmatpush1.msra.mxu0 %v238
    %2512 = vmatprep.subr.mxu0 %v243
    %2513 = vmatpush1.msra.mxu0 %v242
    %2514 = vmatprep.subr.mxu0 %v247
    %2515 = vmatpush1.msra.mxu0 %v246
    %2516 = vmatprep.subr.mxu0 %v251
    %2517 = vmatpush1.msra.mxu0 %v250
    %2518 = vmatprep.subr.mxu0 %v255
    %2519 = vmatpush1.msra.mxu0 %v254
    %2520 = vmatprep.subr.mxu0 %v259
    %2521 = vmatpush1.msra.mxu0 %v258
    %2522 = vmatprep.subr.mxu0 %v263
    %2523 = vmatpush1.msra.mxu0 %v262
    %2524 = vmatprep.subr.mxu0 %v267
    %2525 = vmatpush1.msra.mxu0 %v266
    %2526 = vmatprep.subr.mxu0 %v271
    %2527 = vmatpush1.msra.mxu0 %v270
    %2528 = vmatprep.subr.mxu0 %v275
    %2529 = vmatpush1.msra.mxu0 %v274
    %2530 = vmatprep.mubr.f32.mxu0 %v2230
    %2531 = vmatmul.mubr.f32.gmra.mrb[0].mxu0 %v2394
    %v2532 = vpop.f32.mrb[0].mxu0
    %v2533 = vadd.f32 %v289, %v2532
    %v2534 = vpop.f32.mrb[0].mxu0
    %v2535 = vadd.f32 %v293, %v2534
    %2536 = vdwg.mxu0
    %v2537 = vmul.f32 %v2462, 0.5
    %v2538 = vtanh.pop %v2537
    %v2539 = vadd.f32 %v2538, 1.0
    %v2540 = vmul.f32 %v2539, 0.5
    %v2541 = vmul.f32 %v2464, 0.5
    %v2542 = vtanh.pop %v2541
    %v2543 = vadd.f32 %v2542, 1.0
    %v2544 = vmul.f32 %v2543, 0.5
    %v2545 = vtanh.pop %v2533
    %v2546 = vmul.f32 %v2535, 0.5
    %v2547 = vtanh.pop %v2546
    %v2548 = vadd.f32 %v2547, 1.0
    %v2549 = vmul.f32 %v2548, 0.5
    %v2550 = vmul.f32 %v2544, %v2228
    %v2551 = vmul.f32 %v2540, %v2545
    %v2552 = vadd.f32 %v2550, %v2551
    %v2553 = vtanh.pop %v2552
    %v2554 = vmul.f32 %v2549, %v2553
    %2555 = vmatprep.subr.mxu0 %v85
    %2556 = vmatpush1.msra.mxu0 %v84
    %2557 = vmatprep.subr.mxu0 %v89
    %2558 = vmatpush1.msra.mxu0 %v88
    %2559 = vmatprep.subr.mxu0 %v93
    %2560 = vmatpush1.msra.mxu0 %v92
    %2561 = vmatprep.subr.mxu0 %v97
    %2562 = vmatpush1.msra.mxu0 %v96
    %2563 = vmatprep.subr.mxu0 %v101
    %2564 = vmatpush1.msra.mxu0 %v100
    %2565 = vmatprep.subr.mxu0 %v105
    %2566 = vmatpush1.msra.mxu0 %v104
    %2567 = vmatprep.subr.mxu0 %v109
    %2568 = vmatpush1.msra.mxu0 %v108
    %2569 = vmatprep.subr.mxu0 %v113
    %2570 = vmatpush1.msra.mxu0 %v112
    %2571 = vmatprep.subr.mxu0 %v117
    %2572 = vmatpush1.msra.mxu0 %v116
    %2573 = vmatprep.subr.mxu0 %v121
    %2574 = vmatpush1.msra.mxu0 %v120
    %2575 = vmatprep.subr.mxu0 %v125
    %2576 = vmatpush1.msra.mxu0 %v124
    %2577 = vmatprep.subr.mxu0 %v129
    %2578 = vmatpush1.msra.mxu0 %v128
    %2579 = vmatprep.subr.mxu0 %v133
    %2580 = vmatpush1.msra.mxu0 %v132
    %2581 = vmatprep.subr.mxu0 %v137
    %2582 = vmatpush1.msra.mxu0 %v136
    %2583 = vmatprep.subr.mxu0 %v141
    %2584 = vmatpush1.msra.mxu0 %v140
    %2585 = vmatprep.subr.mxu0 %v145
    %2586 = vmatpush1.msra.mxu0 %v144
    %2587 = vmatprep.subr.mxu0 0.0
    %2588 = vmatpush1.msra.mxu0 0.0
    %2589 = vmatprep.subr.mxu0 0.0
    %2590 = vmatpush1.msra.mxu0 0.0
    %2591 = vmatprep.subr.mxu0 0.0
    %2592 = vmatpush1.msra.mxu0 0.0
    %2593 = vmatprep.subr.mxu0 0.0
    %2594 = vmatpush1.msra.mxu0 0.0
    %2595 = vmatprep.subr.mxu0 0.0
    %2596 = vmatpush1.msra.mxu0 0.0
    %2597 = vmatprep.subr.mxu0 0.0
    %2598 = vmatpush1.msra.mxu0 0.0
    %2599 = vmatprep.subr.mxu0 0.0
    %2600 = vmatpush1.msra.mxu0 0.0
    %2601 = vmatprep.subr.mxu0 0.0
    %2602 = vmatpush1.msra.mxu0 0.0
    %2603 = vmatprep.subr.mxu0 0.0
    %2604 = vmatpush1.msra.mxu0 0.0
    %2605 = vmatprep.subr.mxu0 0.0
    %2606 = vmatpush1.msra.mxu0 0.0
    %2607 = vmatprep.subr.mxu0 0.0
    %2608 = vmatpush1.msra.mxu0 0.0
    %2609 = vmatprep.subr.mxu0 0.0
    %2610 = vmatpush1.msra.mxu0 0.0
    %2611 = vmatprep.subr.mxu0 0.0
    %2612 = vmatpush1.msra.mxu0 0.0
    %2613 = vmatprep.subr.mxu0 0.0
    %2614 = vmatpush1.msra.mxu0 0.0
    %2615 = vmatprep.subr.mxu0 0.0
    %2616 = vmatpush1.msra.mxu0 0.0
    %2617 = vmatprep.subr.mxu0 0.0
    %2618 = vmatpush1.msra.mxu0 0.0
    %2619 = vmatprep.mubr.f32.mxu0 0.0
    %2620 = vmatmul.mubr.f32.gmra.mrb[0].mxu0 %v2394
    %v2621 = vpop.f32.mrb[0].mxu0
    %v2622 = vadd.f32 0.0, %v2621
    %v2623 = vpop.f32.mrb[0].mxu0
    %v2624 = vadd.f32 0.0, %v2623
    %2625 = vdwg.mxu0
    %2626 = vmatprep.subr.mxu0 %v87
    %2627 = vmatpush1.msra.mxu0 %v86
    %2628 = vmatprep.subr.mxu0 %v91
    %2629 = vmatpush1.msra.mxu0 %v90
    %2630 = vmatprep.subr.mxu0 %v95
    %2631 = vmatpush1.msra.mxu0 %v94
    %2632 = vmatprep.subr.mxu0 %v99
    %2633 = vmatpush1.msra.mxu0 %v98
    %2634 = vmatprep.subr.mxu0 %v103
    %2635 = vmatpush1.msra.mxu0 %v102
    %2636 = vmatprep.subr.mxu0 %v107
    %2637 = vmatpush1.msra.mxu0 %v106
    %2638 = vmatprep.subr.mxu0 %v111
    %2639 = vmatpush1.msra.mxu0 %v110
    %2640 = vmatprep.subr.mxu0 %v115
    %2641 = vmatpush1.msra.mxu0 %v114
    %2642 = vmatprep.subr.mxu0 %v119
    %2643 = vmatpush1.msra.mxu0 %v118
    %2644 = vmatprep.subr.mxu0 %v123
    %2645 = vmatpush1.msra.mxu0 %v122
    %2646 = vmatprep.subr.mxu0 %v127
    %2647 = vmatpush1.msra.mxu0 %v126
    %2648 = vmatprep.subr.mxu0 %v131
    %2649 = vmatpush1.msra.mxu0 %v130
    %2650 = vmatprep.subr.mxu0 %v135
    %2651 = vmatpush1.msra.mxu0 %v134
    %2652 = vmatprep.subr.mxu0 %v139
    %2653 = vmatpush1.msra.mxu0 %v138
    %2654 = vmatprep.subr.mxu0 %v143
    %2655 = vmatpush1.msra.mxu0 %v142
    %2656 = vmatprep.subr.mxu0 %v147
    %2657 = vmatpush1.msra.mxu0 %v146
    %2658 = vmatprep.subr.mxu0 0.0
    %2659 = vmatpush1.msra.mxu0 0.0
    %2660 = vmatprep.subr.mxu0 0.0
    %2661 = vmatpush1.msra.mxu0 0.0
    %2662 = vmatprep.subr.mxu0 0.0
    %2663 = vmatpush1.msra.mxu0 0.0
    %2664 = vmatprep.subr.mxu0 0.0
    %2665 = vmatpush1.msra.mxu0 0.0
    %2666 = vmatprep.subr.mxu0 0.0
    %2667 = vmatpush1.msra.mxu0 0.0
    %2668 = vmatprep.subr.mxu0 0.0
    %2669 = vmatpush1.msra.mxu0 0.0
    %2670 = vmatprep.subr.mxu0 0.0
    %2671 = vmatpush1.msra.mxu0 0.0
    %2672 = vmatprep.subr.mxu0 0.0
    %2673 = vmatpush1.msra.mxu0 0.0
    %2674 = vmatprep.subr.mxu0 0.0
    %2675 = vmatpush1.msra.mxu0 0.0
    %2676 = vmatprep.subr.mxu0 0.0
    %2677 = vmatpush1.msra.mxu0 0.0
    %2678 = vmatprep.subr.mxu0 0.0
    %2679 = vmatpush1.msra.mxu0 0.0
    %2680 = vmatprep.subr.mxu0 0.0
    %2681 = vmatpush1.msra.mxu0 0.0
    %2682 = vmatprep.subr.mxu0 0.0
    %2683 = vmatpush1.msra.mxu0 0.0
    %2684 = vmatprep.subr.mxu0 0.0
    %2685 = vmatpush1.msra.mxu0 0.0
    %2686 = vmatprep.subr.mxu0 0.0
    %2687 = vmatpush1.msra.mxu0 0.0
    %2688 = vmatprep.subr.mxu0 0.0
    %2689 = vmatpush1.msra.mxu0 0.0
    %2690 = vmatprep.mubr.f32.mxu0 0.0
    %2691 = vmatmul.mubr.f32.gmra.mrb[0].mxu0 %v2394
    %v2692 = vpop.f32.mrb[0].mxu0
    %v2693 = vadd.f32 0.0, %v2692
    %v2694 = vpop.f32.mrb[0].mxu0
    %v2695 = vadd.f32 0.0, %v2694
    %2696 = vdwg.mxu0
    %v2697 = vadd.f32 %v488, %v2622
    %v2698 = vadd.f32 %v490, %v2624
    %v2699 = vadd.f32 %v601, %v2693
    %v2700 = vadd.f32 %v603, %v2695
    %v2701 = vmul.f32 %v2697, 0.5
    %v2702 = vtanh.pop %v2701
    %v2703 = vadd.f32 %v2702, 1.0
    %v2704 = vmul.f32 %v2703, 0.5
    %v2705 = vmul.f32 %v2698, 0.5
    %v2706 = vtanh.pop %v2705
    %v2707 = vadd.f32 %v2706, 1.0
    %v2708 = vmul.f32 %v2707, 0.5
    %v2709 = vtanh.pop %v2699
    %v2710 = vmul.f32 %v2700, 0.5
    %v2711 = vtanh.pop %v2710
    %v2712 = vadd.f32 %v2711, 1.0
    %v2713 = vmul.f32 %v2712, 0.5
    %v2714 = vmul.f32 %v2708, %v2392
    %v2715 = vmul.f32 %v2704, %v2709
    %v2716 = vadd.f32 %v2714, %v2715
    %v2717 = vtanh.pop %v2716
    %v2718 = vmul.f32 %v2713, %v2717
    %2719 = vmatprep.subr.mxu0 %v149
    %2720 = vmatpush1.msra.mxu0 %v148
    %2721 = vmatprep.subr.mxu0 %v153
    %2722 = vmatpush1.msra.mxu0 %v152
    %2723 = vmatprep.subr.mxu0 %v157
    %2724 = vmatpush1.msra.mxu0 %v156
    %2725 = vmatprep.subr.mxu0 %v161
    %2726 = vmatpush1.msra.mxu0 %v160
    %2727 = vmatprep.subr.mxu0 %v165
    %2728 = vmatpush1.msra.mxu0 %v164
    %2729 = vmatprep.subr.mxu0 %v169
    %2730 = vmatpush1.msra.mxu0 %v168
    %2731 = vmatprep.subr.mxu0 %v173
    %2732 = vmatpush1.msra.mxu0 %v172
    %2733 = vmatprep.subr.mxu0 %v177
    %2734 = vmatpush1.msra.mxu0 %v176
    %2735 = vmatprep.subr.mxu0 %v181
    %2736 = vmatpush1.msra.mxu0 %v180
    %2737 = vmatprep.subr.mxu0 %v185
    %2738 = vmatpush1.msra.mxu0 %v184
    %2739 = vmatprep.subr.mxu0 %v189
    %2740 = vmatpush1.msra.mxu0 %v188
    %2741 = vmatprep.subr.mxu0 %v193
    %2742 = vmatpush1.msra.mxu0 %v192
    %2743 = vmatprep.subr.mxu0 %v197
    %2744 = vmatpush1.msra.mxu0 %v196
    %2745 = vmatprep.subr.mxu0 %v201
    %2746 = vmatpush1.msra.mxu0 %v200
    %2747 = vmatprep.subr.mxu0 %v205
    %2748 = vmatpush1.msra.mxu0 %v204
    %2749 = vmatprep.subr.mxu0 %v209
    %2750 = vmatpush1.msra.mxu0 %v208
    %2751 = vmatprep.subr.mxu0 %v213
    %2752 = vmatpush1.msra.mxu0 %v212
    %2753 = vmatprep.subr.mxu0 %v217
    %2754 = vmatpush1.msra.mxu0 %v216
    %2755 = vmatprep.subr.mxu0 %v221
    %2756 = vmatpush1.msra.mxu0 %v220
    %2757 = vmatprep.subr.mxu0 %v225
    %2758 = vmatpush1.msra.mxu0 %v224
    %2759 = vmatprep.subr.mxu0 %v229
    %2760 = vmatpush1.msra.mxu0 %v228
    %2761 = vmatprep.subr.mxu0 %v233
    %2762 = vmatpush1.msra.mxu0 %v232
    %2763 = vmatprep.subr.mxu0 %v237
    %2764 = vmatpush1.msra.mxu0 %v236
    %2765 = vmatprep.subr.mxu0 %v241
    %2766 = vmatpush1.msra.mxu0 %v240
    %2767 = vmatprep.subr.mxu0 %v245
    %2768 = vmatpush1.msra.mxu0 %v244
    %2769 = vmatprep.subr.mxu0 %v249
    %2770 = vmatpush1.msra.mxu0 %v248
    %2771 = vmatprep.subr.mxu0 %v253
    %2772 = vmatpush1.msra.mxu0 %v252
    %2773 = vmatprep.subr.mxu0 %v257
    %2774 = vmatpush1.msra.mxu0 %v256
    %2775 = vmatprep.subr.mxu0 %v261
    %2776 = vmatpush1.msra.mxu0 %v260
    %2777 = vmatprep.subr.mxu0 %v265
    %2778 = vmatpush1.msra.mxu0 %v264
    %2779 = vmatprep.subr.mxu0 %v269
    %2780 = vmatpush1.msra.mxu0 %v268
    %2781 = vmatprep.subr.mxu0 %v273
    %2782 = vmatpush1.msra.mxu0 %v272
    %2783 = vmatprep.mubr.f32.mxu0 %v2554
    %2784 = vmatmul.mubr.f32.gmra.mrb[0].mxu0 %v2718
    %v2785 = vpop.f32.mrb[0].mxu0
    %v2786 = vadd.f32 %v281, %v2785
    %v2787 = vpop.f32.mrb[0].mxu0
    %v2788 = vadd.f32 %v285, %v2787
    %2789 = vdwg.mxu0
    %2790 = vmatprep.subr.mxu0 %v151
    %2791 = vmatpush1.msra.mxu0 %v150
    %2792 = vmatprep.subr.mxu0 %v155
    %2793 = vmatpush1.msra.mxu0 %v154
    %2794 = vmatprep.subr.mxu0 %v159
    %2795 = vmatpush1.msra.mxu0 %v158
    %2796 = vmatprep.subr.mxu0 %v163
    %2797 = vmatpush1.msra.mxu0 %v162
    %2798 = vmatprep.subr.mxu0 %v167
    %2799 = vmatpush1.msra.mxu0 %v166
    %2800 = vmatprep.subr.mxu0 %v171
    %2801 = vmatpush1.msra.mxu0 %v170
    %2802 = vmatprep.subr.mxu0 %v175
    %2803 = vmatpush1.msra.mxu0 %v174
    %2804 = vmatprep.subr.mxu0 %v179
    %2805 = vmatpush1.msra.mxu0 %v178
    %2806 = vmatprep.subr.mxu0 %v183
    %2807 = vmatpush1.msra.mxu0 %v182
    %2808 = vmatprep.subr.mxu0 %v187
    %2809 = vmatpush1.msra.mxu0 %v186
    %2810 = vmatprep.subr.mxu0 %v191
    %2811 = vmatpush1.msra.mxu0 %v190
    %2812 = vmatprep.subr.mxu0 %v195
    %2813 = vmatpush1.msra.mxu0 %v194
    %2814 = vmatprep.subr.mxu0 %v199
    %2815 = vmatpush1.msra.mxu0 %v198
    %2816 = vmatprep.subr.mxu0 %v203
    %2817 = vmatpush1.msra.mxu0 %v202
    %2818 = vmatprep.subr.mxu0 %v207
    %2819 = vmatpush1.msra.mxu0 %v206
    %2820 = vmatprep.subr.mxu0 %v211
    %2821 = vmatpush1.msra.mxu0 %v210
    %2822 = vmatprep.subr.mxu0 %v215
    %2823 = vmatpush1.msra.mxu0 %v214
    %2824 = vmatprep.subr.mxu0 %v219
    %2825 = vmatpush1.msra.mxu0 %v218
    %2826 = vmatprep.subr.mxu0 %v223
    %2827 = vmatpush1.msra.mxu0 %v222
    %2828 = vmatprep.subr.mxu0 %v227
    %2829 = vmatpush1.msra.mxu0 %v226
    %2830 = vmatprep.subr.mxu0 %v231
    %2831 = vmatpush1.msra.mxu0 %v230
    %2832 = vmatprep.subr.mxu0 %v235
    %2833 = vmatpush1.msra.mxu0 %v234
    %2834 = vmatprep.subr.mxu0 %v239
    %2835 = vmatpush1.msra.mxu0 %v238
    %2836 = vmatprep.subr.mxu0 %v243
    %2837 = vmatpush1.msra.mxu0 %v242
    %2838 = vmatprep.subr.mxu0 %v247
    %2839 = vmatpush1.msra.mxu0 %v246
    %2840 = vmatprep.subr.mxu0 %v251
    %2841 = vmatpush1.msra.mxu0 %v250
    %2842 = vmatprep.subr.mxu0 %v255
    %2843 = vmatpush1.msra.mxu0 %v254
    %2844 = vmatprep.subr.mxu0 %v259
    %2845 = vmatpush1.msra.mxu0 %v258
    %2846 = vmatprep.subr.mxu0 %v263
    %2847 = vmatpush1.msra.mxu0 %v262
    %2848 = vmatprep.subr.mxu0 %v267
    %2849 = vmatpush1.msra.mxu0 %v266
    %2850 = vmatprep.subr.mxu0 %v271
    %2851 = vmatpush1.msra.mxu0 %v270
    %2852 = vmatprep.subr.mxu0 %v275
    %2853 = vmatpush1.msra.mxu0 %v274
    %2854 = vmatprep.mubr.f32.mxu0 %v2554
    %2855 = vmatmul.mubr.f32.gmra.mrb[0].mxu0 %v2718
    %v2856 = vpop.f32.mrb[0].mxu0
    %v2857 = vadd.f32 %v289, %v2856
    %v2858 = vpop.f32.mrb[0].mxu0
    %v2859 = vadd.f32 %v293, %v2858
    %2860 = vdwg.mxu0
    %v2861 = vmul.f32 %v2786, 0.5
    %v2862 = vtanh.pop %v2861
    %v2863 = vadd.f32 %v2862, 1.0
    %v2864 = vmul.f32 %v2863, 0.5
    %v2865 = vmul.f32 %v2788, 0.5
    %v2866 = vtanh.pop %v2865
    %v2867 = vadd.f32 %v2866, 1.0
    %v2868 = vmul.f32 %v2867, 0.5
    %v2869 = vtanh.pop %v2857
    %v2870 = vmul.f32 %v2859, 0.5
    %v2871 = vtanh.pop %v2870
    %v2872 = vadd.f32 %v2871, 1.0
    %v2873 = vmul.f32 %v2872, 0.5
    %v2874 = vmul.f32 %v2868, %v2552
    %v2875 = vmul.f32 %v2864, %v2869
    %v2876 = vadd.f32 %v2874, %v2875
    %v2877 = vtanh.pop %v2876
    %v2878 = vmul.f32 %v2873, %v2877
    %2879 = vmatprep.subr.mxu0 %v85
    %2880 = vmatpush1.msra.mxu0 %v84
    %2881 = vmatprep.subr.mxu0 %v89
    %2882 = vmatpush1.msra.mxu0 %v88
    %2883 = vmatprep.subr.mxu0 %v93
    %2884 = vmatpush1.msra.mxu0 %v92
    %2885 = vmatprep.subr.mxu0 %v97
    %2886 = vmatpush1.msra.mxu0 %v96
    %2887 = vmatprep.subr.mxu0 %v101
    %2888 = vmatpush1.msra.mxu0 %v100
    %2889 = vmatprep.subr.mxu0 %v105
    %2890 = vmatpush1.msra.mxu0 %v104
    %2891 = vmatprep.subr.mxu0 %v109
    %2892 = vmatpush1.msra.mxu0 %v108
    %2893 = vmatprep.subr.mxu0 %v113
    %2894 = vmatpush1.msra.mxu0 %v112
    %2895 = vmatprep.subr.mxu0 %v117
    %2896 = vmatpush1.msra.mxu0 %v116
    %2897 = vmatprep.subr.mxu0 %v121
    %2898 = vmatpush1.msra.mxu0 %v120
    %2899 = vmatprep.subr.mxu0 %v125
    %2900 = vmatpush1.msra.mxu0 %v124
    %2901 = vmatprep.subr.mxu0 %v129
    %2902 = vmatpush1.msra.mxu0 %v128
    %2903 = vmatprep.subr.mxu0 %v133
    %2904 = vmatpush1.msra.mxu0 %v132
    %2905 = vmatprep.subr.mxu0 %v137
    %2906 = vmatpush1.msra.mxu0 %v136
    %2907 = vmatprep.subr.mxu0 %v141
    %2908 = vmatpush1.msra.mxu0 %v140
    %2909 = vmatprep.subr.mxu0 %v145
    %2910 = vmatpush1.msra.mxu0 %v144
    %2911 = vmatprep.subr.mxu0 0.0
    %2912 = vmatpush1.msra.mxu0 0.0
    %2913 = vmatprep.subr.mxu0 0.0
    %2914 = vmatpush1.msra.mxu0 0.0
    %2915 = vmatprep.subr.mxu0 0.0
    %2916 = vmatpush1.msra.mxu0 0.0
    %2917 = vmatprep.subr.mxu0 0.0
    %2918 = vmatpush1.msra.mxu0 0.0
    %2919 = vmatprep.subr.mxu0 0.0
    %2920 = vmatpush1.msra.mxu0 0.0
    %2921 = vmatprep.subr.mxu0 0.0
    %2922 = vmatpush1.msra.mxu0 0.0
    %2923 = vmatprep.subr.mxu0 0.0
    %2924 = vmatpush1.msra.mxu0 0.0
    %2925 = vmatprep.subr.mxu0 0.0
    %2926 = vmatpush1.msra.mxu0 0.0
    %2927 = vmatprep.subr.mxu0 0.0
    %2928 = vmatpush1.msra.mxu0 0.0
    %2929 = vmatprep.subr.mxu0 0.0
    %2930 = vmatpush1.msra.mxu0 0.0
    %2931 = vmatprep.subr.mxu0 0.0
    %2932 = vmatpush1.msra.mxu0 0.0
    %2933 = vmatprep.subr.mxu0 0.0
    %2934 = vmatpush1.msra.mxu0 0.0
    %2935 = vmatprep.subr.mxu0 0.0
    %2936 = vmatpush1.msra.mxu0 0.0
    %2937 = vmatprep.subr.mxu0 0.0
    %2938 = vmatpush1.msra.mxu0 0.0
    %2939 = vmatprep.subr.mxu0 0.0
    %2940 = vmatpush1.msra.mxu0 0.0
    %2941 = vmatprep.subr.mxu0 0.0
    %2942 = vmatpush1.msra.mxu0 0.0
    %2943 = vmatprep.mubr.f32.mxu0 0.0
    %2944 = vmatmul.mubr.f32.gmra.mrb[0].mxu0 %v2718
    %v2945 = vpop.f32.mrb[0].mxu0
    %v2946 = vadd.f32 0.0, %v2945
    %v2947 = vpop.f32.mrb[0].mxu0
    %v2948 = vadd.f32 0.0, %v2947
    %2949 = vdwg.mxu0
    %2950 = vmatprep.subr.mxu0 %v87
    %2951 = vmatpush1.msra.mxu0 %v86
    %2952 = vmatprep.subr.mxu0 %v91
    %2953 = vmatpush1.msra.mxu0 %v90
    %2954 = vmatprep.subr.mxu0 %v95
    %2955 = vmatpush1.msra.mxu0 %v94
    %2956 = vmatprep.subr.mxu0 %v99
    %2957 = vmatpush1.msra.mxu0 %v98
    %2958 = vmatprep.subr.mxu0 %v103
    %2959 = vmatpush1.msra.mxu0 %v102
    %2960 = vmatprep.subr.mxu0 %v107
    %2961 = vmatpush1.msra.mxu0 %v106
    %2962 = vmatprep.subr.mxu0 %v111
    %2963 = vmatpush1.msra.mxu0 %v110
    %2964 = vmatprep.subr.mxu0 %v115
    %2965 = vmatpush1.msra.mxu0 %v114
    %2966 = vmatprep.subr.mxu0 %v119
    %2967 = vmatpush1.msra.mxu0 %v118
    %2968 = vmatprep.subr.mxu0 %v123
    %2969 = vmatpush1.msra.mxu0 %v122
    %2970 = vmatprep.subr.mxu0 %v127
    %2971 = vmatpush1.msra.mxu0 %v126
    %2972 = vmatprep.subr.mxu0 %v131
    %2973 = vmatpush1.msra.mxu0 %v130
    %2974 = vmatprep.subr.mxu0 %v135
    %2975 = vmatpush1.msra.mxu0 %v134
    %2976 = vmatprep.subr.mxu0 %v139
    %2977 = vmatpush1.msra.mxu0 %v138
    %2978 = vmatprep.subr.mxu0 %v143
    %2979 = vmatpush1.msra.mxu0 %v142
    %2980 = vmatprep.subr.mxu0 %v147
    %2981 = vmatpush1.msra.mxu0 %v146
    %2982 = vmatprep.subr.mxu0 0.0
    %2983 = vmatpush1.msra.mxu0 0.0
    %2984 = vmatprep.subr.mxu0 0.0
    %2985 = vmatpush1.msra.mxu0 0.0
    %2986 = vmatprep.subr.mxu0 0.0
    %2987 = vmatpush1.msra.mxu0 0.0
    %2988 = vmatprep.subr.mxu0 0.0
    %2989 = vmatpush1.msra.mxu0 0.0
    %2990 = vmatprep.subr.mxu0 0.0
    %2991 = vmatpush1.msra.mxu0 0.0
    %2992 = vmatprep.subr.mxu0 0.0
    %2993 = vmatpush1.msra.mxu0 0.0
    %2994 = vmatprep.subr.mxu0 0.0
    %2995 = vmatpush1.msra.mxu0 0.0
    %2996 = vmatprep.subr.mxu0 0.0
    %2997 = vmatpush1.msra.mxu0 0.0
    %2998 = vmatprep.subr.mxu0 0.0
    %2999 = vmatpush1.msra.mxu0 0.0
    %3000 = vmatprep.subr.mxu0 0.0
    %3001 = vmatpush1.msra.mxu0 0.0
    %3002 = vmatprep.subr.mxu0 0.0
    %3003 = vmatpush1.msra.mxu0 0.0
    %3004 = vmatprep.subr.mxu0 0.0
    %3005 = vmatpush1.msra.mxu0 0.0
    %3006 = vmatprep.subr.mxu0 0.0
    %3007 = vmatpush1.msra.mxu0 0.0
    %3008 = vmatprep.subr.mxu0 0.0
    %3009 = vmatpush1.msra.mxu0 0.0
    %3010 = vmatprep.subr.mxu0 0.0
    %3011 = vmatpush1.msra.mxu0 0.0
    %3012 = vmatprep.subr.mxu0 0.0
    %3013 = vmatpush1.msra.mxu0 0.0
    %3014 = vmatprep.mubr.f32.mxu0 0.0
    %3015 = vmatmul.mubr.f32.gmra.mrb[0].mxu0 %v2718
    %v3016 = vpop.f32.mrb[0].mxu0
    %v3017 = vadd.f32 0.0, %v3016
    %v3018 = vpop.f32.mrb[0].mxu0
    %v3019 = vadd.f32 0.0, %v3018
    %3020 = vdwg.mxu0
    %v3021 = vadd.f32 %v494, %v2946
    %v3022 = vadd.f32 %v496, %v2948
    %v3023 = vadd.f32 %v607, %v3017
    %v3024 = vadd.f32 %v609, %v3019
    %v3025 = vmul.f32 %v3021, 0.5
    %v3026 = vtanh.pop %v3025
    %v3027 = vadd.f32 %v3026, 1.0
    %v3028 = vmul.f32 %v3027, 0.5
    %v3029 = vmul.f32 %v3022, 0.5
    %v3030 = vtanh.pop %v3029
    %v3031 = vadd.f32 %v3030, 1.0
    %v3032 = vmul.f32 %v3031, 0.5
    %v3033 = vtanh.pop %v3023
    %v3034 = vmul.f32 %v3024, 0.5
    %v3035 = vtanh.pop %v3034
    %v3036 = vadd.f32 %v3035, 1.0
    %v3037 = vmul.f32 %v3036, 0.5
    %v3038 = vmul.f32 %v3032, %v2716
    %v3039 = vmul.f32 %v3028, %v3033
    %v3040 = vadd.f32 %v3038, %v3039
    %v3041 = vtanh.pop %v3040
    %v3042 = vmul.f32 %v3037, %v3041
    %3043 = vmatprep.subr.mxu0 %v149
    %3044 = vmatpush1.msra.mxu0 %v148
    %3045 = vmatprep.subr.mxu0 %v153
    %3046 = vmatpush1.msra.mxu0 %v152
    %3047 = vmatprep.subr.mxu0 %v157
    %3048 = vmatpush1.msra.mxu0 %v156
    %3049 = vmatprep.subr.mxu0 %v161
    %3050 = vmatpush1.msra.mxu0 %v160
    %3051 = vmatprep.subr.mxu0 %v165
    %3052 = vmatpush1.msra.mxu0 %v164
    %3053 = vmatprep.subr.mxu0 %v169
    %3054 = vmatpush1.msra.mxu0 %v168
    %3055 = vmatprep.subr.mxu0 %v173
    %3056 = vmatpush1.msra.mxu0 %v172
    %3057 = vmatprep.subr.mxu0 %v177
    %3058 = vmatpush1.msra.mxu0 %v176
    %3059 = vmatprep.subr.mxu0 %v181
    %3060 = vmatpush1.msra.mxu0 %v180
    %3061 = vmatprep.subr.mxu0 %v185
    %3062 = vmatpush1.msra.mxu0 %v184
    %3063 = vmatprep.subr.mxu0 %v189
    %3064 = vmatpush1.msra.mxu0 %v188
    %3065 = vmatprep.subr.mxu0 %v193
    %3066 = vmatpush1.msra.mxu0 %v192
    %3067 = vmatprep.subr.mxu0 %v197
    %3068 = vmatpush1.msra.mxu0 %v196
    %3069 = vmatprep.subr.mxu0 %v201
    %3070 = vmatpush1.msra.mxu0 %v200
    %3071 = vmatprep.subr.mxu0 %v205
    %3072 = vmatpush1.msra.mxu0 %v204
    %3073 = vmatprep.subr.mxu0 %v209
    %3074 = vmatpush1.msra.mxu0 %v208
    %3075 = vmatprep.subr.mxu0 %v213
    %3076 = vmatpush1.msra.mxu0 %v212
    %3077 = vmatprep.subr.mxu0 %v217
    %3078 = vmatpush1.msra.mxu0 %v216
    %3079 = vmatprep.subr.mxu0 %v221
    %3080 = vmatpush1.msra.mxu0 %v220
    %3081 = vmatprep.subr.mxu0 %v225
    %3082 = vmatpush1.msra.mxu0 %v224
    %3083 = vmatprep.subr.mxu0 %v229
    %3084 = vmatpush1.msra.mxu0 %v228
    %3085 = vmatprep.subr.mxu0 %v233
    %3086 = vmatpush1.msra.mxu0 %v232
    %3087 = vmatprep.subr.mxu0 %v237
    %3088 = vmatpush1.msra.mxu0 %v236
    %3089 = vmatprep.subr.mxu0 %v241
    %3090 = vmatpush1.msra.mxu0 %v240
    %3091 = vmatprep.subr.mxu0 %v245
    %3092 = vmatpush1.msra.mxu0 %v244
    %3093 = vmatprep.subr.mxu0 %v249
    %3094 = vmatpush1.msra.mxu0 %v248
    %3095 = vmatprep.subr.mxu0 %v253
    %3096 = vmatpush1.msra.mxu0 %v252
    %3097 = vmatprep.subr.mxu0 %v257
    %3098 = vmatpush1.msra.mxu0 %v256
    %3099 = vmatprep.subr.mxu0 %v261
    %3100 = vmatpush1.msra.mxu0 %v260
    %3101 = vmatprep.subr.mxu0 %v265
    %3102 = vmatpush1.msra.mxu0 %v264
    %3103 = vmatprep.subr.mxu0 %v269
    %3104 = vmatpush1.msra.mxu0 %v268
    %3105 = vmatprep.subr.mxu0 %v273
    %3106 = vmatpush1.msra.mxu0 %v272
    %3107 = vmatprep.mubr.f32.mxu0 %v2878
    %3108 = vmatmul.mubr.f32.gmra.mrb[0].mxu0 %v3042
    %v3109 = vpop.f32.mrb[0].mxu0
    %v3110 = vadd.f32 %v281, %v3109
    %v3111 = vpop.f32.mrb[0].mxu0
    %v3112 = vadd.f32 %v285, %v3111
    %3113 = vdwg.mxu0
    %3114 = vmatprep.subr.mxu0 %v151
    %3115 = vmatpush1.msra.mxu0 %v150
    %3116 = vmatprep.subr.mxu0 %v155
    %3117 = vmatpush1.msra.mxu0 %v154
    %3118 = vmatprep.subr.mxu0 %v159
    %3119 = vmatpush1.msra.mxu0 %v158
    %3120 = vmatprep.subr.mxu0 %v163
    %3121 = vmatpush1.msra.mxu0 %v162
    %3122 = vmatprep.subr.mxu0 %v167
    %3123 = vmatpush1.msra.mxu0 %v166
    %3124 = vmatprep.subr.mxu0 %v171
    %3125 = vmatpush1.msra.mxu0 %v170
    %3126 = vmatprep.subr.mxu0 %v175
    %3127 = vmatpush1.msra.mxu0 %v174
    %3128 = vmatprep.subr.mxu0 %v179
    %3129 = vmatpush1.msra.mxu0 %v178
    %3130 = vmatprep.subr.mxu0 %v183
    %3131 = vmatpush1.msra.mxu0 %v182
    %3132 = vmatprep.subr.mxu0 %v187
    %3133 = vmatpush1.msra.mxu0 %v186
    %3134 = vmatprep.subr.mxu0 %v191
    %3135 = vmatpush1.msra.mxu0 %v190
    %3136 = vmatprep.subr.mxu0 %v195
    %3137 = vmatpush1.msra.mxu0 %v194
    %3138 = vmatprep.subr.mxu0 %v199
    %3139 = vmatpush1.msra.mxu0 %v198
    %3140 = vmatprep.subr.mxu0 %v203
    %3141 = vmatpush1.msra.mxu0 %v202
    %3142 = vmatprep.subr.mxu0 %v207
    %3143 = vmatpush1.msra.mxu0 %v206
    %3144 = vmatprep.subr.mxu0 %v211
    %3145 = vmatpush1.msra.mxu0 %v210
    %3146 = vmatprep.subr.mxu0 %v215
    %3147 = vmatpush1.msra.mxu0 %v214
    %3148 = vmatprep.subr.mxu0 %v219
    %3149 = vmatpush1.msra.mxu0 %v218
    %3150 = vmatprep.subr.mxu0 %v223
    %3151 = vmatpush1.msra.mxu0 %v222
    %3152 = vmatprep.subr.mxu0 %v227
    %3153 = vmatpush1.msra.mxu0 %v226
    %3154 = vmatprep.subr.mxu0 %v231
    %3155 = vmatpush1.msra.mxu0 %v230
    %3156 = vmatprep.subr.mxu0 %v235
    %3157 = vmatpush1.msra.mxu0 %v234
    %3158 = vmatprep.subr.mxu0 %v239
    %3159 = vmatpush1.msra.mxu0 %v238
    %3160 = vmatprep.subr.mxu0 %v243
    %3161 = vmatpush1.msra.mxu0 %v242
    %3162 = vmatprep.subr.mxu0 %v247
    %3163 = vmatpush1.msra.mxu0 %v246
    %3164 = vmatprep.subr.mxu0 %v251
    %3165 = vmatpush1.msra.mxu0 %v250
    %3166 = vmatprep.subr.mxu0 %v255
    %3167 = vmatpush1.msra.mxu0 %v254
    %3168 = vmatprep.subr.mxu0 %v259
    %3169 = vmatpush1.msra.mxu0 %v258
    %3170 = vmatprep.subr.mxu0 %v263
    %3171 = vmatpush1.msra.mxu0 %v262
    %3172 = vmatprep.subr.mxu0 %v267
    %3173 = vmatpush1.msra.mxu0 %v266
    %3174 = vmatprep.subr.mxu0 %v271
    %3175 = vmatpush1.msra.mxu0 %v270
    %3176 = vmatprep.subr.mxu0 %v275
    %3177 = vmatpush1.msra.mxu0 %v274
    %3178 = vmatprep.mubr.f32.mxu0 %v2878
    %3179 = vmatmul.mubr.f32.gmra.mrb[0].mxu0 %v3042
    %v3180 = vpop.f32.mrb[0].mxu0
    %v3181 = vadd.f32 %v289, %v3180
    %v3182 = vpop.f32.mrb[0].mxu0
    %v3183 = vadd.f32 %v293, %v3182
    %3184 = vdwg.mxu0
    %v3185 = vmul.f32 %v3110, 0.5
    %v3186 = vtanh.pop %v3185
    %v3187 = vadd.f32 %v3186, 1.0
    %v3188 = vmul.f32 %v3187, 0.5
    %v3189 = vmul.f32 %v3112, 0.5
    %v3190 = vtanh.pop %v3189
    %v3191 = vadd.f32 %v3190, 1.0
    %v3192 = vmul.f32 %v3191, 0.5
    %v3193 = vtanh.pop %v3181
    %v3194 = vmul.f32 %v3183, 0.5
    %v3195 = vtanh.pop %v3194
    %v3196 = vadd.f32 %v3195, 1.0
    %v3197 = vmul.f32 %v3196, 0.5
    %v3198 = vmul.f32 %v3192, %v2876
    %v3199 = vmul.f32 %v3188, %v3193
    %v3200 = vadd.f32 %v3198, %v3199
    %v3201 = vtanh.pop %v3200
    %v3202 = vmul.f32 %v3197, %v3201
    %v3203 = vld [vmem:[#allocation7] sm:$0xff]
    %v3204 = vld [vmem:[#allocation7 + $0x8] sm:$0xff]
    %v3205 = vld [vmem:[#allocation7 + $0x10] sm:$0xff]
    %v3206 = vld [vmem:[#allocation7 + $0x18] sm:$0xff]
    %v3207 = vld [vmem:[#allocation7 + $0x20] sm:$0xff]
    %v3208 = vld [vmem:[#allocation7 + $0x28] sm:$0xff]
    %v3209 = vld [vmem:[#allocation7 + $0x30] sm:$0xff]
    %v3210 = vld [vmem:[#allocation7 + $0x38] sm:$0xff]
    %v3211 = vld [vmem:[#allocation7 + $0x40] sm:$0xff]
    %v3212 = vld [vmem:[#allocation7 + $0x48] sm:$0xff]
    %v3213 = vld [vmem:[#allocation7 + $0x50] sm:$0xff]
    %v3214 = vld [vmem:[#allocation7 + $0x58] sm:$0xff]
    %v3215 = vld [vmem:[#allocation7 + $0x60] sm:$0xff]
    %v3216 = vld [vmem:[#allocation7 + $0x68] sm:$0xff]
    %v3217 = vld [vmem:[#allocation7 + $0x70] sm:$0xff]
    %v3218 = vld [vmem:[#allocation7 + $0x78] sm:$0xff]
    %v3219 = vld [vmem:[%s7] sm:$0x1]
    %v3221 = vlaneseq
    %v3222 = vshrl.u32 %v3221, 7
    %v3223 = vsub.s32 0, %v3222
    %v3224 = vrot.slane %v3219, %v3223
    %3226 = vmatprep.subr.mxu0 0.0
    %3227 = vmatpush1.msra.mxu0 %v3203
    %3228 = vmatprep.subr.mxu0 0.0
    %3229 = vmatpush1.msra.mxu0 %v3204
    %3230 = vmatprep.subr.mxu0 0.0
    %3231 = vmatpush1.msra.mxu0 %v3205
    %3232 = vmatprep.subr.mxu0 0.0
    %3233 = vmatpush1.msra.mxu0 %v3206
    %3234 = vmatprep.subr.mxu0 0.0
    %3235 = vmatpush1.msra.mxu0 %v3207
    %3236 = vmatprep.subr.mxu0 0.0
    %3237 = vmatpush1.msra.mxu0 %v3208
    %3238 = vmatprep.subr.mxu0 0.0
    %3239 = vmatpush1.msra.mxu0 %v3209
    %3240 = vmatprep.subr.mxu0 0.0
    %3241 = vmatpush1.msra.mxu0 %v3210
    %3242 = vmatprep.subr.mxu0 0.0
    %3243 = vmatpush1.msra.mxu0 %v3211
    %3244 = vmatprep.subr.mxu0 0.0
    %3245 = vmatpush1.msra.mxu0 %v3212
    %3246 = vmatprep.subr.mxu0 0.0
    %3247 = vmatpush1.msra.mxu0 %v3213
    %3248 = vmatprep.subr.mxu0 0.0
    %3249 = vmatpush1.msra.mxu0 %v3214
    %3250 = vmatprep.subr.mxu0 0.0
    %3251 = vmatpush1.msra.mxu0 %v3215
    %3252 = vmatprep.subr.mxu0 0.0
    %3253 = vmatpush1.msra.mxu0 %v3216
    %3254 = vmatprep.subr.mxu0 0.0
    %3255 = vmatpush1.msra.mxu0 %v3217
    %3256 = vmatprep.subr.mxu0 0.0
    %3257 = vmatpush1.msra.mxu0 %v3218
    %3258 = vmatprep.subr.mxu0 0.0
    %3259 = vmatpush1.msra.mxu0 0.0
    %3260 = vmatprep.subr.mxu0 0.0
    %3261 = vmatpush1.msra.mxu0 0.0
    %3262 = vmatprep.subr.mxu0 0.0
    %3263 = vmatpush1.msra.mxu0 0.0
    %3264 = vmatprep.subr.mxu0 0.0
    %3265 = vmatpush1.msra.mxu0 0.0
    %3266 = vmatprep.subr.mxu0 0.0
    %3267 = vmatpush1.msra.mxu0 0.0
    %3268 = vmatprep.subr.mxu0 0.0
    %3269 = vmatpush1.msra.mxu0 0.0
    %3270 = vmatprep.subr.mxu0 0.0
    %3271 = vmatpush1.msra.mxu0 0.0
    %3272 = vmatprep.subr.mxu0 0.0
    %3273 = vmatpush1.msra.mxu0 0.0
    %3274 = vmatprep.subr.mxu0 0.0
    %3275 = vmatpush1.msra.mxu0 0.0
    %3276 = vmatprep.subr.mxu0 0.0
    %3277 = vmatpush1.msra.mxu0 0.0
    %3278 = vmatprep.subr.mxu0 0.0
    %3279 = vmatpush1.msra.mxu0 0.0
    %3280 = vmatprep.subr.mxu0 0.0
    %3281 = vmatpush1.msra.mxu0 0.0
    %3282 = vmatprep.subr.mxu0 0.0
    %3283 = vmatpush1.msra.mxu0 0.0
    %3284 = vmatprep.subr.mxu0 0.0
    %3285 = vmatpush1.msra.mxu0 0.0
    %3286 = vmatprep.subr.mxu0 0.0
    %3287 = vmatpush1.msra.mxu0 0.0
    %3288 = vmatprep.subr.mxu0 0.0
    %3289 = vmatpush1.msra.mxu0 0.0
    %3290 = vmatprep.mubr.f32.mxu0 0.0
    %3291 = vmatmul.mubr.f32.gmra.mrb[0].mxu0 %v934
    %v3292 = vpop.f32.mrb[0].mxu0
    %v3293 = vadd.f32 %v3224, %v3292
    %v3294 = vpop.f32.mrb[0].mxu0
    %3295 = vmatprep.mubr.f32.mxu0 0.0
    %3296 = vmatmul.mubr.f32.gmra.mrb[0].mxu0 %v1258
    %v3297 = vpop.f32.mrb[0].mxu0
    %v3298 = vadd.f32 %v3224, %v3297
    %v3299 = vpop.f32.mrb[0].mxu0
    %3300 = vmatprep.mubr.f32.mxu0 0.0
    %3301 = vmatmul.mubr.f32.gmra.mrb[0].mxu0 %v1582
    %v3302 = vpop.f32.mrb[0].mxu0
    %v3303 = vadd.f32 %v3224, %v3302
    %v3304 = vpop.f32.mrb[0].mxu0
    %3305 = vmatprep.mubr.f32.mxu0 0.0
    %3306 = vmatmul.mubr.f32.gmra.mrb[0].mxu0 %v1906
    %v3307 = vpop.f32.mrb[0].mxu0
    %v3308 = vadd.f32 %v3224, %v3307
    %v3309 = vpop.f32.mrb[0].mxu0
    %3310 = vmatprep.mubr.f32.mxu0 0.0
    %3311 = vmatmul.mubr.f32.gmra.mrb[0].mxu0 %v2230
    %v3312 = vpop.f32.mrb[0].mxu0
    %v3313 = vadd.f32 %v3224, %v3312
    %v3314 = vpop.f32.mrb[0].mxu0
    %3315 = vmatprep.mubr.f32.mxu0 0.0
    %3316 = vmatmul.mubr.f32.gmra.mrb[0].mxu0 %v2554
    %v3317 = vpop.f32.mrb[0].mxu0
    %v3318 = vadd.f32 %v3224, %v3317
    %v3319 = vpop.f32.mrb[0].mxu0
    %3320 = vmatprep.mubr.f32.mxu0 0.0
    %3321 = vmatmul.mubr.f32.gmra.mrb[0].mxu0 %v2878
    %v3322 = vpop.f32.mrb[0].mxu0
    %v3323 = vadd.f32 %v3224, %v3322
    %v3324 = vpop.f32.mrb[0].mxu0
    %3325 = vmatprep.mubr.f32.mxu0 0.0
    %3326 = vmatmul.mubr.f32.gmra.mrb[0].mxu0 %v3202
    %v3327 = vpop.f32.mrb[0].mxu0
    %v3328 = vadd.f32 %v3224, %v3327
    %v3329 = vpop.f32.mrb[0].mxu0
    %3330 = vdwg.mxu0
    %3331 = vst [vmem:[%s8] sm:$0xff] %v3293
    %3332 = vst [vmem:[%s8 + $0x8] sm:$0xff] %v3298
    %3333 = vst [vmem:[%s8 + $0x10] sm:$0xff] %v3303
    %3334 = vst [vmem:[%s8 + $0x18] sm:$0xff] %v3308
    %3335 = vst [vmem:[%s8 + $0x20] sm:$0xff] %v3313
    %3336 = vst [vmem:[%s8 + $0x28] sm:$0xff] %v3318
    %3337 = vst [vmem:[%s8 + $0x30] sm:$0xff] %v3323
    %3338 = vst [vmem:[%s8 + $0x38] sm:$0xff] %v3328
    // Predicated region
    $region50: #{lstm_reg_forward.1} parent=1 // pred_check
      _
    $region51: #{lstm_reg_forward.1} parent=1 // pred_check_branch
      %3340 = sbr.rel (0) target = $region53
    $region52: #{lstm_reg_forward.1} parent=1 // pred_region
      _
    $region53: #{lstm_reg_forward.1} parent=1 // pred_fallthru
      _
    // Predicated region
    $region54: #{lstm_reg_forward.1} parent=1 // pred_check
      _
    $region55: #{lstm_reg_forward.1} parent=1 // pred_check_branch
      %3342 = sbr.rel (0) target = $region57
    $region56: #{lstm_reg_forward.1} parent=1 // pred_region
      _
    $region57: #{lstm_reg_forward.1} parent=1 // pred_fallthru
      _
    %3343 = vsyncpa [#allocation3], 1
    %3344 = vsyncpa [#allocation5], 1
    %3345 = vsyncpa [#allocation8], 1

</llo_original>
